<compile_context>
chip_gen: v6e
topology: v6e:2x2x1
jax: 0.10.0
libtpu: 0.0.40
codegen_flags: <defaults>
</compile_context>

<pallas_src>
import functools

import jax
import jax.numpy as jnp
import numpy as np
from jax.experimental import pallas as pl
from jax.experimental.pallas import tpu as pltpu

_VMEM_FULL = pl.BlockSpec(memory_space=pltpu.MemorySpace.VMEM)


def _segments(sizes):
    segs, off = [], 0
    for s in sizes:
        segs.append((off, int(s)))
        off += int(s)
    return tuple(segs)


def _vmem_limit_bytes():
    try:
        cap = int(pltpu.get_tpu_info().vmem_capacity_bytes)
        # Leave ~28 MiB headroom for the compiler's own buffers (v5e/v6e: ~100 MiB,
        # v7x: ~36 MiB of its 64 MiB).
        return max(cap - 28 * 1024 * 1024, 32 * 1024 * 1024)
    except Exception:
        return 48 * 1024 * 1024


def _graph_norm_mm(x, segments, eps=1e-5):
    """Per-graph (mean, unbiased std) norm via MXU mask matmuls; O(1) in graph count."""
    n = x.shape[0]
    g = len(segments)
    col_n = jax.lax.broadcasted_iota(jnp.int32, (g, n), 1)   # node id (lanes)
    row_g = jax.lax.broadcasted_iota(jnp.int32, (g, n), 0)   # graph id (sublanes)
    row_n = jax.lax.broadcasted_iota(jnp.int32, (n, g), 0)   # node id (sublanes)
    col_g = jax.lax.broadcasted_iota(jnp.int32, (n, g), 1)   # graph id (lanes)
    w_mean = jnp.zeros((g, n), jnp.float32)
    w_var = jnp.zeros((g, n), jnp.float32)
    bcast = jnp.zeros((n, g), jnp.float32)
    for gi, (off, s) in enumerate(segments):
        in_gn = (row_g == gi) & (col_n >= off) & (col_n < off + s)
        in_ng = (col_g == gi) & (row_n >= off) & (row_n < off + s)
        w_mean = jnp.where(in_gn, 1.0 / s, w_mean)
        # torch.std uses ddof=1; single-element graphs (NaN in torch) are guarded to 0.
        w_var = jnp.where(in_gn, (1.0 / (s - 1.0)) if s > 1 else 0.0, w_var)
        bcast = jnp.where(in_ng, 1.0, bcast)
    mean = jnp.dot(w_mean, x, preferred_element_type=jnp.float32)          # [G, C]
    cg = x - jnp.dot(bcast, mean, preferred_element_type=jnp.float32)      # centered
    var = jnp.dot(w_var, cg * cg, preferred_element_type=jnp.float32)      # [G, C]
    inv = 1.0 / (jnp.sqrt(var) + eps)
    return cg * jnp.dot(bcast, inv, preferred_element_type=jnp.float32)


# ----------------------------------------------------------------------------
# Kernel 1 (fused node path + edge-norm statistics):
#   packed node Linear (Bv|Dv|Ev), edge Linear (Ce), gated message,
#   scatter-reduce over edge tiles, per-graph edge sum/sumsq accumulation,
#   GraphNorm + ReLU + residual for the node output.
# ----------------------------------------------------------------------------
def _node_kernel(node_segments, edge_segments, residual, c, edge_tile,
                 nf_ref, wn_ref, bn_ref, wa_ref, ba_ref, we_ref, be_ref,
                 ef_ref, efac_ref, srcc_ref, dstc_ref, dstr_ref,
                 nfac_ref, gamma_ref, beta_ref,
                 o_ref, estats_ref, proj_ref, acc_ref):
    step = pl.program_id(0)
    n = proj_ref.shape[0]
    te = ef_ref.shape[0]
    ge = len(edge_segments)

    @pl.when(step == 0)
    def _init():
        # Packed projection [N, 3C] = Bv | Dv | Ev (lane-dense; Av is finalize-only).
        proj_ref[...] = (
            jnp.dot(nf_ref[...], wn_ref[...], preferred_element_type=jnp.float32)
            + bn_ref[...])
        acc_ref[...] = jnp.zeros_like(acc_ref)
        estats_ref[...] = jnp.zeros_like(estats_ref)

    # ---- edge Linear (Ce) for this edge tile ----
    ef = ef_ref[...]
    ce = jnp.dot(ef, we_ref[...], preferred_element_type=jnp.float32) + be_ref[...]

    # ---- one-hot gather/scatter matrices built in VMEM from int32 indices ----
    # (padded edges carry index -1 -> all-zero rows/cols -> contribute exactly zero)
    iota_tn = jax.lax.broadcasted_iota(jnp.int32, (te, n), 1)
    iota_nt = jax.lax.broadcasted_iota(jnp.int32, (n, te), 0)
    src_oh = (srcc_ref[...] == iota_tn).astype(jnp.float32)     # [TE, N] gather @ src
    dst_oh = (dstc_ref[...] == iota_tn).astype(jnp.float32)     # [TE, N] gather @ dst
    dst_oh_nt = (dstr_ref[...] == iota_nt).astype(jnp.float32)  # [N, TE] scatter -> dst

    # ---- gathers: Bv|Dv are lanes [0, 2C) of proj (128-lane aligned slice) ----
    bd = jnp.dot(src_oh, proj_ref[:, :2 * c], preferred_element_type=jnp.float32)
    ev_i = jnp.dot(dst_oh, proj_ref[:, 2 * c:], preferred_element_type=jnp.float32)
    bv_j = bd[:, :c]
    dv_j = bd[:, c:]

    score = jax.nn.sigmoid(dv_j + ce + ev_i)

    # ---- scatter num|den: standard-orientation [N,TE] x [TE,2C] matmul (no XLU
    #      transpose of the one-hot) ----
    msg = jnp.concatenate([score * bv_j, score], axis=1)         # [TE, 2C]
    acc_ref[...] += jnp.dot(dst_oh_nt, msg, preferred_element_type=jnp.float32)

    # ---- per-graph edge GraphNorm statistics (sum | sum-of-squares) ----
    erow = jax.lax.broadcasted_iota(jnp.int32, (ge, te), 1) + step * edge_tile
    grow = jax.lax.broadcasted_iota(jnp.int32, (ge, te), 0)
    emask = jnp.zeros((ge, te), jnp.float32)
    for gi, (off, s) in enumerate(edge_segments):
        m = (grow == gi) & (erow >= off) & (erow < off + s)
        emask = jnp.where(m, 1.0, emask)                          # [Ge, TE]
    xe = ef * efac_ref[...]
    estats_ref[...] += jnp.dot(emask, jnp.concatenate([xe, xe * xe], axis=1),
                               preferred_element_type=jnp.float32)

    @pl.when(step == pl.num_programs(0) - 1)
    def _finalize():
        av = (jnp.dot(nf_ref[...], wa_ref[...], preferred_element_type=jnp.float32)
              + ba_ref[...])
        acc = acc_ref[...]
        # Zero in-degree nodes get den=0 -> num/1e-6; identical to the DGL reference.
        h = av + acc[:, :c] / (acc[:, c:] + 1e-6)
        xf = h * nfac_ref[...]
        y = _graph_norm_mm(xf, node_segments)
        y = jnp.maximum(gamma_ref[...] * y + beta_ref[...], 0.0)
        if residual:
            y = y + nf_ref[...]
        o_ref[...] = y


# ----------------------------------------------------------------------------
# Kernel 2 (edge path, tiled & "parallel"): GraphNorm from the pre-accumulated
# per-graph sum/sumsq, then ReLU + residual, one edge tile per grid step.
# ----------------------------------------------------------------------------
def _edge_norm_kernel(edge_segments, residual, edge_tile,
                      x_ref, efac_ref, stats_ref, gamma_ref, beta_ref, o_ref):
    t = pl.program_id(0)
    te, ce = x_ref.shape
    g = len(edge_segments)
    x = x_ref[...]
    xf = x * efac_ref[...]

    # Broadcast matrices [TE, G]; per-graph 1/s and 1/(s-1) are folded into the masks.
    erow = jax.lax.broadcasted_iota(jnp.int32, (te, g), 0) + t * edge_tile
    gcol = jax.lax.broadcasted_iota(jnp.int32, (te, g), 1)
    m_mean = jnp.zeros((te, g), jnp.float32)
    m_v1 = jnp.zeros((te, g), jnp.float32)
    m_v2 = jnp.zeros((te, g), jnp.float32)
    for gi, (off, s) in enumerate(edge_segments):
        m = (gcol == gi) & (erow >= off) & (erow < off + s)
        inv1 = (1.0 / (s - 1.0)) if s > 1 else 0.0   # torch std ddof=1; guard s==1
        m_mean = jnp.where(m, 1.0 / s, m_mean)
        m_v1 = jnp.where(m, inv1, m_v1)
        m_v2 = jnp.where(m, inv1 / s, m_v2)

    stats = stats_ref[...]                            # [G, 2C] = sum | sumsq
    ssum, ssq = stats[:, :ce], stats[:, ce:]
    mean_row = jnp.dot(m_mean, ssum, preferred_element_type=jnp.float32)
    var_row = (jnp.dot(m_v1, ssq, preferred_element_type=jnp.float32)
               - jnp.dot(m_v2, ssum * ssum, preferred_element_type=jnp.float32))
    var_row = jnp.maximum(var_row, 0.0)               # guard tiny negative cancellation
    y = (xf - mean_row) / (jnp.sqrt(var_row) + 1e-5)
    y = jnp.maximum(gamma_ref[...] * y + beta_ref[...], 0.0)
    if residual:
        y = y + x
    o_ref[...] = y


# ----------------------------------------------------------------------------
# Wrapper = GatedGCN.forward
# ----------------------------------------------------------------------------
def gated_gcn_forward(params, node_feat, edge_feat, node_factor, edge_factor,
                      src, dst, node_num, edge_num, *, edge_tile=256):
    n, cin = node_feat.shape
    e, ce_dim = edge_feat.shape
    c = params["We"].shape[1]
    residual = cin == c
    g = len(node_num)

    vmem_limit = _vmem_limit_bytes()

    # Edge tile: multiple of 128 (lane-dense index blocks), clamped so the per-step
    # one-hot temporaries (~3*TE*N f32) stay within ~1/4 of the VMEM budget.
    edge_tile = max(128, ((int(edge_tile) + 127) // 128) * 128)
    max_te = (vmem_limit // 4) // max(3 * n * 4, 1)
    max_te = max(128, (max_te // 128) * 128)
    edge_tile = min(edge_tile, max_te)

    # Pad edges to a multiple of the edge tile; padded edges get index -1 so their
    # one-hot rows/columns are all-zero and they scatter nothing.
    e_pad = ((e + edge_tile - 1) // edge_tile) * edge_tile
    pad = e_pad - e
    edge_feat_p = jnp.pad(edge_feat, ((0, pad), (0, 0)))
    edge_factor_p = jnp.pad(edge_factor, ((0, pad), (0, 0)))
    src_col = jnp.pad(src.astype(jnp.int32).reshape(-1, 1), ((0, pad), (0, 0)),
                      constant_values=-1)
    dst_col = jnp.pad(dst.astype(jnp.int32).reshape(-1, 1), ((0, pad), (0, 0)),
                      constant_values=-1)
    dst_row = dst_col.reshape(1, e_pad)               # lane-major copy for the scatter
    num_tiles = e_pad // edge_tile

    node_segments = _segments(node_num)
    edge_segments = _segments(edge_num)

    node_out, edge_stats = pl.pallas_call(
        functools.partial(_node_kernel, node_segments, edge_segments, residual, c,
                          edge_tile),
        out_shape=(jax.ShapeDtypeStruct((n, c), jnp.float32),
                   jax.ShapeDtypeStruct((g, 2 * ce_dim), jnp.float32)),
        grid_spec=pltpu.PrefetchScalarGridSpec(
            num_scalar_prefetch=0,
            grid=(num_tiles,),
            in_specs=[
                _VMEM_FULL,                                            # node features
                _VMEM_FULL,                                            # Wn (Bv|Dv|Ev)
                _VMEM_FULL,                                            # bn
                _VMEM_FULL,                                            # Wa (Av)
                _VMEM_FULL,                                            # ba
                _VMEM_FULL,                                            # We (Ce)
                _VMEM_FULL,                                            # be
                pl.BlockSpec((edge_tile, ce_dim), lambda t: (t, 0)),   # edge feat tile
                pl.BlockSpec((edge_tile, 1), lambda t: (t, 0)),        # edge factor tile
                pl.BlockSpec((edge_tile, 1), lambda t: (t, 0)),        # src (column)
                pl.BlockSpec((edge_tile, 1), lambda t: (t, 0)),        # dst (column)
                pl.BlockSpec((1, edge_tile), lambda t: (0, t)),        # dst (lane-major)
                _VMEM_FULL,                                            # node factor
                _VMEM_FULL,                                            # gamma (node)
                _VMEM_FULL,                                            # beta  (node)
            ],
            out_specs=[pl.BlockSpec((n, c), lambda t: (0, 0)),
                       pl.BlockSpec((g, 2 * ce_dim), lambda t: (0, 0))],
            scratch_shapes=[
                pltpu.VMEM((n, 3 * c), jnp.float32),   # Bv|Dv|Ev projections
                pltpu.VMEM((n, 2 * c), jnp.float32),   # num | den accumulator
            ]),
        compiler_params=pltpu.CompilerParams(
            dimension_semantics=("arbitrary",),
            vmem_limit_bytes=vmem_limit),
    )(node_feat, params["Wn"], params["bn"], params["Wa"], params["ba"],
      params["We"], params["be"], edge_feat_p, edge_factor_p,
      src_col, dst_col, dst_row, node_factor, params["gamma_n"], params["beta_n"])

    edge_out = pl.pallas_call(
        functools.partial(_edge_norm_kernel, edge_segments, residual, edge_tile),
        out_shape=jax.ShapeDtypeStruct((e_pad, ce_dim), jnp.float32),
        grid_spec=pltpu.PrefetchScalarGridSpec(
            num_scalar_prefetch=0,
            grid=(num_tiles,),
            in_specs=[
                pl.BlockSpec((edge_tile, ce_dim), lambda t: (t, 0)),   # edge feat tile
                pl.BlockSpec((edge_tile, 1), lambda t: (t, 0)),        # edge factor tile
                _VMEM_FULL,                                            # [G, 2C] stats
                _VMEM_FULL,                                            # gamma (edge)
                _VMEM_FULL,                                            # beta  (edge)
            ],
            out_specs=pl.BlockSpec((edge_tile, ce_dim), lambda t: (t, 0))),
        compiler_params=pltpu.CompilerParams(
            dimension_semantics=("parallel",),
            vmem_limit_bytes=vmem_limit),
    )(edge_feat_p, edge_factor_p, edge_stats, params["gamma_e"], params["beta_e"])

    return node_out, edge_out[:e]


# ----------------------------------------------------------------------------
# Deterministic parameter init (nn.Linear-style uniform bounds)
# ----------------------------------------------------------------------------
def init_params(key, cin, cout):
    ks = jax.random.split(key, 10)

    def lin(kw, kb):
        bound = 1.0 / np.sqrt(cin)
        w = jax.random.uniform(kw, (cin, cout), jnp.float32, -bound, bound)
        b = jax.random.uniform(kb, (1, cout), jnp.float32, -bound, bound)
        return w, b

    Wa, ba = lin(ks[0], ks[1])              # fc[0] -> Av (kept separate: finalize-only)
    Wb, bb = lin(ks[2], ks[3])              # fc[1] -> Bv
    Wd, bd_ = lin(ks[4], ks[5])             # fc[2] -> Dv
    Wev, bev = lin(ks[6], ks[7])            # fc[3] -> Ev
    We, be = lin(ks[8], ks[9])              # fc[4] -> Ce
    return dict(
        Wn=jnp.concatenate([Wb, Wd, Wev], axis=1),   # Bv|Dv|Ev (Bv|Dv lane-aligned)
        bn=jnp.concatenate([bb, bd_, bev], axis=1),
        Wa=Wa, ba=ba, We=We, be=be,
        gamma_n=jnp.ones((1, cout), jnp.float32), beta_n=jnp.zeros((1, cout), jnp.float32),
        gamma_e=jnp.ones((1, cout), jnp.float32), beta_e=jnp.zeros((1, cout), jnp.float32),
    )


# ----------------------------------------------------------------------------
# Pure-JAX reference (mirrors the PyTorch/DGL semantics) for validation
# ----------------------------------------------------------------------------
def reference(params, node_feat, edge_feat, node_factor, edge_factor,
              src, dst, node_num, edge_num):
    cout = params["We"].shape[1]
    Av = node_feat @ params["Wa"] + params["ba"]
    proj = node_feat @ params["Wn"] + params["bn"]
    Bv, Dv, Ev = jnp.split(proj, 3, axis=1)
    Ce = edge_feat @ params["We"] + params["be"]
    score = jax.nn.sigmoid(Dv[src] + Ce + Ev[dst])
    n = node_feat.shape[0]
    num = jnp.zeros((n, cout), jnp.float32).at[dst].add(score * Bv[src])
    den = jnp.zeros((n, cout), jnp.float32).at[dst].add(score)
    h = Av + num / (den + 1e-6)

    def gnorm(x, sizes, gamma, beta):
        outs, off = [], 0
        for s in sizes:
            grp = x[off:off + s]
            mean = grp.mean(axis=0, keepdims=True)
            std = jnp.std(grp, axis=0, keepdims=True, ddof=1)
            outs.append((grp - mean) / (std + 1e-5))
            off += s
        return gamma * jnp.concatenate(outs, axis=0) + beta

    def do_norm(f1, f0, sizes, gamma, beta):
        y = jax.nn.relu(gnorm(f1, sizes, gamma, beta))
        if node_feat.shape[1] == cout:
            y = y + f0
        return y

    node1 = do_norm(h * node_factor, node_feat, node_num,
                    params["gamma_n"], params["beta_n"])
    edge1 = do_norm(edge_feat * edge_factor, edge_feat, edge_num,
                    params["gamma_e"], params["beta_e"])
    return node1, edge1


if __name__ == "__main__":
    key = jax.random.PRNGKey(0)
    cin = cout = 64
    node_num = [12, 10, 9]
    edge_num = [70, 40, 34]          # 144 edges -> 2 edge tiles at edge_tile=128
    n_nodes, n_edges = sum(node_num), sum(edge_num)

    k_p, k_n, k_e, k_nf, k_ef = jax.random.split(key, 5)
    params = init_params(k_p, cin, cout)
    node_feat = jax.random.normal(k_n, (n_nodes, cin), jnp.float32)
    edge_feat = jax.random.normal(k_e, (n_edges, cin), jnp.float32)
    node_factor = jax.random.uniform(k_nf, (n_nodes, 1), jnp.float32, 0.5, 1.5)
    edge_factor = jax.random.uniform(k_ef, (n_edges, 1), jnp.float32, 0.5, 1.5)

    # Deterministic per-graph edge lists; every node gets >= 1 incoming edge so the
    # scatter-reduce matches DGL's update_all semantics exactly.
    rng = np.random.default_rng(0)
    src_list, dst_list, off = [], [], 0
    for nn_, ne_ in zip(node_num, edge_num):
        srcs = rng.integers(0, nn_, size=ne_) + off
        dsts = np.concatenate(
            [np.arange(nn_), rng.integers(0, nn_, size=ne_ - nn_)]) + off
        src_list.append(srcs)
        dst_list.append(dsts)
        off += nn_
    src = jnp.asarray(np.concatenate(src_list), jnp.int32)
    dst = jnp.asarray(np.concatenate(dst_list), jnp.int32)

    node_out, edge_out = gated_gcn_forward(
        params, node_feat, edge_feat, node_factor, edge_factor,
        src, dst, node_num, edge_num, edge_tile=128)
    jax.block_until_ready((node_out, edge_out))

    ref_n, ref_e = reference(params, node_feat, edge_feat, node_factor,
                             edge_factor, src, dst, node_num, edge_num)
    np.testing.assert_allclose(np.asarray(node_out), np.asarray(ref_n),
                               rtol=2e-4, atol=2e-4)
    np.testing.assert_allclose(np.asarray(edge_out), np.asarray(ref_e),
                               rtol=2e-4, atol=2e-4)
    print("KERNEL_OK")
</pallas_src>

<mosaic_0001>
module attributes {stable_mosaic.version = 11 : i64} {
  func.func @_node_kernel(%arg0: i32, %arg1: memref<31x64xf32, #tpu.memory_space<vmem>>, %arg2: memref<64x192xf32, #tpu.memory_space<vmem>>, %arg3: memref<1x192xf32, #tpu.memory_space<vmem>>, %arg4: memref<64x64xf32, #tpu.memory_space<vmem>>, %arg5: memref<1x64xf32, #tpu.memory_space<vmem>>, %arg6: memref<64x64xf32, #tpu.memory_space<vmem>>, %arg7: memref<1x64xf32, #tpu.memory_space<vmem>>, %arg8: memref<128x64xf32, #tpu.memory_space<vmem>>, %arg9: memref<128x1xf32, #tpu.memory_space<vmem>>, %arg10: memref<128x1xi32, #tpu.memory_space<vmem>>, %arg11: memref<128x1xi32, #tpu.memory_space<vmem>>, %arg12: memref<1x128xi32, #tpu.memory_space<vmem>>, %arg13: memref<31x1xf32, #tpu.memory_space<vmem>>, %arg14: memref<1x64xf32, #tpu.memory_space<vmem>>, %arg15: memref<1x64xf32, #tpu.memory_space<vmem>>, %arg16: memref<31x64xf32, #tpu.memory_space<vmem>>, %arg17: memref<3x128xf32, #tpu.memory_space<vmem>>, %arg18: memref<31x192xf32, #tpu.memory_space<vmem>>, %arg19: memref<31x128xf32, #tpu.memory_space<vmem>>) attributes {dimension_semantics = [#tpu.dimension_semantics<arbitrary>], iteration_bounds = array<i64: 2>, scalar_prefetch = 0 : i64, scratch_operands = 2 : i64, tpu.core_type = #tpu.core_type<tc>, window_params = [{pipeline_mode = #tpu.pipeline_mode<synchronous>, transform_indices = @transform_0, window_bounds = array<i64: 31, 64>}, {pipeline_mode = #tpu.pipeline_mode<synchronous>, transform_indices = @transform_1, window_bounds = array<i64: 64, 192>}, {pipeline_mode = #tpu.pipeline_mode<synchronous>, transform_indices = @transform_2, window_bounds = array<i64: 1, 192>}, {pipeline_mode = #tpu.pipeline_mode<synchronous>, transform_indices = @transform_3, window_bounds = array<i64: 64, 64>}, {pipeline_mode = #tpu.pipeline_mode<synchronous>, transform_indices = @transform_4, window_bounds = array<i64: 1, 64>}, {pipeline_mode = #tpu.pipeline_mode<synchronous>, transform_indices = @transform_5, window_bounds = array<i64: 64, 64>}, {pipeline_mode = #tpu.pipeline_mode<synchronous>, transform_indices = @transform_6, window_bounds = array<i64: 1, 64>}, {transform_indices = @transform_7, window_bounds = array<i64: 128, 64>}, {transform_indices = @transform_8, window_bounds = array<i64: 128, 1>}, {transform_indices = @transform_9, window_bounds = array<i64: 128, 1>}, {transform_indices = @transform_10, window_bounds = array<i64: 128, 1>}, {transform_indices = @transform_11, window_bounds = array<i64: 1, 128>}, {pipeline_mode = #tpu.pipeline_mode<synchronous>, transform_indices = @transform_12, window_bounds = array<i64: 31, 1>}, {pipeline_mode = #tpu.pipeline_mode<synchronous>, transform_indices = @transform_13, window_bounds = array<i64: 1, 64>}, {pipeline_mode = #tpu.pipeline_mode<synchronous>, transform_indices = @transform_14, window_bounds = array<i64: 1, 64>}, {pipeline_mode = #tpu.pipeline_mode<synchronous>, transform_indices = @transform_15, window_bounds = array<i64: 31, 64>}, {pipeline_mode = #tpu.pipeline_mode<synchronous>, transform_indices = @transform_16, window_bounds = array<i64: 3, 128>}]} {
    %c0_i32 = arith.constant 0 : i32
    %0 = arith.cmpi eq, %arg0, %c0_i32 : i32
    %1 = arith.extui %0 : i1 to i32
    %c0_i32_0 = arith.constant 0 : i32
    %2 = arith.cmpi ne, %1, %c0_i32_0 : i32
    scf.if %2 {
      %c0_40 = arith.constant 0 : index
      %c0_41 = arith.constant 0 : index
      %93 = vector.load %arg1[%c0_40, %c0_41] : memref<31x64xf32, #tpu.memory_space<vmem>>, vector<31x64xf32>
      %c0_42 = arith.constant 0 : index
      %c0_43 = arith.constant 0 : index
      %94 = vector.load %arg2[%c0_42, %c0_43] : memref<64x192xf32, #tpu.memory_space<vmem>>, vector<64x192xf32>
      %cst_44 = arith.constant dense<0.000000e+00> : vector<31x192xf32>
      %95 = tpu.matmul %93, %94, %cst_44 {dimension_numbers = #tpu.dot_dimension_numbers<[1], [0], [0], [1], [0, 0, 1, 1], [], []>} : vector<31x64xf32>, vector<64x192xf32>, vector<31x192xf32> -> vector<31x192xf32>
      %c0_45 = arith.constant 0 : index
      %c0_46 = arith.constant 0 : index
      %96 = vector.load %arg3[%c0_45, %c0_46] : memref<1x192xf32, #tpu.memory_space<vmem>>, vector<1x192xf32>
      %97 = vector.broadcast %96 : vector<1x192xf32> to vector<31x192xf32>
      %98 = arith.addf %95, %97 : vector<31x192xf32>
      %c0_47 = arith.constant 0 : index
      %c0_48 = arith.constant 0 : index
      %99 = vector.load %arg18[%c0_47, %c0_48] : memref<31x192xf32, #tpu.memory_space<vmem>>, vector<31x192xf32>
      tpu.vector_store %arg18[%c0_47, %c0_48], %98 {strides = array<i32>} : memref<31x192xf32, #tpu.memory_space<vmem>>, vector<31x192xf32>,
      %cst_49 = arith.constant 0.000000e+00 : f32
      %100 = vector.broadcast %cst_49 : f32 to vector<31x128xf32>
      %c0_50 = arith.constant 0 : index
      %c0_51 = arith.constant 0 : index
      %101 = vector.load %arg19[%c0_50, %c0_51] : memref<31x128xf32, #tpu.memory_space<vmem>>, vector<31x128xf32>
      tpu.vector_store %arg19[%c0_50, %c0_51], %100 {strides = array<i32>} : memref<31x128xf32, #tpu.memory_space<vmem>>, vector<31x128xf32>,
      %cst_52 = arith.constant 0.000000e+00 : f32
      %102 = vector.broadcast %cst_52 : f32 to vector<3x128xf32>
      %c0_53 = arith.constant 0 : index
      %c0_54 = arith.constant 0 : index
      %103 = vector.load %arg17[%c0_53, %c0_54] : memref<3x128xf32, #tpu.memory_space<vmem>>, vector<3x128xf32>
      tpu.vector_store %arg17[%c0_53, %c0_54], %102 {strides = array<i32>} : memref<3x128xf32, #tpu.memory_space<vmem>>, vector<3x128xf32>,
    } else {
    }
    %c0 = arith.constant 0 : index
    %c0_1 = arith.constant 0 : index
    %3 = vector.load %arg8[%c0, %c0_1] : memref<128x64xf32, #tpu.memory_space<vmem>>, vector<128x64xf32>
    %c0_2 = arith.constant 0 : index
    %c0_3 = arith.constant 0 : index
    %4 = vector.load %arg6[%c0_2, %c0_3] : memref<64x64xf32, #tpu.memory_space<vmem>>, vector<64x64xf32>
    %cst = arith.constant dense<0.000000e+00> : vector<128x64xf32>
    %5 = tpu.matmul %3, %4, %cst {dimension_numbers = #tpu.dot_dimension_numbers<[1], [0], [0], [1], [0, 0, 1, 1], [], []>} : vector<128x64xf32>, vector<64x64xf32>, vector<128x64xf32> -> vector<128x64xf32>
    %c0_4 = arith.constant 0 : index
    %c0_5 = arith.constant 0 : index
    %6 = vector.load %arg7[%c0_4, %c0_5] : memref<1x64xf32, #tpu.memory_space<vmem>>, vector<1x64xf32>
    %7 = vector.broadcast %6 : vector<1x64xf32> to vector<128x64xf32>
    %8 = arith.addf %5, %7 : vector<128x64xf32>
    %9 = tpu.iota {dimensions = array<i32: 1>} : vector<128x31xi32>
    %10 = tpu.iota {dimensions = array<i32: 0>} : vector<31x128xi32>
    %c0_6 = arith.constant 0 : index
    %c0_7 = arith.constant 0 : index
    %11 = vector.load %arg10[%c0_6, %c0_7] : memref<128x1xi32, #tpu.memory_space<vmem>>, vector<128x1xi32>
    %12 = vector.broadcast %11 : vector<128x1xi32> to vector<128x31xi32>
    %13 = arith.cmpi eq, %12, %9 : vector<128x31xi32>
    %14 = arith.extui %13 : vector<128x31xi1> to vector<128x31xi32>
    %15 = arith.sitofp %14 : vector<128x31xi32> to vector<128x31xf32>
    %c0_8 = arith.constant 0 : index
    %c0_9 = arith.constant 0 : index
    %16 = vector.load %arg11[%c0_8, %c0_9] : memref<128x1xi32, #tpu.memory_space<vmem>>, vector<128x1xi32>
    %17 = vector.broadcast %16 : vector<128x1xi32> to vector<128x31xi32>
    %18 = arith.cmpi eq, %17, %9 : vector<128x31xi32>
    %19 = arith.extui %18 : vector<128x31xi1> to vector<128x31xi32>
    %20 = arith.sitofp %19 : vector<128x31xi32> to vector<128x31xf32>
    %c0_10 = arith.constant 0 : index
    %c0_11 = arith.constant 0 : index
    %21 = vector.load %arg12[%c0_10, %c0_11] : memref<1x128xi32, #tpu.memory_space<vmem>>, vector<1x128xi32>
    %22 = vector.broadcast %21 : vector<1x128xi32> to vector<31x128xi32>
    %23 = arith.cmpi eq, %22, %10 : vector<31x128xi32>
    %24 = arith.extui %23 : vector<31x128xi1> to vector<31x128xi32>
    %25 = arith.sitofp %24 : vector<31x128xi32> to vector<31x128xf32>
    %c0_12 = arith.constant 0 : index
    %c0_13 = arith.constant 0 : index
    %26 = vector.load %arg18[%c0_12, %c0_13] : memref<31x192xf32, #tpu.memory_space<vmem>>, vector<31x128xf32>
    %cst_14 = arith.constant dense<0.000000e+00> : vector<128x128xf32>
    %27 = tpu.matmul %15, %26, %cst_14 {dimension_numbers = #tpu.dot_dimension_numbers<[1], [0], [0], [1], [0, 0, 1, 1], [], []>} : vector<128x31xf32>, vector<31x128xf32>, vector<128x128xf32> -> vector<128x128xf32>
    %c0_15 = arith.constant 0 : index
    %c128 = arith.constant 128 : index
    %28 = vector.load %arg18[%c0_15, %c128] : memref<31x192xf32, #tpu.memory_space<vmem>>, vector<31x64xf32>
    %cst_16 = arith.constant dense<0.000000e+00> : vector<128x64xf32>
    %29 = tpu.matmul %20, %28, %cst_16 {dimension_numbers = #tpu.dot_dimension_numbers<[1], [0], [0], [1], [0, 0, 1, 1], [], []>} : vector<128x31xf32>, vector<31x64xf32>, vector<128x64xf32> -> vector<128x64xf32>
    %30 = vector.extract_strided_slice %27 {offsets = [0, 0], sizes = [128, 64], strides = [1, 1]} : vector<128x128xf32> to vector<128x64xf32>
    %31 = vector.extract_strided_slice %27 {offsets = [0, 64], sizes = [128, 64], strides = [1, 1]} : vector<128x128xf32> to vector<128x64xf32>
    %32 = arith.addf %31, %8 : vector<128x64xf32>
    %33 = arith.addf %32, %29 : vector<128x64xf32>
    %34 = arith.negf %33 : vector<128x64xf32>
    %35 = math.exp %34 : vector<128x64xf32>
    %cst_17 = arith.constant 1.000000e+00 : f32
    %36 = vector.broadcast %cst_17 : f32 to vector<128x64xf32>
    %37 = arith.addf %36, %35 : vector<128x64xf32>
    %38 = arith.divf %36, %37 : vector<128x64xf32>
    %39 = arith.mulf %38, %30 : vector<128x64xf32>
    %40 = tpu.concatenate %39, %38 in 1 : vector<128x64xf32>, vector<128x64xf32> -> vector<128x128xf32>
    %c0_18 = arith.constant 0 : index
    %c0_19 = arith.constant 0 : index
    %41 = vector.load %arg19[%c0_18, %c0_19] : memref<31x128xf32, #tpu.memory_space<vmem>>, vector<31x128xf32>
    %cst_20 = arith.constant dense<0.000000e+00> : vector<31x128xf32>
    %42 = tpu.matmul %25, %40, %cst_20 {dimension_numbers = #tpu.dot_dimension_numbers<[1], [0], [0], [1], [0, 0, 1, 1], [], []>} : vector<31x128xf32>, vector<128x128xf32>, vector<31x128xf32> -> vector<31x128xf32>
    %43 = arith.addf %41, %42 : vector<31x128xf32>
    %c0_21 = arith.constant 0 : index
    %c0_22 = arith.constant 0 : index
    %44 = vector.load %arg19[%c0_21, %c0_22] : memref<31x128xf32, #tpu.memory_space<vmem>>, vector<31x128xf32>
    tpu.vector_store %arg19[%c0_21, %c0_22], %43 {strides = array<i32>} : memref<31x128xf32, #tpu.memory_space<vmem>>, vector<31x128xf32>,
    %45 = tpu.iota {dimensions = array<i32: 1>} : vector<3x128xi32>
    %c128_i32 = arith.constant 128 : i32
    %46 = arith.muli %arg0, %c128_i32 : i32
    %47 = vector.broadcast %46 : i32 to vector<3x128xi32>
    %48 = arith.addi %45, %47 : vector<3x128xi32>
    %49 = tpu.iota {dimensions = array<i32: 0>} : vector<3x128xi32>
    %cst_23 = arith.constant 0.000000e+00 : f32
    %50 = vector.broadcast %cst_23 : f32 to vector<3x128xf32>
    %c0_i32_24 = arith.constant 0 : i32
    %51 = vector.broadcast %c0_i32_24 : i32 to vector<3x128xi32>
    %52 = arith.cmpi eq, %49, %51 : vector<3x128xi32>
    %c0_i32_25 = arith.constant 0 : i32
    %53 = vector.broadcast %c0_i32_25 : i32 to vector<3x128xi32>
    %54 = arith.cmpi sge, %48, %53 : vector<3x128xi32>
    %55 = arith.andi %52, %54 : vector<3x128xi1>
    %c70_i32 = arith.constant 70 : i32
    %56 = vector.broadcast %c70_i32 : i32 to vector<3x128xi32>
    %57 = arith.cmpi slt, %48, %56 : vector<3x128xi32>
    %58 = arith.andi %55, %57 : vector<3x128xi1>
    %cst_26 = arith.constant 1.000000e+00 : f32
    %59 = vector.broadcast %cst_26 : f32 to vector<3x128xf32>
    %60 = arith.select %58, %59, %50 : vector<3x128xi1>, vector<3x128xf32>
    %c1_i32 = arith.constant 1 : i32
    %61 = vector.broadcast %c1_i32 : i32 to vector<3x128xi32>
    %62 = arith.cmpi eq, %49, %61 : vector<3x128xi32>
    %c70_i32_27 = arith.constant 70 : i32
    %63 = vector.broadcast %c70_i32_27 : i32 to vector<3x128xi32>
    %64 = arith.cmpi sge, %48, %63 : vector<3x128xi32>
    %65 = arith.andi %62, %64 : vector<3x128xi1>
    %c110_i32 = arith.constant 110 : i32
    %66 = vector.broadcast %c110_i32 : i32 to vector<3x128xi32>
    %67 = arith.cmpi slt, %48, %66 : vector<3x128xi32>
    %68 = arith.andi %65, %67 : vector<3x128xi1>
    %cst_28 = arith.constant 1.000000e+00 : f32
    %69 = vector.broadcast %cst_28 : f32 to vector<3x128xf32>
    %70 = arith.select %68, %69, %60 : vector<3x128xi1>, vector<3x128xf32>
    %c2_i32 = arith.constant 2 : i32
    %71 = vector.broadcast %c2_i32 : i32 to vector<3x128xi32>
    %72 = arith.cmpi eq, %49, %71 : vector<3x128xi32>
    %c110_i32_29 = arith.constant 110 : i32
    %73 = vector.broadcast %c110_i32_29 : i32 to vector<3x128xi32>
    %74 = arith.cmpi sge, %48, %73 : vector<3x128xi32>
    %75 = arith.andi %72, %74 : vector<3x128xi1>
    %c144_i32 = arith.constant 144 : i32
    %76 = vector.broadcast %c144_i32 : i32 to vector<3x128xi32>
    %77 = arith.cmpi slt, %48, %76 : vector<3x128xi32>
    %78 = arith.andi %75, %77 : vector<3x128xi1>
    %cst_30 = arith.constant 1.000000e+00 : f32
    %79 = vector.broadcast %cst_30 : f32 to vector<3x128xf32>
    %80 = arith.select %78, %79, %70 : vector<3x128xi1>, vector<3x128xf32>
    %c0_31 = arith.constant 0 : index
    %c0_32 = arith.constant 0 : index
    %81 = vector.load %arg9[%c0_31, %c0_32] : memref<128x1xf32, #tpu.memory_space<vmem>>, vector<128x1xf32>
    %82 = vector.broadcast %81 : vector<128x1xf32> to vector<128x64xf32>
    %83 = arith.mulf %3, %82 : vector<128x64xf32>
    %c0_33 = arith.constant 0 : index
    %c0_34 = arith.constant 0 : index
    %84 = vector.load %arg17[%c0_33, %c0_34] : memref<3x128xf32, #tpu.memory_space<vmem>>, vector<3x128xf32>
    %85 = arith.mulf %83, %83 : vector<128x64xf32>
    %86 = tpu.concatenate %83, %85 in 1 : vector<128x64xf32>, vector<128x64xf32> -> vector<128x128xf32>
    %cst_35 = arith.constant dense<0.000000e+00> : vector<3x128xf32>
    %87 = tpu.matmul %80, %86, %cst_35 {dimension_numbers = #tpu.dot_dimension_numbers<[1], [0], [0], [1], [0, 0, 1, 1], [], []>} : vector<3x128xf32>, vector<128x128xf32>, vector<3x128xf32> -> vector<3x128xf32>
    %88 = arith.addf %84, %87 : vector<3x128xf32>
    %c0_36 = arith.constant 0 : index
    %c0_37 = arith.constant 0 : index
    %89 = vector.load %arg17[%c0_36, %c0_37] : memref<3x128xf32, #tpu.memory_space<vmem>>, vector<3x128xf32>
    tpu.vector_store %arg17[%c0_36, %c0_37], %88 {strides = array<i32>} : memref<3x128xf32, #tpu.memory_space<vmem>>, vector<3x128xf32>,
    %c1_i32_38 = arith.constant 1 : i32
    %90 = arith.cmpi eq, %arg0, %c1_i32_38 : i32
    %91 = arith.extui %90 : i1 to i32
    %c0_i32_39 = arith.constant 0 : i32
    %92 = arith.cmpi ne, %91, %c0_i32_39 : i32
    scf.if %92 {
      %c0_40 = arith.constant 0 : index
      %c0_41 = arith.constant 0 : index
      %93 = vector.load %arg1[%c0_40, %c0_41] : memref<31x64xf32, #tpu.memory_space<vmem>>, vector<31x64xf32>
      %c0_42 = arith.constant 0 : index
      %c0_43 = arith.constant 0 : index
      %94 = vector.load %arg4[%c0_42, %c0_43] : memref<64x64xf32, #tpu.memory_space<vmem>>, vector<64x64xf32>
      %cst_44 = arith.constant dense<0.000000e+00> : vector<31x64xf32>
      %95 = tpu.matmul %93, %94, %cst_44 {dimension_numbers = #tpu.dot_dimension_numbers<[1], [0], [0], [1], [0, 0, 1, 1], [], []>} : vector<31x64xf32>, vector<64x64xf32>, vector<31x64xf32> -> vector<31x64xf32>
      %c0_45 = arith.constant 0 : index
      %c0_46 = arith.constant 0 : index
      %96 = vector.load %arg5[%c0_45, %c0_46] : memref<1x64xf32, #tpu.memory_space<vmem>>, vector<1x64xf32>
      %97 = vector.broadcast %96 : vector<1x64xf32> to vector<31x64xf32>
      %98 = arith.addf %95, %97 : vector<31x64xf32>
      %c0_47 = arith.constant 0 : index
      %c0_48 = arith.constant 0 : index
      %99 = vector.load %arg19[%c0_47, %c0_48] : memref<31x128xf32, #tpu.memory_space<vmem>>, vector<31x128xf32>
      %100 = vector.extract_strided_slice %99 {offsets = [0, 0], sizes = [31, 64], strides = [1, 1]} : vector<31x128xf32> to vector<31x64xf32>
      %101 = vector.extract_strided_slice %99 {offsets = [0, 64], sizes = [31, 64], strides = [1, 1]} : vector<31x128xf32> to vector<31x64xf32>
      %cst_49 = arith.constant 9.99999997E-7 : f32
      %102 = vector.broadcast %cst_49 : f32 to vector<31x64xf32>
      %103 = arith.addf %101, %102 : vector<31x64xf32>
      %104 = arith.divf %100, %103 : vector<31x64xf32>
      %105 = arith.addf %98, %104 : vector<31x64xf32>
      %c0_50 = arith.constant 0 : index
      %c0_51 = arith.constant 0 : index
      %106 = vector.load %arg13[%c0_50, %c0_51] : memref<31x1xf32, #tpu.memory_space<vmem>>, vector<31x1xf32>
      %107 = vector.broadcast %106 : vector<31x1xf32> to vector<31x64xf32>
      %108 = arith.mulf %105, %107 : vector<31x64xf32>
      %109 = tpu.iota {dimensions = array<i32: 1>} : vector<3x31xi32>
      %110 = tpu.iota {dimensions = array<i32: 0>} : vector<3x31xi32>
      %111 = tpu.iota {dimensions = array<i32: 0>} : vector<31x3xi32>
      %112 = tpu.iota {dimensions = array<i32: 1>} : vector<31x3xi32>
      %cst_52 = arith.constant 0.000000e+00 : f32
      %113 = vector.broadcast %cst_52 : f32 to vector<3x31xf32>
      %cst_53 = arith.constant 0.000000e+00 : f32
      %114 = vector.broadcast %cst_53 : f32 to vector<3x31xf32>
      %cst_54 = arith.constant 0.000000e+00 : f32
      %115 = vector.broadcast %cst_54 : f32 to vector<31x3xf32>
      %c0_i32_55 = arith.constant 0 : i32
      %116 = vector.broadcast %c0_i32_55 : i32 to vector<3x31xi32>
      %117 = arith.cmpi eq, %110, %116 : vector<3x31xi32>
      %c0_i32_56 = arith.constant 0 : i32
      %118 = vector.broadcast %c0_i32_56 : i32 to vector<3x31xi32>
      %119 = arith.cmpi sge, %109, %118 : vector<3x31xi32>
      %120 = arith.andi %117, %119 : vector<3x31xi1>
      %c12_i32 = arith.constant 12 : i32
      %121 = vector.broadcast %c12_i32 : i32 to vector<3x31xi32>
      %122 = arith.cmpi slt, %109, %121 : vector<3x31xi32>
      %123 = arith.andi %120, %122 : vector<3x31xi1>
      %c0_i32_57 = arith.constant 0 : i32
      %124 = vector.broadcast %c0_i32_57 : i32 to vector<31x3xi32>
      %125 = arith.cmpi eq, %112, %124 : vector<31x3xi32>
      %c0_i32_58 = arith.constant 0 : i32
      %126 = vector.broadcast %c0_i32_58 : i32 to vector<31x3xi32>
      %127 = arith.cmpi sge, %111, %126 : vector<31x3xi32>
      %128 = arith.andi %125, %127 : vector<31x3xi1>
      %c12_i32_59 = arith.constant 12 : i32
      %129 = vector.broadcast %c12_i32_59 : i32 to vector<31x3xi32>
      %130 = arith.cmpi slt, %111, %129 : vector<31x3xi32>
      %131 = arith.andi %128, %130 : vector<31x3xi1>
      %cst_60 = arith.constant 0.0833333358 : f32
      %132 = vector.broadcast %cst_60 : f32 to vector<3x31xf32>
      %133 = arith.select %123, %132, %113 : vector<3x31xi1>, vector<3x31xf32>
      %cst_61 = arith.constant 0.0909090936 : f32
      %134 = vector.broadcast %cst_61 : f32 to vector<3x31xf32>
      %135 = arith.select %123, %134, %114 : vector<3x31xi1>, vector<3x31xf32>
      %cst_62 = arith.constant 1.000000e+00 : f32
      %136 = vector.broadcast %cst_62 : f32 to vector<31x3xf32>
      %137 = arith.select %131, %136, %115 : vector<31x3xi1>, vector<31x3xf32>
      %c1_i32_63 = arith.constant 1 : i32
      %138 = vector.broadcast %c1_i32_63 : i32 to vector<3x31xi32>
      %139 = arith.cmpi eq, %110, %138 : vector<3x31xi32>
      %c12_i32_64 = arith.constant 12 : i32
      %140 = vector.broadcast %c12_i32_64 : i32 to vector<3x31xi32>
      %141 = arith.cmpi sge, %109, %140 : vector<3x31xi32>
      %142 = arith.andi %139, %141 : vector<3x31xi1>
      %c22_i32 = arith.constant 22 : i32
      %143 = vector.broadcast %c22_i32 : i32 to vector<3x31xi32>
      %144 = arith.cmpi slt, %109, %143 : vector<3x31xi32>
      %145 = arith.andi %142, %144 : vector<3x31xi1>
      %c1_i32_65 = arith.constant 1 : i32
      %146 = vector.broadcast %c1_i32_65 : i32 to vector<31x3xi32>
      %147 = arith.cmpi eq, %112, %146 : vector<31x3xi32>
      %c12_i32_66 = arith.constant 12 : i32
      %148 = vector.broadcast %c12_i32_66 : i32 to vector<31x3xi32>
      %149 = arith.cmpi sge, %111, %148 : vector<31x3xi32>
      %150 = arith.andi %147, %149 : vector<31x3xi1>
      %c22_i32_67 = arith.constant 22 : i32
      %151 = vector.broadcast %c22_i32_67 : i32 to vector<31x3xi32>
      %152 = arith.cmpi slt, %111, %151 : vector<31x3xi32>
      %153 = arith.andi %150, %152 : vector<31x3xi1>
      %cst_68 = arith.constant 1.000000e-01 : f32
      %154 = vector.broadcast %cst_68 : f32 to vector<3x31xf32>
      %155 = arith.select %145, %154, %133 : vector<3x31xi1>, vector<3x31xf32>
      %cst_69 = arith.constant 0.111111112 : f32
      %156 = vector.broadcast %cst_69 : f32 to vector<3x31xf32>
      %157 = arith.select %145, %156, %135 : vector<3x31xi1>, vector<3x31xf32>
      %cst_70 = arith.constant 1.000000e+00 : f32
      %158 = vector.broadcast %cst_70 : f32 to vector<31x3xf32>
      %159 = arith.select %153, %158, %137 : vector<31x3xi1>, vector<31x3xf32>
      %c2_i32_71 = arith.constant 2 : i32
      %160 = vector.broadcast %c2_i32_71 : i32 to vector<3x31xi32>
      %161 = arith.cmpi eq, %110, %160 : vector<3x31xi32>
      %c22_i32_72 = arith.constant 22 : i32
      %162 = vector.broadcast %c22_i32_72 : i32 to vector<3x31xi32>
      %163 = arith.cmpi sge, %109, %162 : vector<3x31xi32>
      %164 = arith.andi %161, %163 : vector<3x31xi1>
      %c31_i32 = arith.constant 31 : i32
      %165 = vector.broadcast %c31_i32 : i32 to vector<3x31xi32>
      %166 = arith.cmpi slt, %109, %165 : vector<3x31xi32>
      %167 = arith.andi %164, %166 : vector<3x31xi1>
      %c2_i32_73 = arith.constant 2 : i32
      %168 = vector.broadcast %c2_i32_73 : i32 to vector<31x3xi32>
      %169 = arith.cmpi eq, %112, %168 : vector<31x3xi32>
      %c22_i32_74 = arith.constant 22 : i32
      %170 = vector.broadcast %c22_i32_74 : i32 to vector<31x3xi32>
      %171 = arith.cmpi sge, %111, %170 : vector<31x3xi32>
      %172 = arith.andi %169, %171 : vector<31x3xi1>
      %c31_i32_75 = arith.constant 31 : i32
      %173 = vector.broadcast %c31_i32_75 : i32 to vector<31x3xi32>
      %174 = arith.cmpi slt, %111, %173 : vector<31x3xi32>
      %175 = arith.andi %172, %174 : vector<31x3xi1>
      %cst_76 = arith.constant 0.111111112 : f32
      %176 = vector.broadcast %cst_76 : f32 to vector<3x31xf32>
      %177 = arith.select %167, %176, %155 : vector<3x31xi1>, vector<3x31xf32>
      %cst_77 = arith.constant 1.250000e-01 : f32
      %178 = vector.broadcast %cst_77 : f32 to vector<3x31xf32>
      %179 = arith.select %167, %178, %157 : vector<3x31xi1>, vector<3x31xf32>
      %cst_78 = arith.constant 1.000000e+00 : f32
      %180 = vector.broadcast %cst_78 : f32 to vector<31x3xf32>
      %181 = arith.select %175, %180, %159 : vector<31x3xi1>, vector<31x3xf32>
      %cst_79 = arith.constant dense<0.000000e+00> : vector<3x64xf32>
      %182 = tpu.matmul %177, %108, %cst_79 {dimension_numbers = #tpu.dot_dimension_numbers<[1], [0], [0], [1], [0, 0, 1, 1], [], []>} : vector<3x31xf32>, vector<31x64xf32>, vector<3x64xf32> -> vector<3x64xf32>
      %cst_80 = arith.constant dense<0.000000e+00> : vector<31x64xf32>
      %183 = tpu.matmul %181, %182, %cst_80 {dimension_numbers = #tpu.dot_dimension_numbers<[1], [0], [0], [1], [0, 0, 1, 1], [], []>} : vector<31x3xf32>, vector<3x64xf32>, vector<31x64xf32> -> vector<31x64xf32>
      %184 = arith.subf %108, %183 : vector<31x64xf32>
      %185 = arith.mulf %184, %184 : vector<31x64xf32>
      %cst_81 = arith.constant dense<0.000000e+00> : vector<3x64xf32>
      %186 = tpu.matmul %179, %185, %cst_81 {dimension_numbers = #tpu.dot_dimension_numbers<[1], [0], [0], [1], [0, 0, 1, 1], [], []>} : vector<3x31xf32>, vector<31x64xf32>, vector<3x64xf32> -> vector<3x64xf32>
      %187 = math.sqrt %186 : vector<3x64xf32>
      %cst_82 = arith.constant 9.99999974E-6 : f32
      %188 = vector.broadcast %cst_82 : f32 to vector<3x64xf32>
      %189 = arith.addf %187, %188 : vector<3x64xf32>
      %cst_83 = arith.constant 1.000000e+00 : f32
      %190 = vector.broadcast %cst_83 : f32 to vector<3x64xf32>
      %191 = arith.divf %190, %189 : vector<3x64xf32>
      %cst_84 = arith.constant dense<0.000000e+00> : vector<31x64xf32>
      %192 = tpu.matmul %181, %191, %cst_84 {dimension_numbers = #tpu.dot_dimension_numbers<[1], [0], [0], [1], [0, 0, 1, 1], [], []>} : vector<31x3xf32>, vector<3x64xf32>, vector<31x64xf32> -> vector<31x64xf32>
      %193 = arith.mulf %184, %192 : vector<31x64xf32>
      %c0_85 = arith.constant 0 : index
      %c0_86 = arith.constant 0 : index
      %194 = vector.load %arg14[%c0_85, %c0_86] : memref<1x64xf32, #tpu.memory_space<vmem>>, vector<1x64xf32>
      %195 = vector.broadcast %194 : vector<1x64xf32> to vector<31x64xf32>
      %196 = arith.mulf %195, %193 : vector<31x64xf32>
      %c0_87 = arith.constant 0 : index
      %c0_88 = arith.constant 0 : index
      %197 = vector.load %arg15[%c0_87, %c0_88] : memref<1x64xf32, #tpu.memory_space<vmem>>, vector<1x64xf32>
      %198 = vector.broadcast %197 : vector<1x64xf32> to vector<31x64xf32>
      %199 = arith.addf %196, %198 : vector<31x64xf32>
      %cst_89 = arith.constant 0.000000e+00 : f32
      %200 = vector.broadcast %cst_89 : f32 to vector<31x64xf32>
      %201 = arith.maximumf %199, %200 : vector<31x64xf32>
      %c0_90 = arith.constant 0 : index
      %c0_91 = arith.constant 0 : index
      %202 = vector.load %arg1[%c0_90, %c0_91] : memref<31x64xf32, #tpu.memory_space<vmem>>, vector<31x64xf32>
      %203 = arith.addf %201, %202 : vector<31x64xf32>
      %c0_92 = arith.constant 0 : index
      %c0_93 = arith.constant 0 : index
      %204 = vector.load %arg16[%c0_92, %c0_93] : memref<31x64xf32, #tpu.memory_space<vmem>>, vector<31x64xf32>
      tpu.vector_store %arg16[%c0_92, %c0_93], %203 {strides = array<i32>} : memref<31x64xf32, #tpu.memory_space<vmem>>, vector<31x64xf32>,
    } else {
    }
    return
  }
  func.func @transform_0(%arg0: i32) -> (i32, i32) {
    %c0_i32 = arith.constant 0 : i32
    %c0_i32_0 = arith.constant 0 : i32
    %c0_i32_1 = arith.constant 0 : i32
    return %c0_i32, %c0_i32_0 : i32, i32
  }
  func.func @transform_1(%arg0: i32) -> (i32, i32) {
    %c0_i32 = arith.constant 0 : i32
    %c0_i32_0 = arith.constant 0 : i32
    %c0_i32_1 = arith.constant 0 : i32
    return %c0_i32, %c0_i32_0 : i32, i32
  }
  func.func @transform_2(%arg0: i32) -> (i32, i32) {
    %c0_i32 = arith.constant 0 : i32
    %c0_i32_0 = arith.constant 0 : i32
    %c0_i32_1 = arith.constant 0 : i32
    return %c0_i32, %c0_i32_0 : i32, i32
  }
  func.func @transform_3(%arg0: i32) -> (i32, i32) {
    %c0_i32 = arith.constant 0 : i32
    %c0_i32_0 = arith.constant 0 : i32
    %c0_i32_1 = arith.constant 0 : i32
    return %c0_i32, %c0_i32_0 : i32, i32
  }
  func.func @transform_4(%arg0: i32) -> (i32, i32) {
    %c0_i32 = arith.constant 0 : i32
    %c0_i32_0 = arith.constant 0 : i32
    %c0_i32_1 = arith.constant 0 : i32
    return %c0_i32, %c0_i32_0 : i32, i32
  }
  func.func @transform_5(%arg0: i32) -> (i32, i32) {
    %c0_i32 = arith.constant 0 : i32
    %c0_i32_0 = arith.constant 0 : i32
    %c0_i32_1 = arith.constant 0 : i32
    return %c0_i32, %c0_i32_0 : i32, i32
  }
  func.func @transform_6(%arg0: i32) -> (i32, i32) {
    %c0_i32 = arith.constant 0 : i32
    %c0_i32_0 = arith.constant 0 : i32
    %c0_i32_1 = arith.constant 0 : i32
    return %c0_i32, %c0_i32_0 : i32, i32
  }
  func.func @transform_7(%arg0: i32) -> (i32, i32) {
    %c0_i32 = arith.constant 0 : i32
    %c0_i32_0 = arith.constant 0 : i32
    return %arg0, %c0_i32 : i32, i32
  }
  func.func @transform_8(%arg0: i32) -> (i32, i32) {
    %c0_i32 = arith.constant 0 : i32
    %c0_i32_0 = arith.constant 0 : i32
    return %arg0, %c0_i32 : i32, i32
  }
  func.func @transform_9(%arg0: i32) -> (i32, i32) {
    %c0_i32 = arith.constant 0 : i32
    %c0_i32_0 = arith.constant 0 : i32
    return %arg0, %c0_i32 : i32, i32
  }
  func.func @transform_10(%arg0: i32) -> (i32, i32) {
    %c0_i32 = arith.constant 0 : i32
    %c0_i32_0 = arith.constant 0 : i32
    return %arg0, %c0_i32 : i32, i32
  }
  func.func @transform_11(%arg0: i32) -> (i32, i32) {
    %c0_i32 = arith.constant 0 : i32
    %c0_i32_0 = arith.constant 0 : i32
    return %c0_i32, %arg0 : i32, i32
  }
  func.func @transform_12(%arg0: i32) -> (i32, i32) {
    %c0_i32 = arith.constant 0 : i32
    %c0_i32_0 = arith.constant 0 : i32
    %c0_i32_1 = arith.constant 0 : i32
    return %c0_i32, %c0_i32_0 : i32, i32
  }
  func.func @transform_13(%arg0: i32) -> (i32, i32) {
    %c0_i32 = arith.constant 0 : i32
    %c0_i32_0 = arith.constant 0 : i32
    %c0_i32_1 = arith.constant 0 : i32
    return %c0_i32, %c0_i32_0 : i32, i32
  }
  func.func @transform_14(%arg0: i32) -> (i32, i32) {
    %c0_i32 = arith.constant 0 : i32
    %c0_i32_0 = arith.constant 0 : i32
    %c0_i32_1 = arith.constant 0 : i32
    return %c0_i32, %c0_i32_0 : i32, i32
  }
  func.func @transform_15(%arg0: i32) -> (i32, i32) {
    %c0_i32 = arith.constant 0 : i32
    %c0_i32_0 = arith.constant 0 : i32
    %c0_i32_1 = arith.constant 0 : i32
    return %c0_i32, %c0_i32_0 : i32, i32
  }
  func.func @transform_16(%arg0: i32) -> (i32, i32) {
    %c0_i32 = arith.constant 0 : i32
    %c0_i32_0 = arith.constant 0 : i32
    %c0_i32_1 = arith.constant 0 : i32
    return %c0_i32, %c0_i32_0 : i32, i32
  }
}

</mosaic_0001>

<llo_original>
// kernel: tpu_custom_call.1
$region0: #{tpu_custom_call.1}
  #allocation0 [shape = 'u32[]', space=smem, size = 0x4, offset = 0x4, fixed_abs, tag = 'smem constant byte address 0x4 - core index']
  #allocation1 [shape = 'u32[144,128]{1,0:T(1,128)}', space=vmem, size = 0x12000, scoped, tag = 'internal scratch']
  #allocation2 [shape = 'f32[31,192]{1,0:T(8,128)}', space=vmem, size = 0x8000, scoped, tag = 'scratch operand']
  #allocation3 [shape = 'f32[31,128]{1,0:T(8,128)}', space=vmem, size = 0x4000, scoped, tag = 'scratch operand']
  %s0 = inlined_call_operand.vmem [shape: f32[31,64], index: 0, kind: input, shape index: {}]
  %s1 = inlined_call_operand.vmem [shape: f32[64,192], index: 1, kind: input, shape index: {}]
  %s2 = inlined_call_operand.vmem [shape: f32[1,192], index: 2, kind: input, shape index: {}]
  %s3 = inlined_call_operand.vmem [shape: f32[64,64], index: 3, kind: input, shape index: {}]
  %s4 = inlined_call_operand.vmem [shape: f32[1,64], index: 4, kind: input, shape index: {}]
  %s5 = inlined_call_operand.vmem [shape: f32[64,64], index: 5, kind: input, shape index: {}]
  %s6 = inlined_call_operand.vmem [shape: f32[1,64], index: 6, kind: input, shape index: {}]
  %s7 = inlined_call_operand.vmem [shape: f32[256,64], index: 7, kind: input, shape index: {}]
  %s8 = inlined_call_operand.vmem [shape: f32[256,1], index: 8, kind: input, shape index: {}]
  %s9 = inlined_call_operand.vmem [shape: s32[256,1], index: 9, kind: input, shape index: {}]
  %s10 = inlined_call_operand.vmem [shape: s32[256,1], index: 10, kind: input, shape index: {}]
  %s11 = inlined_call_operand.vmem [shape: s32[1,256], index: 11, kind: input, shape index: {}]
  %s12 = inlined_call_operand.vmem [shape: f32[31,1], index: 12, kind: input, shape index: {}]
  %s13 = inlined_call_operand.vmem [shape: f32[1,64], index: 13, kind: input, shape index: {}]
  %s14 = inlined_call_operand.vmem [shape: f32[1,64], index: 14, kind: input, shape index: {}]
  %s15 = inlined_call_operand.hbm [shape: f32[31,64], index: 15, kind: output, shape index: {0}]
  %s16 = inlined_call_operand.hbm [shape: f32[3,128], index: 16, kind: output, shape index: {1}]
  %17 = xla_tuple %s15, %s16
  %s18 = sld [smem:[#allocation0]]
  $region109: #{tpu_custom_call.1} parent=0
    _
  %s20 = ssub.s32 1, %s18
  %s21 = scalar_select 0, %s20, %s18
  $region1: #{tpu_custom_call.1} parent=0
    #allocation4 [shape = 'u8[16384]{0}', space=vmem, size = 0x4000, scoped, tag = 'output window, operand 0, single buffered']
    #allocation5 [shape = 's32[2]{0}', space=sflag, size = 0x8, scoped, tag = 'scoped memory for tpu_custom_call.1']
    #allocation6 [shape = 'u8[2048]{0}', space=vmem, size = 0x800, scoped, tag = 'output window, operand 1, single buffered']
    #allocation7 [shape = 's32[1]{0}', space=sflag, size = 0x4, scoped, tag = 'scoped memory for tpu_custom_call.1']
    %22 = vsyncpa [#allocation5], 0
    %23 = vsyncpa [#allocation7], 0
    loop: start=0, step=1, limit=4
    $region2: #{tpu_custom_call.1} parent=1 // loop_pre_header
      _
    $region3: #{tpu_custom_call.1} parent=1 // loop_header
      %s25 = sphi 0, %s29
      %p26 = scmp.ge.s32.totalorder %s25, 4
      %s33 = sphi 0, %s33
      %s35 = sphi 0, %s33
      %s36 = sphi 0, %s35
      %s50 = sphi 0, %s36
      %s54 = sphi 0, %s54
      %s56 = sphi 0, %s54
      %s57 = sphi 0, %s56
      %s71 = sphi 0, %s57
      %s75 = sphi 0, %s75
      %s77 = sphi 0, %s75
      %s78 = sphi 0, %s77
      %s92 = sphi 0, %s78
      %s96 = sphi 0, %s96
      %s98 = sphi 0, %s96
      %s99 = sphi 0, %s98
      %s113 = sphi 0, %s99
      %s117 = sphi 0, %s117
      %s119 = sphi 0, %s117
      %s120 = sphi 0, %s119
      %s134 = sphi 0, %s120
      %s138 = sphi 0, %s138
      %s140 = sphi 0, %s138
      %s141 = sphi 0, %s140
      %s155 = sphi 0, %s141
      %s159 = sphi 0, %s159
      %s161 = sphi 0, %s159
      %s162 = sphi 0, %s161
      %s176 = sphi 0, %s162
      %s182 = sphi 0, %s184
      %s185 = sphi 0, %s182
      %s186 = sphi 0, %s185
      %s202 = sphi 0, %s186
      %s208 = sphi 0, %s210
      %s211 = sphi 0, %s208
      %s212 = sphi 0, %s211
      %s228 = sphi 0, %s212
      %s234 = sphi 0, %s236
      %s237 = sphi 0, %s234
      %s238 = sphi 0, %s237
      %s254 = sphi 0, %s238
      %s260 = sphi 0, %s262
      %s263 = sphi 0, %s260
      %s264 = sphi 0, %s263
      %s280 = sphi 0, %s264
      %s286 = sphi 0, %s288
      %s289 = sphi 0, %s286
      %s290 = sphi 0, %s289
      %s306 = sphi 0, %s290
      %s310 = sphi 0, %s310
      %s312 = sphi 0, %s310
      %s313 = sphi 0, %s312
      %s327 = sphi 0, %s313
      %s331 = sphi 0, %s331
      %s333 = sphi 0, %s331
      %s334 = sphi 0, %s333
      %s348 = sphi 0, %s334
      %s352 = sphi 0, %s352
      %s354 = sphi 0, %s352
      %s355 = sphi 0, %s354
      %s369 = sphi 0, %s355
      %s373 = sphi 0, %s373
      %s375 = sphi 0, %s373
      %s376 = sphi 0, %s375
      %s390 = sphi 0, %s376
      %s394 = sphi 0, %s394
      %s396 = sphi 0, %s394
      %s397 = sphi 0, %s396
      %s411 = sphi 0, %s397
    $region4: #{tpu_custom_call.1} parent=1 // loop_header_branch
      %28 = sbr.rel (%p26) target = $region8
    $region5: #{tpu_custom_call.1} parent=1 // loop_body
      %s30 = ssub.s32 %s25, 1
      %s31 = ssub.s32 %s25, 2
      %s32 = sadd.s32 %s25, 1
      %s34 = sadd.s32 %s33, 1
      %p37 = scmp.eq.s32.totalorder %s25, 1
      %p38 = scmp.ne.s32.totalorder %s33, %s35
      %p39 = scmp.eq.s32.totalorder %s25, 0
      %p40 = por %p38, %p39
      %p41 = scmp.ne.s32.totalorder %s33, %s35
      %p42 = scmp.eq.s32.totalorder %s30, 1
      %p43 = por %p41, %p42
      %p44 = scmp.ne.s32.totalorder %s35, %s36
      %p45 = scmp.eq.s32.totalorder %s30, 0
      %p46 = por %p44, %p45
      %p47 = scmp.ne.s32.totalorder %s35, %s36
      %p48 = scmp.eq.s32.totalorder %s31, 1
      %p49 = por %p47, %p48
      %p51 = scmp.ne.s32.totalorder %s36, %s50
      %p52 = scmp.eq.s32.totalorder %s31, 0
      %p53 = por %p51, %p52
      %s55 = sadd.s32 %s54, 1
      %p58 = scmp.eq.s32.totalorder %s25, 1
      %p59 = scmp.ne.s32.totalorder %s54, %s56
      %p60 = scmp.eq.s32.totalorder %s25, 0
      %p61 = por %p59, %p60
      %p62 = scmp.ne.s32.totalorder %s54, %s56
      %p63 = scmp.eq.s32.totalorder %s30, 1
      %p64 = por %p62, %p63
      %p65 = scmp.ne.s32.totalorder %s56, %s57
      %p66 = scmp.eq.s32.totalorder %s30, 0
      %p67 = por %p65, %p66
      %p68 = scmp.ne.s32.totalorder %s56, %s57
      %p69 = scmp.eq.s32.totalorder %s31, 1
      %p70 = por %p68, %p69
      %p72 = scmp.ne.s32.totalorder %s57, %s71
      %p73 = scmp.eq.s32.totalorder %s31, 0
      %p74 = por %p72, %p73
      %s76 = sadd.s32 %s75, 1
      %p79 = scmp.eq.s32.totalorder %s25, 1
      %p80 = scmp.ne.s32.totalorder %s75, %s77
      %p81 = scmp.eq.s32.totalorder %s25, 0
      %p82 = por %p80, %p81
      %p83 = scmp.ne.s32.totalorder %s75, %s77
      %p84 = scmp.eq.s32.totalorder %s30, 1
      %p85 = por %p83, %p84
      %p86 = scmp.ne.s32.totalorder %s77, %s78
      %p87 = scmp.eq.s32.totalorder %s30, 0
      %p88 = por %p86, %p87
      %p89 = scmp.ne.s32.totalorder %s77, %s78
      %p90 = scmp.eq.s32.totalorder %s31, 1
      %p91 = por %p89, %p90
      %p93 = scmp.ne.s32.totalorder %s78, %s92
      %p94 = scmp.eq.s32.totalorder %s31, 0
      %p95 = por %p93, %p94
      %s97 = sadd.s32 %s96, 1
      %p100 = scmp.eq.s32.totalorder %s25, 1
      %p101 = scmp.ne.s32.totalorder %s96, %s98
      %p102 = scmp.eq.s32.totalorder %s25, 0
      %p103 = por %p101, %p102
      %p104 = scmp.ne.s32.totalorder %s96, %s98
      %p105 = scmp.eq.s32.totalorder %s30, 1
      %p106 = por %p104, %p105
      %p107 = scmp.ne.s32.totalorder %s98, %s99
      %p108 = scmp.eq.s32.totalorder %s30, 0
      %p109 = por %p107, %p108
      %p110 = scmp.ne.s32.totalorder %s98, %s99
      %p111 = scmp.eq.s32.totalorder %s31, 1
      %p112 = por %p110, %p111
      %p114 = scmp.ne.s32.totalorder %s99, %s113
      %p115 = scmp.eq.s32.totalorder %s31, 0
      %p116 = por %p114, %p115
      %s118 = sadd.s32 %s117, 1
      %p121 = scmp.eq.s32.totalorder %s25, 1
      %p122 = scmp.ne.s32.totalorder %s117, %s119
      %p123 = scmp.eq.s32.totalorder %s25, 0
      %p124 = por %p122, %p123
      %p125 = scmp.ne.s32.totalorder %s117, %s119
      %p126 = scmp.eq.s32.totalorder %s30, 1
      %p127 = por %p125, %p126
      %p128 = scmp.ne.s32.totalorder %s119, %s120
      %p129 = scmp.eq.s32.totalorder %s30, 0
      %p130 = por %p128, %p129
      %p131 = scmp.ne.s32.totalorder %s119, %s120
      %p132 = scmp.eq.s32.totalorder %s31, 1
      %p133 = por %p131, %p132
      %p135 = scmp.ne.s32.totalorder %s120, %s134
      %p136 = scmp.eq.s32.totalorder %s31, 0
      %p137 = por %p135, %p136
      %s139 = sadd.s32 %s138, 1
      %p142 = scmp.eq.s32.totalorder %s25, 1
      %p143 = scmp.ne.s32.totalorder %s138, %s140
      %p144 = scmp.eq.s32.totalorder %s25, 0
      %p145 = por %p143, %p144
      %p146 = scmp.ne.s32.totalorder %s138, %s140
      %p147 = scmp.eq.s32.totalorder %s30, 1
      %p148 = por %p146, %p147
      %p149 = scmp.ne.s32.totalorder %s140, %s141
      %p150 = scmp.eq.s32.totalorder %s30, 0
      %p151 = por %p149, %p150
      %p152 = scmp.ne.s32.totalorder %s140, %s141
      %p153 = scmp.eq.s32.totalorder %s31, 1
      %p154 = por %p152, %p153
      %p156 = scmp.ne.s32.totalorder %s141, %s155
      %p157 = scmp.eq.s32.totalorder %s31, 0
      %p158 = por %p156, %p157
      %s160 = sadd.s32 %s159, 1
      %p163 = scmp.eq.s32.totalorder %s25, 1
      %p164 = scmp.ne.s32.totalorder %s159, %s161
      %p165 = scmp.eq.s32.totalorder %s25, 0
      %p166 = por %p164, %p165
      %p167 = scmp.ne.s32.totalorder %s159, %s161
      %p168 = scmp.eq.s32.totalorder %s30, 1
      %p169 = por %p167, %p168
      %p170 = scmp.ne.s32.totalorder %s161, %s162
      %p171 = scmp.eq.s32.totalorder %s30, 0
      %p172 = por %p170, %p171
      %p173 = scmp.ne.s32.totalorder %s161, %s162
      %p174 = scmp.eq.s32.totalorder %s31, 1
      %p175 = por %p173, %p174
      %p177 = scmp.ne.s32.totalorder %s162, %s176
      %p178 = scmp.eq.s32.totalorder %s31, 0
      %p179 = por %p177, %p178
      %s180 = ssub.s32 %s25, %s32
      %p181 = scmp.eq.s32.totalorder %s180, 0
      %s183 = sadd.s32 %s182, 1
      %s184 = scalar_select %p181, %s182, %s183
      %p187 = pneg %p181
      %p188 = scmp.eq.s32.totalorder %s25, 1
      %p189 = por %p187, %p188
      %p190 = scmp.ne.s32.totalorder %s182, %s185
      %p191 = scmp.eq.s32.totalorder %s25, 0
      %p192 = por %p190, %p191
      %p193 = scmp.ne.s32.totalorder %s182, %s185
      %p194 = scmp.eq.s32.totalorder %s30, 1
      %p195 = por %p193, %p194
      %p196 = scmp.ne.s32.totalorder %s185, %s186
      %p197 = scmp.eq.s32.totalorder %s30, 0
      %p198 = por %p196, %p197
      %p199 = scmp.ne.s32.totalorder %s185, %s186
      %p200 = scmp.eq.s32.totalorder %s31, 1
      %p201 = por %p199, %p200
      %p203 = scmp.ne.s32.totalorder %s186, %s202
      %p204 = scmp.eq.s32.totalorder %s31, 0
      %p205 = por %p203, %p204
      %s206 = ssub.s32 %s25, %s32
      %p207 = scmp.eq.s32.totalorder %s206, 0
      %s209 = sadd.s32 %s208, 1
      %s210 = scalar_select %p207, %s208, %s209
      %p213 = pneg %p207
      %p214 = scmp.eq.s32.totalorder %s25, 1
      %p215 = por %p213, %p214
      %p216 = scmp.ne.s32.totalorder %s208, %s211
      %p217 = scmp.eq.s32.totalorder %s25, 0
      %p218 = por %p216, %p217
      %p219 = scmp.ne.s32.totalorder %s208, %s211
      %p220 = scmp.eq.s32.totalorder %s30, 1
      %p221 = por %p219, %p220
      %p222 = scmp.ne.s32.totalorder %s211, %s212
      %p223 = scmp.eq.s32.totalorder %s30, 0
      %p224 = por %p222, %p223
      %p225 = scmp.ne.s32.totalorder %s211, %s212
      %p226 = scmp.eq.s32.totalorder %s31, 1
      %p227 = por %p225, %p226
      %p229 = scmp.ne.s32.totalorder %s212, %s228
      %p230 = scmp.eq.s32.totalorder %s31, 0
      %p231 = por %p229, %p230
      %s232 = ssub.s32 %s25, %s32
      %p233 = scmp.eq.s32.totalorder %s232, 0
      %s235 = sadd.s32 %s234, 1
      %s236 = scalar_select %p233, %s234, %s235
      %p239 = pneg %p233
      %p240 = scmp.eq.s32.totalorder %s25, 1
      %p241 = por %p239, %p240
      %p242 = scmp.ne.s32.totalorder %s234, %s237
      %p243 = scmp.eq.s32.totalorder %s25, 0
      %p244 = por %p242, %p243
      %p245 = scmp.ne.s32.totalorder %s234, %s237
      %p246 = scmp.eq.s32.totalorder %s30, 1
      %p247 = por %p245, %p246
      %p248 = scmp.ne.s32.totalorder %s237, %s238
      %p249 = scmp.eq.s32.totalorder %s30, 0
      %p250 = por %p248, %p249
      %p251 = scmp.ne.s32.totalorder %s237, %s238
      %p252 = scmp.eq.s32.totalorder %s31, 1
      %p253 = por %p251, %p252
      %p255 = scmp.ne.s32.totalorder %s238, %s254
      %p256 = scmp.eq.s32.totalorder %s31, 0
      %p257 = por %p255, %p256
      %s258 = ssub.s32 %s25, %s32
      %p259 = scmp.eq.s32.totalorder %s258, 0
      %s261 = sadd.s32 %s260, 1
      %s262 = scalar_select %p259, %s260, %s261
      %p265 = pneg %p259
      %p266 = scmp.eq.s32.totalorder %s25, 1
      %p267 = por %p265, %p266
      %p268 = scmp.ne.s32.totalorder %s260, %s263
      %p269 = scmp.eq.s32.totalorder %s25, 0
      %p270 = por %p268, %p269
      %p271 = scmp.ne.s32.totalorder %s260, %s263
      %p272 = scmp.eq.s32.totalorder %s30, 1
      %p273 = por %p271, %p272
      %p274 = scmp.ne.s32.totalorder %s263, %s264
      %p275 = scmp.eq.s32.totalorder %s30, 0
      %p276 = por %p274, %p275
      %p277 = scmp.ne.s32.totalorder %s263, %s264
      %p278 = scmp.eq.s32.totalorder %s31, 1
      %p279 = por %p277, %p278
      %p281 = scmp.ne.s32.totalorder %s264, %s280
      %p282 = scmp.eq.s32.totalorder %s31, 0
      %p283 = por %p281, %p282
      %s284 = ssub.s32 %s25, %s32
      %p285 = scmp.eq.s32.totalorder %s284, 0
      %s287 = sadd.s32 %s286, 1
      %s288 = scalar_select %p285, %s286, %s287
      %p291 = pneg %p285
      %p292 = scmp.eq.s32.totalorder %s25, 1
      %p293 = por %p291, %p292
      %p294 = scmp.ne.s32.totalorder %s286, %s289
      %p295 = scmp.eq.s32.totalorder %s25, 0
      %p296 = por %p294, %p295
      %p297 = scmp.ne.s32.totalorder %s286, %s289
      %p298 = scmp.eq.s32.totalorder %s30, 1
      %p299 = por %p297, %p298
      %p300 = scmp.ne.s32.totalorder %s289, %s290
      %p301 = scmp.eq.s32.totalorder %s30, 0
      %p302 = por %p300, %p301
      %p303 = scmp.ne.s32.totalorder %s289, %s290
      %p304 = scmp.eq.s32.totalorder %s31, 1
      %p305 = por %p303, %p304
      %p307 = scmp.ne.s32.totalorder %s290, %s306
      %p308 = scmp.eq.s32.totalorder %s31, 0
      %p309 = por %p307, %p308
      %s311 = sadd.s32 %s310, 1
      %p314 = scmp.eq.s32.totalorder %s25, 1
      %p315 = scmp.ne.s32.totalorder %s310, %s312
      %p316 = scmp.eq.s32.totalorder %s25, 0
      %p317 = por %p315, %p316
      %p318 = scmp.ne.s32.totalorder %s310, %s312
      %p319 = scmp.eq.s32.totalorder %s30, 1
      %p320 = por %p318, %p319
      %p321 = scmp.ne.s32.totalorder %s312, %s313
      %p322 = scmp.eq.s32.totalorder %s30, 0
      %p323 = por %p321, %p322
      %p324 = scmp.ne.s32.totalorder %s312, %s313
      %p325 = scmp.eq.s32.totalorder %s31, 1
      %p326 = por %p324, %p325
      %p328 = scmp.ne.s32.totalorder %s313, %s327
      %p329 = scmp.eq.s32.totalorder %s31, 0
      %p330 = por %p328, %p329
      %s332 = sadd.s32 %s331, 1
      %p335 = scmp.eq.s32.totalorder %s25, 1
      %p336 = scmp.ne.s32.totalorder %s331, %s333
      %p337 = scmp.eq.s32.totalorder %s25, 0
      %p338 = por %p336, %p337
      %p339 = scmp.ne.s32.totalorder %s331, %s333
      %p340 = scmp.eq.s32.totalorder %s30, 1
      %p341 = por %p339, %p340
      %p342 = scmp.ne.s32.totalorder %s333, %s334
      %p343 = scmp.eq.s32.totalorder %s30, 0
      %p344 = por %p342, %p343
      %p345 = scmp.ne.s32.totalorder %s333, %s334
      %p346 = scmp.eq.s32.totalorder %s31, 1
      %p347 = por %p345, %p346
      %p349 = scmp.ne.s32.totalorder %s334, %s348
      %p350 = scmp.eq.s32.totalorder %s31, 0
      %p351 = por %p349, %p350
      %s353 = sadd.s32 %s352, 1
      %p356 = scmp.eq.s32.totalorder %s25, 1
      %p357 = scmp.ne.s32.totalorder %s352, %s354
      %p358 = scmp.eq.s32.totalorder %s25, 0
      %p359 = por %p357, %p358
      %p360 = scmp.ne.s32.totalorder %s352, %s354
      %p361 = scmp.eq.s32.totalorder %s30, 1
      %p362 = por %p360, %p361
      %p363 = scmp.ne.s32.totalorder %s354, %s355
      %p364 = scmp.eq.s32.totalorder %s30, 0
      %p365 = por %p363, %p364
      %p366 = scmp.ne.s32.totalorder %s354, %s355
      %p367 = scmp.eq.s32.totalorder %s31, 1
      %p368 = por %p366, %p367
      %p370 = scmp.ne.s32.totalorder %s355, %s369
      %p371 = scmp.eq.s32.totalorder %s31, 0
      %p372 = por %p370, %p371
      %s374 = sadd.s32 %s373, 1
      %p377 = scmp.eq.s32.totalorder %s25, 1
      %p378 = scmp.ne.s32.totalorder %s373, %s375
      %p379 = scmp.eq.s32.totalorder %s25, 0
      %p380 = por %p378, %p379
      %p381 = scmp.ne.s32.totalorder %s373, %s375
      %p382 = scmp.eq.s32.totalorder %s30, 1
      %p383 = por %p381, %p382
      %p384 = scmp.ne.s32.totalorder %s375, %s376
      %p385 = scmp.eq.s32.totalorder %s30, 0
      %p386 = por %p384, %p385
      %p387 = scmp.ne.s32.totalorder %s375, %s376
      %p388 = scmp.eq.s32.totalorder %s31, 1
      %p389 = por %p387, %p388
      %p391 = scmp.ne.s32.totalorder %s376, %s390
      %p392 = scmp.eq.s32.totalorder %s31, 0
      %p393 = por %p391, %p392
      %s395 = sadd.s32 %s394, 1
      %p398 = scmp.eq.s32.totalorder %s25, 1
      %p399 = scmp.ne.s32.totalorder %s394, %s396
      %p400 = scmp.eq.s32.totalorder %s25, 0
      %p401 = por %p399, %p400
      %p402 = scmp.ne.s32.totalorder %s394, %s396
      %p403 = scmp.eq.s32.totalorder %s30, 1
      %p404 = por %p402, %p403
      %p405 = scmp.ne.s32.totalorder %s396, %s397
      %p406 = scmp.eq.s32.totalorder %s30, 0
      %p407 = por %p405, %p406
      %p408 = scmp.ne.s32.totalorder %s396, %s397
      %p409 = scmp.eq.s32.totalorder %s31, 1
      %p410 = por %p408, %p409
      %p412 = scmp.ne.s32.totalorder %s397, %s411
      %p413 = scmp.eq.s32.totalorder %s31, 0
      %p414 = por %p412, %p413
      %p415 = scmp.le.s32.totalorder 1, %s25
      %p416 = scmp.lt.s32.totalorder %s25, 3
      %p417 = pnand %p415, %p416
      %p418 = pneg %p417
      // Predicated region
      $region9: #{tpu_custom_call.1} parent=5 // pred_check
        _
      $region10: #{tpu_custom_call.1} parent=5 // pred_check_branch
        %420 = sbr.rel (%p417) target = $region12
      $region11: #{tpu_custom_call.1} parent=5 // pred_region
        %s421 = ssub.s32 %s25, 1
        // Predicated region
        $region13: #{tpu_custom_call.1} parent=11 // pred_check
          %p422 = pneg %p46
        $region14: #{tpu_custom_call.1} parent=11 // pred_check_branch
          %424 = sbr.rel (%p422) target = $region16
        $region15: #{tpu_custom_call.1} parent=11 // pred_region
          _
        $region16: #{tpu_custom_call.1} parent=11 // pred_fallthru
          _
        // Predicated region
        $region17: #{tpu_custom_call.1} parent=11 // pred_check
          %p425 = pneg %p67
        $region18: #{tpu_custom_call.1} parent=11 // pred_check_branch
          %427 = sbr.rel (%p425) target = $region20
        $region19: #{tpu_custom_call.1} parent=11 // pred_region
          _
        $region20: #{tpu_custom_call.1} parent=11 // pred_fallthru
          _
        // Predicated region
        $region21: #{tpu_custom_call.1} parent=11 // pred_check
          %p428 = pneg %p88
        $region22: #{tpu_custom_call.1} parent=11 // pred_check_branch
          %430 = sbr.rel (%p428) target = $region24
        $region23: #{tpu_custom_call.1} parent=11 // pred_region
          _
        $region24: #{tpu_custom_call.1} parent=11 // pred_fallthru
          _
        // Predicated region
        $region25: #{tpu_custom_call.1} parent=11 // pred_check
          %p431 = pneg %p109
        $region26: #{tpu_custom_call.1} parent=11 // pred_check_branch
          %433 = sbr.rel (%p431) target = $region28
        $region27: #{tpu_custom_call.1} parent=11 // pred_region
          _
        $region28: #{tpu_custom_call.1} parent=11 // pred_fallthru
          _
        // Predicated region
        $region29: #{tpu_custom_call.1} parent=11 // pred_check
          %p434 = pneg %p130
        $region30: #{tpu_custom_call.1} parent=11 // pred_check_branch
          %436 = sbr.rel (%p434) target = $region32
        $region31: #{tpu_custom_call.1} parent=11 // pred_region
          _
        $region32: #{tpu_custom_call.1} parent=11 // pred_fallthru
          _
        // Predicated region
        $region33: #{tpu_custom_call.1} parent=11 // pred_check
          %p437 = pneg %p151
        $region34: #{tpu_custom_call.1} parent=11 // pred_check_branch
          %439 = sbr.rel (%p437) target = $region36
        $region35: #{tpu_custom_call.1} parent=11 // pred_region
          _
        $region36: #{tpu_custom_call.1} parent=11 // pred_fallthru
          _
        // Predicated region
        $region37: #{tpu_custom_call.1} parent=11 // pred_check
          %p440 = pneg %p172
        $region38: #{tpu_custom_call.1} parent=11 // pred_check_branch
          %442 = sbr.rel (%p440) target = $region40
        $region39: #{tpu_custom_call.1} parent=11 // pred_region
          _
        $region40: #{tpu_custom_call.1} parent=11 // pred_fallthru
          _
        // Predicated region
        $region41: #{tpu_custom_call.1} parent=11 // pred_check
          %p443 = pneg %p323
        $region42: #{tpu_custom_call.1} parent=11 // pred_check_branch
          %445 = sbr.rel (%p443) target = $region44
        $region43: #{tpu_custom_call.1} parent=11 // pred_region
          _
        $region44: #{tpu_custom_call.1} parent=11 // pred_fallthru
          _
        // Predicated region
        $region45: #{tpu_custom_call.1} parent=11 // pred_check
          %p446 = pneg %p344
        $region46: #{tpu_custom_call.1} parent=11 // pred_check_branch
          %448 = sbr.rel (%p446) target = $region48
        $region47: #{tpu_custom_call.1} parent=11 // pred_region
          _
        $region48: #{tpu_custom_call.1} parent=11 // pred_fallthru
          _
        // Predicated region
        $region49: #{tpu_custom_call.1} parent=11 // pred_check
          %p449 = pneg %p365
        $region50: #{tpu_custom_call.1} parent=11 // pred_check_branch
          %451 = sbr.rel (%p449) target = $region52
        $region51: #{tpu_custom_call.1} parent=11 // pred_region
          _
        $region52: #{tpu_custom_call.1} parent=11 // pred_fallthru
          _
      $region12: #{tpu_custom_call.1} parent=5 // pred_fallthru
        _
      %p452 = scmp.lt.s32.totalorder %s25, 2
      // Predicated region
      $region53: #{tpu_custom_call.1} parent=5 // pred_check
        %p453 = pneg %p452
      $region54: #{tpu_custom_call.1} parent=5 // pred_check_branch
        %455 = sbr.rel (%p453) target = $region56
      $region55: #{tpu_custom_call.1} parent=5 // pred_region
        // Predicated region
        $region57: #{tpu_custom_call.1} parent=55 // pred_check
          %p456 = pneg %p192
        $region58: #{tpu_custom_call.1} parent=55 // pred_check_branch
          %458 = sbr.rel (%p456) target = $region60
        $region59: #{tpu_custom_call.1} parent=55 // pred_region
          %s459 = smul.u32 16, %s25
          %p460 = scmp.lt.s32.totalorder %s459, 31
          %s461 = scalar_select %p460, %s459, 31
          %s462 = smul.addr %s461, 8
          %s463 = scalar_lea.vmem %s7, %s462
          %s464 = smul.u32 16, %s25
        $region60: #{tpu_custom_call.1} parent=55 // pred_fallthru
          _
        // Predicated region
        $region61: #{tpu_custom_call.1} parent=55 // pred_check
          %p465 = pneg %p218
        $region62: #{tpu_custom_call.1} parent=55 // pred_check_branch
          %467 = sbr.rel (%p465) target = $region64
        $region63: #{tpu_custom_call.1} parent=55 // pred_region
          %s468 = smul.u32 16, %s25
          %p469 = scmp.lt.s32.totalorder %s468, 31
          %s470 = scalar_select %p469, %s468, 31
          %s471 = smul.addr %s470, 8
          %s472 = scalar_lea.vmem %s8, %s471
          %s473 = smul.u32 16, %s25
        $region64: #{tpu_custom_call.1} parent=55 // pred_fallthru
          _
        // Predicated region
        $region65: #{tpu_custom_call.1} parent=55 // pred_check
          %p474 = pneg %p244
        $region66: #{tpu_custom_call.1} parent=55 // pred_check_branch
          %476 = sbr.rel (%p474) target = $region68
        $region67: #{tpu_custom_call.1} parent=55 // pred_region
          %s477 = smul.u32 16, %s25
          %p478 = scmp.lt.s32.totalorder %s477, 31
          %s479 = scalar_select %p478, %s477, 31
          %s480 = smul.addr %s479, 8
          %s481 = scalar_lea.vmem %s9, %s480
          %s482 = smul.u32 16, %s25
        $region68: #{tpu_custom_call.1} parent=55 // pred_fallthru
          _
        // Predicated region
        $region69: #{tpu_custom_call.1} parent=55 // pred_check
          %p483 = pneg %p270
        $region70: #{tpu_custom_call.1} parent=55 // pred_check_branch
          %485 = sbr.rel (%p483) target = $region72
        $region71: #{tpu_custom_call.1} parent=55 // pred_region
          %s486 = smul.u32 16, %s25
          %p487 = scmp.lt.s32.totalorder %s486, 31
          %s488 = scalar_select %p487, %s486, 31
          %s489 = smul.addr %s488, 8
          %s490 = scalar_lea.vmem %s10, %s489
          %s491 = smul.u32 16, %s25
        $region72: #{tpu_custom_call.1} parent=55 // pred_fallthru
          _
        // Predicated region
        $region73: #{tpu_custom_call.1} parent=55 // pred_check
          %p492 = pneg %p296
        $region74: #{tpu_custom_call.1} parent=55 // pred_check_branch
          %494 = sbr.rel (%p492) target = $region76
        $region75: #{tpu_custom_call.1} parent=55 // pred_region
          %p495 = scmp.lt.s32.totalorder %s25, 1
          %s496 = scalar_select %p495, %s25, 1
          %s497 = scalar_lea.vmem %s11, %s496
        $region76: #{tpu_custom_call.1} parent=55 // pred_fallthru
          _
      $region56: #{tpu_custom_call.1} parent=5 // pred_fallthru
        _
      %p498 = scmp.le.s32.totalorder 1, %s25
      %p499 = scmp.lt.s32.totalorder %s25, 3
      %p500 = pnand %p498, %p499
      %p501 = pneg %p500
      // Predicated region
      $region77: #{tpu_custom_call.1} parent=5 // pred_check
        _
      $region78: #{tpu_custom_call.1} parent=5 // pred_check_branch
        %503 = sbr.rel (%p500) target = $region80
      $region79: #{tpu_custom_call.1} parent=5 // pred_region
        %s504 = ssub.s32 %s25, 1
        %p505 = pneg %p46
        %p506 = pneg %p43
        %p507 = pneg %p67
        %p508 = pneg %p64
        %p509 = pneg %p88
        %p510 = pneg %p85
        %p511 = pneg %p109
        %p512 = pneg %p106
        %p513 = pneg %p130
        %p514 = pneg %p127
        %p515 = pneg %p151
        %p516 = pneg %p148
        %p517 = pneg %p172
        %p518 = pneg %p169
        %s519 = smul.u32 16, %s30
        %p520 = scmp.lt.s32.totalorder %s519, 31
        %s521 = scalar_select %p520, %s519, 31
        %s522 = smul.addr %s521, 8
        %s523 = scalar_lea.vmem %s7, %s522
        %p524 = pneg %p198
        %p525 = pneg %p195
        %s526 = smul.u32 16, %s30
        %p527 = scmp.lt.s32.totalorder %s526, 31
        %s528 = scalar_select %p527, %s526, 31
        %s529 = smul.addr %s528, 8
        %s530 = scalar_lea.vmem %s8, %s529
        %p531 = pneg %p224
        %p532 = pneg %p221
        %s533 = smul.u32 16, %s30
        %p534 = scmp.lt.s32.totalorder %s533, 31
        %s535 = scalar_select %p534, %s533, 31
        %s536 = smul.addr %s535, 8
        %s537 = scalar_lea.vmem %s9, %s536
        %p538 = pneg %p250
        %p539 = pneg %p247
        %s540 = smul.u32 16, %s30
        %p541 = scmp.lt.s32.totalorder %s540, 31
        %s542 = scalar_select %p541, %s540, 31
        %s543 = smul.addr %s542, 8
        %s544 = scalar_lea.vmem %s10, %s543
        %p545 = pneg %p276
        %p546 = pneg %p273
        %p547 = scmp.lt.s32.totalorder %s30, 1
        %s548 = scalar_select %p547, %s30, 1
        %s549 = scalar_lea.vmem %s11, %s548
        %p550 = pneg %p302
        %p551 = pneg %p299
        %p552 = pneg %p323
        %p553 = pneg %p320
        %p554 = pneg %p344
        %p555 = pneg %p341
        %p556 = pneg %p365
        %p557 = pneg %p362
        %p558 = pneg %p386
        %p559 = pneg %p383
        %p560 = pneg %p407
        %p561 = pneg %p404
        %s562 = smul.u32 16, %s30
        %p563 = scmp.lt.s32.totalorder %s562, 31
        %s564 = scalar_select %p563, %s562, 31
        %s565 = smul.addr %s564, 8
        %s566 = scalar_lea.vmem %s7, %s565
        %s567 = smul.u32 16, %s30
        %s568 = smul.u32 16, %s30
        %p569 = scmp.lt.s32.totalorder %s568, 31
        %s570 = scalar_select %p569, %s568, 31
        %s571 = smul.addr %s570, 8
        %s572 = scalar_lea.vmem %s8, %s571
        %s573 = smul.u32 16, %s30
        %s574 = smul.u32 16, %s30
        %p575 = scmp.lt.s32.totalorder %s574, 31
        %s576 = scalar_select %p575, %s574, 31
        %s577 = smul.addr %s576, 8
        %s578 = scalar_lea.vmem %s9, %s577
        %s579 = smul.u32 16, %s30
        %s580 = smul.u32 16, %s30
        %p581 = scmp.lt.s32.totalorder %s580, 31
        %s582 = scalar_select %p581, %s580, 31
        %s583 = smul.addr %s582, 8
        %s584 = scalar_lea.vmem %s10, %s583
        %s585 = smul.u32 16, %s30
        %p586 = scmp.lt.s32.totalorder %s30, 1
        %s587 = scalar_select %p586, %s30, 1
        %s588 = scalar_lea.vmem %s11, %s587
        %p589 = scmp.eq.s32.totalorder %s30, 0
        // Predicated region
        $region81: #{tpu_custom_call.1} parent=79 // pred_check
          %p590 = pneg %p589
        $region82: #{tpu_custom_call.1} parent=79 // pred_check_branch
          %592 = sbr.rel (%p590) target = $region84
        $region83: #{tpu_custom_call.1} parent=79 // pred_region
          %v593 = vld [vmem:[%s0] sm:$0xff]
          %v594 = vld [vmem:[%s0 + $0x8] sm:$0xff]
          %v595 = vld [vmem:[%s0 + $0x10] sm:$0xff]
          %v596 = vld [vmem:[%s0 + $0x18] sm:$0x7f]
          %v597 = vld [vmem:[%s1] sm:$0xff]
          %v598 = vld [vmem:[%s1 + $0x8] sm:$0xff]
          %v599 = vld [vmem:[%s1 + $0x10] sm:$0xff]
          %v600 = vld [vmem:[%s1 + $0x18] sm:$0xff]
          %v601 = vld [vmem:[%s1 + $0x20] sm:$0xff]
          %v602 = vld [vmem:[%s1 + $0x28] sm:$0xff]
          %v603 = vld [vmem:[%s1 + $0x30] sm:$0xff]
          %v604 = vld [vmem:[%s1 + $0x38] sm:$0xff]
          %v605 = vld [vmem:[%s1 + $0x40] sm:$0xff]
          %v606 = vld [vmem:[%s1 + $0x48] sm:$0xff]
          %v607 = vld [vmem:[%s1 + $0x50] sm:$0xff]
          %v608 = vld [vmem:[%s1 + $0x58] sm:$0xff]
          %v609 = vld [vmem:[%s1 + $0x60] sm:$0xff]
          %v610 = vld [vmem:[%s1 + $0x68] sm:$0xff]
          %v611 = vld [vmem:[%s1 + $0x70] sm:$0xff]
          %v612 = vld [vmem:[%s1 + $0x78] sm:$0xff]
          %v613 = vld [vmem:[%s2] sm:$0x3]
          %v615 = vlaneseq
          %v616 = vshrl.u32 %v615, 7
          %v617 = vsub.s32 0, %v616
          %v618 = vrot.slane %v613, %v617
          %v619 = vlaneseq
          %v620 = vshrl.u32 %v619, 7
          %v621 = vsub.s32 1, %v620
          %v622 = vrot.slane %v613, %v621
          %vm625 = vcmask 523264
          %v627 = vsel %vm625, %v593, 0
          %v630 = vsel %vm625, %v594, 0
          %v633 = vsel %vm625, %v595, 0
          %v636 = vsel %vm625, %v596, 0
          %638 = vmatprep.subr.mxu0 0.0
          %639 = vmatpush1.msra.mxu0 0.0
          %640 = vmatprep.subr.mxu0 0.0
          %641 = vmatpush1.msra.mxu0 0.0
          %642 = vmatprep.subr.mxu0 0.0
          %643 = vmatpush1.msra.mxu0 0.0
          %644 = vmatprep.subr.mxu0 0.0
          %645 = vmatpush1.msra.mxu0 0.0
          %646 = vmatprep.subr.mxu0 0.0
          %647 = vmatpush1.msra.mxu0 0.0
          %648 = vmatprep.subr.mxu0 0.0
          %649 = vmatpush1.msra.mxu0 0.0
          %650 = vmatprep.subr.mxu0 0.0
          %651 = vmatpush1.msra.mxu0 0.0
          %652 = vmatprep.subr.mxu0 0.0
          %653 = vmatpush1.msra.mxu0 0.0
          %654 = vmatprep.subr.mxu0 %v612
          %655 = vmatpush1.msra.mxu0 %v611
          %656 = vmatprep.subr.mxu0 %v610
          %657 = vmatpush1.msra.mxu0 %v609
          %658 = vmatprep.subr.mxu0 %v608
          %659 = vmatpush1.msra.mxu0 %v607
          %660 = vmatprep.subr.mxu0 %v606
          %661 = vmatpush1.msra.mxu0 %v605
          %662 = vmatprep.subr.mxu0 %v604
          %663 = vmatpush1.msra.mxu0 %v603
          %664 = vmatprep.subr.mxu0 %v602
          %665 = vmatpush1.msra.mxu0 %v601
          %666 = vmatprep.subr.mxu0 %v600
          %667 = vmatpush1.msra.mxu0 %v599
          %668 = vmatprep.subr.mxu0 %v598
          %669 = vmatpush1.msra.mxu0 %v597
          %670 = vmatprep.subr.mxu0 0.0
          %671 = vmatpush2.msra.mxu0 0.0
          %672 = vmatprep.subr.mxu0 0.0
          %673 = vmatpush2.msra.mxu0 0.0
          %674 = vmatprep.subr.mxu0 0.0
          %675 = vmatpush2.msra.mxu0 0.0
          %676 = vmatprep.subr.mxu0 0.0
          %677 = vmatpush2.msra.mxu0 0.0
          %678 = vmatprep.subr.mxu0 0.0
          %679 = vmatpush2.msra.mxu0 0.0
          %680 = vmatprep.subr.mxu0 0.0
          %681 = vmatpush2.msra.mxu0 0.0
          %682 = vmatprep.subr.mxu0 0.0
          %683 = vmatpush2.msra.mxu0 0.0
          %684 = vmatprep.subr.mxu0 0.0
          %685 = vmatpush2.msra.mxu0 0.0
          %686 = vmatprep.subr.mxu0 0.0
          %687 = vmatpush2.msra.mxu0 0.0
          %688 = vmatprep.subr.mxu0 0.0
          %689 = vmatpush2.msra.mxu0 0.0
          %690 = vmatprep.subr.mxu0 0.0
          %691 = vmatpush2.msra.mxu0 0.0
          %692 = vmatprep.subr.mxu0 0.0
          %693 = vmatpush2.msra.mxu0 0.0
          %694 = vmatprep.subr.mxu0 0.0
          %695 = vmatpush2.msra.mxu0 0.0
          %696 = vmatprep.subr.mxu0 0.0
          %697 = vmatpush2.msra.mxu0 0.0
          %698 = vmatprep.subr.mxu0 0.0
          %699 = vmatpush2.msra.mxu0 0.0
          %700 = vmatprep.subr.mxu0 0.0
          %701 = vmatpush2.msra.mxu0 0.0
          %702 = vmatprep.mubr.f32.mxu0 0.0
          %703 = vmatmul.mubr.f32.gmra.mxu0 %v627
          %v704 = vpop.f32.mrf.mxu0
          %v705 = vadd.f32 %v618, %v704
          %v706 = vpop.f32.mrf.mxu0
          %v707 = vadd.f32 %v622, %v706
          %708 = vmatprep.mubr.f32.mxu0 0.0
          %709 = vmatmul.mubr.f32.gmra.mxu0 %v630
          %v710 = vpop.f32.mrf.mxu0
          %v711 = vadd.f32 %v618, %v710
          %v712 = vpop.f32.mrf.mxu0
          %v713 = vadd.f32 %v622, %v712
          %714 = vmatprep.mubr.f32.mxu0 0.0
          %715 = vmatmul.mubr.f32.gmra.mxu0 %v633
          %v716 = vpop.f32.mrf.mxu0
          %v717 = vadd.f32 %v618, %v716
          %v718 = vpop.f32.mrf.mxu0
          %v719 = vadd.f32 %v622, %v718
          %720 = vmatprep.mubr.f32.mxu0 0.0
          %721 = vmatmul.mubr.f32.gmra.mxu0 %v636
          %v722 = vpop.f32.mrf.mxu0
          %v723 = vadd.f32 %v618, %v722
          %v724 = vpop.f32.mrf.mxu0
          %v725 = vadd.f32 %v622, %v724
          %726 = vdwg.mxu0
          %727 = vst [vmem:[#allocation2] sm:$0xff] %v705
          %728 = vst.msk [vmem:[#allocation2 + $0x8] sm:$0xff] %vm625, %v707
          %729 = vst [vmem:[#allocation2 + $0x10] sm:$0xff] %v711
          %730 = vst.msk [vmem:[#allocation2 + $0x18] sm:$0xff] %vm625, %v713
          %731 = vst [vmem:[#allocation2 + $0x20] sm:$0xff] %v717
          %732 = vst.msk [vmem:[#allocation2 + $0x28] sm:$0xff] %vm625, %v719
          %733 = vst [vmem:[#allocation2 + $0x30] sm:$0x7f] %v723
          %vm734 = vcmask 522240
          %735 = vst.msk [vmem:[#allocation2 + $0x38] sm:$0x7f] %vm734, %v725
          %736 = vst [vmem:[#allocation3] sm:$0xff] 0.0
          %737 = vst [vmem:[#allocation3 + $0x8] sm:$0xff] 0.0
          %738 = vst [vmem:[#allocation3 + $0x10] sm:$0xff] 0.0
          %739 = vst [vmem:[#allocation3 + $0x18] sm:$0x7f] 0.0
          %740 = vst [vmem:[#allocation6] sm:$0x7] 0.0
        $region84: #{tpu_custom_call.1} parent=79 // pred_fallthru
          _
        %v741 = vld [vmem:[%s566] sm:$0xff]
        %v742 = vld [vmem:[%s566 + $0x8] sm:$0xff]
        %v743 = vld [vmem:[%s566 + $0x10] sm:$0xff]
        %v744 = vld [vmem:[%s566 + $0x18] sm:$0xff]
        %v745 = vld [vmem:[%s566 + $0x20] sm:$0xff]
        %v746 = vld [vmem:[%s566 + $0x28] sm:$0xff]
        %v747 = vld [vmem:[%s566 + $0x30] sm:$0xff]
        %v748 = vld [vmem:[%s566 + $0x38] sm:$0xff]
        %v749 = vld [vmem:[%s566 + $0x40] sm:$0xff]
        %v750 = vld [vmem:[%s566 + $0x48] sm:$0xff]
        %v751 = vld [vmem:[%s566 + $0x50] sm:$0xff]
        %v752 = vld [vmem:[%s566 + $0x58] sm:$0xff]
        %v753 = vld [vmem:[%s566 + $0x60] sm:$0xff]
        %v754 = vld [vmem:[%s566 + $0x68] sm:$0xff]
        %v755 = vld [vmem:[%s566 + $0x70] sm:$0xff]
        %v756 = vld [vmem:[%s566 + $0x78] sm:$0xff]
        %v757 = vld [vmem:[%s5] sm:$0xff]
        %v758 = vld [vmem:[%s5 + $0x8] sm:$0xff]
        %v759 = vld [vmem:[%s5 + $0x10] sm:$0xff]
        %v760 = vld [vmem:[%s5 + $0x18] sm:$0xff]
        %v761 = vld [vmem:[%s5 + $0x20] sm:$0xff]
        %v762 = vld [vmem:[%s5 + $0x28] sm:$0xff]
        %v763 = vld [vmem:[%s5 + $0x30] sm:$0xff]
        %v764 = vld [vmem:[%s5 + $0x38] sm:$0xff]
        %v765 = vld [vmem:[%s6] sm:$0x1]
        %v767 = vlaneseq
        %v768 = vshrl.u32 %v767, 7
        %v769 = vsub.s32 0, %v768
        %v770 = vrot.slane %v765, %v769
        %vm772 = vcmask 523264
        %v774 = vsel %vm772, %v741, 0
        %v777 = vsel %vm772, %v742, 0
        %v780 = vsel %vm772, %v743, 0
        %v783 = vsel %vm772, %v744, 0
        %v786 = vsel %vm772, %v745, 0
        %v789 = vsel %vm772, %v746, 0
        %v792 = vsel %vm772, %v747, 0
        %v795 = vsel %vm772, %v748, 0
        %v798 = vsel %vm772, %v749, 0
        %v801 = vsel %vm772, %v750, 0
        %v804 = vsel %vm772, %v751, 0
        %v807 = vsel %vm772, %v752, 0
        %v810 = vsel %vm772, %v753, 0
        %v813 = vsel %vm772, %v754, 0
        %v816 = vsel %vm772, %v755, 0
        %v819 = vsel %vm772, %v756, 0
        %821 = vmatprep.subr.mxu0 0.0
        %822 = vmatpush1.msra.mxu0 0.0
        %823 = vmatprep.subr.mxu0 0.0
        %824 = vmatpush1.msra.mxu0 0.0
        %825 = vmatprep.subr.mxu0 0.0
        %826 = vmatpush1.msra.mxu0 0.0
        %827 = vmatprep.subr.mxu0 0.0
        %828 = vmatpush1.msra.mxu0 0.0
        %829 = vmatprep.subr.mxu0 0.0
        %830 = vmatpush1.msra.mxu0 0.0
        %831 = vmatprep.subr.mxu0 0.0
        %832 = vmatpush1.msra.mxu0 0.0
        %833 = vmatprep.subr.mxu0 0.0
        %834 = vmatpush1.msra.mxu0 0.0
        %835 = vmatprep.subr.mxu0 0.0
        %836 = vmatpush1.msra.mxu0 0.0
        %837 = vmatprep.subr.mxu0 0.0
        %838 = vmatpush1.msra.mxu0 %v764
        %839 = vmatprep.subr.mxu0 0.0
        %840 = vmatpush1.msra.mxu0 %v763
        %841 = vmatprep.subr.mxu0 0.0
        %842 = vmatpush1.msra.mxu0 %v762
        %843 = vmatprep.subr.mxu0 0.0
        %844 = vmatpush1.msra.mxu0 %v761
        %845 = vmatprep.subr.mxu0 0.0
        %846 = vmatpush1.msra.mxu0 %v760
        %847 = vmatprep.subr.mxu0 0.0
        %848 = vmatpush1.msra.mxu0 %v759
        %849 = vmatprep.subr.mxu0 0.0
        %850 = vmatpush1.msra.mxu0 %v758
        %851 = vmatprep.subr.mxu0 0.0
        %852 = vmatpush1.msra.mxu0 %v757
        %853 = vmatprep.subr.mxu0 0.0
        %854 = vmatpush2.msra.mxu0 0.0
        %855 = vmatprep.subr.mxu0 0.0
        %856 = vmatpush2.msra.mxu0 0.0
        %857 = vmatprep.subr.mxu0 0.0
        %858 = vmatpush2.msra.mxu0 0.0
        %859 = vmatprep.subr.mxu0 0.0
        %860 = vmatpush2.msra.mxu0 0.0
        %861 = vmatprep.subr.mxu0 0.0
        %862 = vmatpush2.msra.mxu0 0.0
        %863 = vmatprep.subr.mxu0 0.0
        %864 = vmatpush2.msra.mxu0 0.0
        %865 = vmatprep.subr.mxu0 0.0
        %866 = vmatpush2.msra.mxu0 0.0
        %867 = vmatprep.subr.mxu0 0.0
        %868 = vmatpush2.msra.mxu0 0.0
        %869 = vmatprep.subr.mxu0 0.0
        %870 = vmatpush2.msra.mxu0 0.0
        %871 = vmatprep.subr.mxu0 0.0
        %872 = vmatpush2.msra.mxu0 0.0
        %873 = vmatprep.subr.mxu0 0.0
        %874 = vmatpush2.msra.mxu0 0.0
        %875 = vmatprep.subr.mxu0 0.0
        %876 = vmatpush2.msra.mxu0 0.0
        %877 = vmatprep.subr.mxu0 0.0
        %878 = vmatpush2.msra.mxu0 0.0
        %879 = vmatprep.subr.mxu0 0.0
        %880 = vmatpush2.msra.mxu0 0.0
        %881 = vmatprep.subr.mxu0 0.0
        %882 = vmatpush2.msra.mxu0 0.0
        %883 = vmatprep.subr.mxu0 0.0
        %884 = vmatpush2.msra.mxu0 0.0
        %885 = vmatprep.mubr.f32.mxu0 0.0
        %886 = vmatmul.mubr.f32.gmra.mxu0 %v774
        %v887 = vpop.f32.mrf.mxu0
        %v888 = vadd.f32 %v770, %v887
        %v889 = vpop.f32.mrf.mxu0
        %890 = vmatprep.mubr.f32.mxu0 0.0
        %891 = vmatmul.mubr.f32.gmra.mxu0 %v777
        %v892 = vpop.f32.mrf.mxu0
        %v893 = vadd.f32 %v770, %v892
        %v894 = vpop.f32.mrf.mxu0
        %895 = vmatprep.mubr.f32.mxu0 0.0
        %896 = vmatmul.mubr.f32.gmra.mxu0 %v780
        %v897 = vpop.f32.mrf.mxu0
        %v898 = vadd.f32 %v770, %v897
        %v899 = vpop.f32.mrf.mxu0
        %900 = vmatprep.mubr.f32.mxu0 0.0
        %901 = vmatmul.mubr.f32.gmra.mxu0 %v783
        %v902 = vpop.f32.mrf.mxu0
        %v903 = vadd.f32 %v770, %v902
        %v904 = vpop.f32.mrf.mxu0
        %905 = vmatprep.mubr.f32.mxu0 0.0
        %906 = vmatmul.mubr.f32.gmra.mxu0 %v786
        %v907 = vpop.f32.mrf.mxu0
        %v908 = vadd.f32 %v770, %v907
        %v909 = vpop.f32.mrf.mxu0
        %910 = vmatprep.mubr.f32.mxu0 0.0
        %911 = vmatmul.mubr.f32.gmra.mxu0 %v789
        %v912 = vpop.f32.mrf.mxu0
        %v913 = vadd.f32 %v770, %v912
        %v914 = vpop.f32.mrf.mxu0
        %915 = vmatprep.mubr.f32.mxu0 0.0
        %916 = vmatmul.mubr.f32.gmra.mxu0 %v792
        %v917 = vpop.f32.mrf.mxu0
        %v918 = vadd.f32 %v770, %v917
        %v919 = vpop.f32.mrf.mxu0
        %920 = vmatprep.mubr.f32.mxu0 0.0
        %921 = vmatmul.mubr.f32.gmra.mxu0 %v795
        %v922 = vpop.f32.mrf.mxu0
        %v923 = vadd.f32 %v770, %v922
        %v924 = vpop.f32.mrf.mxu0
        %925 = vmatprep.mubr.f32.mxu0 0.0
        %926 = vmatmul.mubr.f32.gmra.mxu0 %v798
        %v927 = vpop.f32.mrf.mxu0
        %v928 = vadd.f32 %v770, %v927
        %v929 = vpop.f32.mrf.mxu0
        %930 = vmatprep.mubr.f32.mxu0 0.0
        %931 = vmatmul.mubr.f32.gmra.mxu0 %v801
        %v932 = vpop.f32.mrf.mxu0
        %v933 = vadd.f32 %v770, %v932
        %v934 = vpop.f32.mrf.mxu0
        %935 = vmatprep.mubr.f32.mxu0 0.0
        %936 = vmatmul.mubr.f32.gmra.mxu0 %v804
        %v937 = vpop.f32.mrf.mxu0
        %v938 = vadd.f32 %v770, %v937
        %v939 = vpop.f32.mrf.mxu0
        %940 = vmatprep.mubr.f32.mxu0 0.0
        %941 = vmatmul.mubr.f32.gmra.mxu0 %v807
        %v942 = vpop.f32.mrf.mxu0
        %v943 = vadd.f32 %v770, %v942
        %v944 = vpop.f32.mrf.mxu0
        %945 = vmatprep.mubr.f32.mxu0 0.0
        %946 = vmatmul.mubr.f32.gmra.mxu0 %v810
        %v947 = vpop.f32.mrf.mxu0
        %v948 = vadd.f32 %v770, %v947
        %v949 = vpop.f32.mrf.mxu0
        %950 = vmatprep.mubr.f32.mxu0 0.0
        %951 = vmatmul.mubr.f32.gmra.mxu0 %v813
        %v952 = vpop.f32.mrf.mxu0
        %v953 = vadd.f32 %v770, %v952
        %v954 = vpop.f32.mrf.mxu0
        %955 = vmatprep.mubr.f32.mxu0 0.0
        %956 = vmatmul.mubr.f32.gmra.mxu0 %v816
        %v957 = vpop.f32.mrf.mxu0
        %v958 = vadd.f32 %v770, %v957
        %v959 = vpop.f32.mrf.mxu0
        %960 = vmatprep.mubr.f32.mxu0 0.0
        %961 = vmatmul.mubr.f32.gmra.mxu0 %v819
        %v962 = vpop.f32.mrf.mxu0
        %v963 = vadd.f32 %v770, %v962
        %v964 = vpop.f32.mrf.mxu0
        %965 = vdwg.mxu0
        %v966 = vlaneseq
        %v967 = vand.u32 %v966, 127
        %v968 = vlaneseq
        %v969 = vshrl.u32 %v968, 7
        %v970 = vadd.s32 %v969, 8
        %v971 = vadd.s32 %v969, 16
        %v972 = vadd.s32 %v969, 24
        %v973 = vld [vmem:[%s578] sm:$0xff]
        %v974 = vld [vmem:[%s578 + $0x8] sm:$0xff]
        %v975 = vld [vmem:[%s578 + $0x10] sm:$0xff]
        %v976 = vld [vmem:[%s578 + $0x18] sm:$0xff]
        %v977 = vld [vmem:[%s578 + $0x20] sm:$0xff]
        %v978 = vld [vmem:[%s578 + $0x28] sm:$0xff]
        %v979 = vld [vmem:[%s578 + $0x30] sm:$0xff]
        %v980 = vld [vmem:[%s578 + $0x38] sm:$0xff]
        %v981 = vld [vmem:[%s578 + $0x40] sm:$0xff]
        %v982 = vld [vmem:[%s578 + $0x48] sm:$0xff]
        %v983 = vld [vmem:[%s578 + $0x50] sm:$0xff]
        %v984 = vld [vmem:[%s578 + $0x58] sm:$0xff]
        %v985 = vld [vmem:[%s578 + $0x60] sm:$0xff]
        %v986 = vld [vmem:[%s578 + $0x68] sm:$0xff]
        %v987 = vld [vmem:[%s578 + $0x70] sm:$0xff]
        %v988 = vld [vmem:[%s578 + $0x78] sm:$0xff]
        %989 = vset.pattern.permute.xlu0 0
        %990 = vperm.xlu0 %989, %v973
        %v991 = vpop.permute.xlu0 %990
        %992 = vset.pattern.permute.xlu0 0
        %993 = vperm.xlu0 %992, %v974
        %v994 = vpop.permute.xlu0 %993
        %995 = vset.pattern.permute.xlu0 0
        %996 = vperm.xlu0 %995, %v975
        %v997 = vpop.permute.xlu0 %996
        %998 = vset.pattern.permute.xlu0 0
        %999 = vperm.xlu0 %998, %v976
        %v1000 = vpop.permute.xlu0 %999
        %1001 = vset.pattern.permute.xlu0 0
        %1002 = vperm.xlu0 %1001, %v977
        %v1003 = vpop.permute.xlu0 %1002
        %1004 = vset.pattern.permute.xlu0 0
        %1005 = vperm.xlu0 %1004, %v978
        %v1006 = vpop.permute.xlu0 %1005
        %1007 = vset.pattern.permute.xlu0 0
        %1008 = vperm.xlu0 %1007, %v979
        %v1009 = vpop.permute.xlu0 %1008
        %1010 = vset.pattern.permute.xlu0 0
        %1011 = vperm.xlu0 %1010, %v980
        %v1012 = vpop.permute.xlu0 %1011
        %1013 = vset.pattern.permute.xlu0 0
        %1014 = vperm.xlu0 %1013, %v981
        %v1015 = vpop.permute.xlu0 %1014
        %1016 = vset.pattern.permute.xlu0 0
        %1017 = vperm.xlu0 %1016, %v982
        %v1018 = vpop.permute.xlu0 %1017
        %1019 = vset.pattern.permute.xlu0 0
        %1020 = vperm.xlu0 %1019, %v983
        %v1021 = vpop.permute.xlu0 %1020
        %1022 = vset.pattern.permute.xlu0 0
        %1023 = vperm.xlu0 %1022, %v984
        %v1024 = vpop.permute.xlu0 %1023
        %1025 = vset.pattern.permute.xlu0 0
        %1026 = vperm.xlu0 %1025, %v985
        %v1027 = vpop.permute.xlu0 %1026
        %1028 = vset.pattern.permute.xlu0 0
        %1029 = vperm.xlu0 %1028, %v986
        %v1030 = vpop.permute.xlu0 %1029
        %1031 = vset.pattern.permute.xlu0 0
        %1032 = vperm.xlu0 %1031, %v987
        %v1033 = vpop.permute.xlu0 %1032
        %1034 = vset.pattern.permute.xlu0 0
        %1035 = vperm.xlu0 %1034, %v988
        %v1036 = vpop.permute.xlu0 %1035
        %vm1037 = vcmp.eq.s32.totalorder %v991, %v967
        %vm1038 = vcmp.eq.s32.totalorder %v994, %v967
        %vm1039 = vcmp.eq.s32.totalorder %v997, %v967
        %vm1040 = vcmp.eq.s32.totalorder %v1000, %v967
        %vm1041 = vcmp.eq.s32.totalorder %v1003, %v967
        %vm1042 = vcmp.eq.s32.totalorder %v1006, %v967
        %vm1043 = vcmp.eq.s32.totalorder %v1009, %v967
        %vm1044 = vcmp.eq.s32.totalorder %v1012, %v967
        %vm1045 = vcmp.eq.s32.totalorder %v1015, %v967
        %vm1046 = vcmp.eq.s32.totalorder %v1018, %v967
        %vm1047 = vcmp.eq.s32.totalorder %v1021, %v967
        %vm1048 = vcmp.eq.s32.totalorder %v1024, %v967
        %vm1049 = vcmp.eq.s32.totalorder %v1027, %v967
        %vm1050 = vcmp.eq.s32.totalorder %v1030, %v967
        %vm1051 = vcmp.eq.s32.totalorder %v1033, %v967
        %vm1052 = vcmp.eq.s32.totalorder %v1036, %v967
        %v1053 = vsel %vm1037, 1, 0
        %v1054 = vsel %vm1038, 1, 0
        %v1055 = vsel %vm1039, 1, 0
        %v1056 = vsel %vm1040, 1, 0
        %v1057 = vsel %vm1041, 1, 0
        %v1058 = vsel %vm1042, 1, 0
        %v1059 = vsel %vm1043, 1, 0
        %v1060 = vsel %vm1044, 1, 0
        %v1061 = vsel %vm1045, 1, 0
        %v1062 = vsel %vm1046, 1, 0
        %v1063 = vsel %vm1047, 1, 0
        %v1064 = vsel %vm1048, 1, 0
        %v1065 = vsel %vm1049, 1, 0
        %v1066 = vsel %vm1050, 1, 0
        %v1067 = vsel %vm1051, 1, 0
        %v1068 = vsel %vm1052, 1, 0
        %v1069 = vcvt.s32.f32 %v1053
        %v1070 = vcvt.s32.f32 %v1054
        %v1071 = vcvt.s32.f32 %v1055
        %v1072 = vcvt.s32.f32 %v1056
        %v1073 = vcvt.s32.f32 %v1057
        %v1074 = vcvt.s32.f32 %v1058
        %v1075 = vcvt.s32.f32 %v1059
        %v1076 = vcvt.s32.f32 %v1060
        %v1077 = vcvt.s32.f32 %v1061
        %v1078 = vcvt.s32.f32 %v1062
        %v1079 = vcvt.s32.f32 %v1063
        %v1080 = vcvt.s32.f32 %v1064
        %v1081 = vcvt.s32.f32 %v1065
        %v1082 = vcvt.s32.f32 %v1066
        %v1083 = vcvt.s32.f32 %v1067
        %v1084 = vcvt.s32.f32 %v1068
        %v1085 = vld [vmem:[%s584] sm:$0xff]
        %v1086 = vld [vmem:[%s584 + $0x8] sm:$0xff]
        %v1087 = vld [vmem:[%s584 + $0x10] sm:$0xff]
        %v1088 = vld [vmem:[%s584 + $0x18] sm:$0xff]
        %v1089 = vld [vmem:[%s584 + $0x20] sm:$0xff]
        %v1090 = vld [vmem:[%s584 + $0x28] sm:$0xff]
        %v1091 = vld [vmem:[%s584 + $0x30] sm:$0xff]
        %v1092 = vld [vmem:[%s584 + $0x38] sm:$0xff]
        %v1093 = vld [vmem:[%s584 + $0x40] sm:$0xff]
        %v1094 = vld [vmem:[%s584 + $0x48] sm:$0xff]
        %v1095 = vld [vmem:[%s584 + $0x50] sm:$0xff]
        %v1096 = vld [vmem:[%s584 + $0x58] sm:$0xff]
        %v1097 = vld [vmem:[%s584 + $0x60] sm:$0xff]
        %v1098 = vld [vmem:[%s584 + $0x68] sm:$0xff]
        %v1099 = vld [vmem:[%s584 + $0x70] sm:$0xff]
        %v1100 = vld [vmem:[%s584 + $0x78] sm:$0xff]
        %1101 = vset.pattern.permute.xlu0 0
        %1102 = vperm.xlu0 %1101, %v1085
        %v1103 = vpop.permute.xlu0 %1102
        %1104 = vset.pattern.permute.xlu0 0
        %1105 = vperm.xlu0 %1104, %v1086
        %v1106 = vpop.permute.xlu0 %1105
        %1107 = vset.pattern.permute.xlu0 0
        %1108 = vperm.xlu0 %1107, %v1087
        %v1109 = vpop.permute.xlu0 %1108
        %1110 = vset.pattern.permute.xlu0 0
        %1111 = vperm.xlu0 %1110, %v1088
        %v1112 = vpop.permute.xlu0 %1111
        %1113 = vset.pattern.permute.xlu0 0
        %1114 = vperm.xlu0 %1113, %v1089
        %v1115 = vpop.permute.xlu0 %1114
        %1116 = vset.pattern.permute.xlu0 0
        %1117 = vperm.xlu0 %1116, %v1090
        %v1118 = vpop.permute.xlu0 %1117
        %1119 = vset.pattern.permute.xlu0 0
        %1120 = vperm.xlu0 %1119, %v1091
        %v1121 = vpop.permute.xlu0 %1120
        %1122 = vset.pattern.permute.xlu0 0
        %1123 = vperm.xlu0 %1122, %v1092
        %v1124 = vpop.permute.xlu0 %1123
        %1125 = vset.pattern.permute.xlu0 0
        %1126 = vperm.xlu0 %1125, %v1093
        %v1127 = vpop.permute.xlu0 %1126
        %1128 = vset.pattern.permute.xlu0 0
        %1129 = vperm.xlu0 %1128, %v1094
        %v1130 = vpop.permute.xlu0 %1129
        %1131 = vset.pattern.permute.xlu0 0
        %1132 = vperm.xlu0 %1131, %v1095
        %v1133 = vpop.permute.xlu0 %1132
        %1134 = vset.pattern.permute.xlu0 0
        %1135 = vperm.xlu0 %1134, %v1096
        %v1136 = vpop.permute.xlu0 %1135
        %1137 = vset.pattern.permute.xlu0 0
        %1138 = vperm.xlu0 %1137, %v1097
        %v1139 = vpop.permute.xlu0 %1138
        %1140 = vset.pattern.permute.xlu0 0
        %1141 = vperm.xlu0 %1140, %v1098
        %v1142 = vpop.permute.xlu0 %1141
        %1143 = vset.pattern.permute.xlu0 0
        %1144 = vperm.xlu0 %1143, %v1099
        %v1145 = vpop.permute.xlu0 %1144
        %1146 = vset.pattern.permute.xlu0 0
        %1147 = vperm.xlu0 %1146, %v1100
        %v1148 = vpop.permute.xlu0 %1147
        %vm1149 = vcmp.eq.s32.totalorder %v1103, %v967
        %vm1150 = vcmp.eq.s32.totalorder %v1106, %v967
        %vm1151 = vcmp.eq.s32.totalorder %v1109, %v967
        %vm1152 = vcmp.eq.s32.totalorder %v1112, %v967
        %vm1153 = vcmp.eq.s32.totalorder %v1115, %v967
        %vm1154 = vcmp.eq.s32.totalorder %v1118, %v967
        %vm1155 = vcmp.eq.s32.totalorder %v1121, %v967
        %vm1156 = vcmp.eq.s32.totalorder %v1124, %v967
        %vm1157 = vcmp.eq.s32.totalorder %v1127, %v967
        %vm1158 = vcmp.eq.s32.totalorder %v1130, %v967
        %vm1159 = vcmp.eq.s32.totalorder %v1133, %v967
        %vm1160 = vcmp.eq.s32.totalorder %v1136, %v967
        %vm1161 = vcmp.eq.s32.totalorder %v1139, %v967
        %vm1162 = vcmp.eq.s32.totalorder %v1142, %v967
        %vm1163 = vcmp.eq.s32.totalorder %v1145, %v967
        %vm1164 = vcmp.eq.s32.totalorder %v1148, %v967
        %v1165 = vsel %vm1149, 1, 0
        %v1166 = vsel %vm1150, 1, 0
        %v1167 = vsel %vm1151, 1, 0
        %v1168 = vsel %vm1152, 1, 0
        %v1169 = vsel %vm1153, 1, 0
        %v1170 = vsel %vm1154, 1, 0
        %v1171 = vsel %vm1155, 1, 0
        %v1172 = vsel %vm1156, 1, 0
        %v1173 = vsel %vm1157, 1, 0
        %v1174 = vsel %vm1158, 1, 0
        %v1175 = vsel %vm1159, 1, 0
        %v1176 = vsel %vm1160, 1, 0
        %v1177 = vsel %vm1161, 1, 0
        %v1178 = vsel %vm1162, 1, 0
        %v1179 = vsel %vm1163, 1, 0
        %v1180 = vsel %vm1164, 1, 0
        %v1181 = vcvt.s32.f32 %v1165
        %v1182 = vcvt.s32.f32 %v1166
        %v1183 = vcvt.s32.f32 %v1167
        %v1184 = vcvt.s32.f32 %v1168
        %v1185 = vcvt.s32.f32 %v1169
        %v1186 = vcvt.s32.f32 %v1170
        %v1187 = vcvt.s32.f32 %v1171
        %v1188 = vcvt.s32.f32 %v1172
        %v1189 = vcvt.s32.f32 %v1173
        %v1190 = vcvt.s32.f32 %v1174
        %v1191 = vcvt.s32.f32 %v1175
        %v1192 = vcvt.s32.f32 %v1176
        %v1193 = vcvt.s32.f32 %v1177
        %v1194 = vcvt.s32.f32 %v1178
        %v1195 = vcvt.s32.f32 %v1179
        %v1196 = vcvt.s32.f32 %v1180
        %v1197 = vld [vmem:[%s588] sm:$0x1]
        %v1198 = vlaneseq
        %v1199 = vshrl.u32 %v1198, 7
        %v1200 = vsub.s32 0, %v1199
        %v1201 = vrot.slane %v1197, %v1200
        %vm1202 = vcmp.eq.s32.totalorder %v1201, %v969
        %vm1203 = vcmp.eq.s32.totalorder %v1201, %v970
        %vm1204 = vcmp.eq.s32.totalorder %v1201, %v971
        %vm1205 = vcmp.eq.s32.totalorder %v1201, %v972
        %v1206 = vsel %vm1202, 1, 0
        %v1207 = vsel %vm1203, 1, 0
        %v1208 = vsel %vm1204, 1, 0
        %v1209 = vsel %vm1205, 1, 0
        %v1210 = vcvt.s32.f32 %v1206
        %v1211 = vcvt.s32.f32 %v1207
        %v1212 = vcvt.s32.f32 %v1208
        %v1213 = vcvt.s32.f32 %v1209
        %v1214 = vld [vmem:[#allocation2] sm:$0xff]
        %v1215 = vld [vmem:[#allocation2 + $0x10] sm:$0xff]
        %v1216 = vld [vmem:[#allocation2 + $0x20] sm:$0xff]
        %v1217 = vld [vmem:[#allocation2 + $0x30] sm:$0x7f]
        %vm1218 = vcmask 252928
        %v1220 = vsel %vm1218, %v1069, 0
        %v1223 = vsel %vm1218, %v1070, 0
        %v1226 = vsel %vm1218, %v1071, 0
        %v1229 = vsel %vm1218, %v1072, 0
        %v1232 = vsel %vm1218, %v1073, 0
        %v1235 = vsel %vm1218, %v1074, 0
        %v1238 = vsel %vm1218, %v1075, 0
        %v1241 = vsel %vm1218, %v1076, 0
        %v1244 = vsel %vm1218, %v1077, 0
        %v1247 = vsel %vm1218, %v1078, 0
        %v1250 = vsel %vm1218, %v1079, 0
        %v1253 = vsel %vm1218, %v1080, 0
        %v1256 = vsel %vm1218, %v1081, 0
        %v1259 = vsel %vm1218, %v1082, 0
        %v1262 = vsel %vm1218, %v1083, 0
        %v1265 = vsel %vm1218, %v1084, 0
        %vm1267 = vcmask 1046528
        %v1269 = vsel %vm1267, %v1217, 0
        %1271 = vmatprep.subr.mxu0 0.0
        %1272 = vmatpush1.msra.mxu0 0.0
        %1273 = vmatprep.subr.mxu0 0.0
        %1274 = vmatpush1.msra.mxu0 0.0
        %1275 = vmatprep.subr.mxu0 0.0
        %1276 = vmatpush1.msra.mxu0 0.0
        %1277 = vmatprep.subr.mxu0 0.0
        %1278 = vmatpush1.msra.mxu0 0.0
        %1279 = vmatprep.subr.mxu0 0.0
        %1280 = vmatpush1.msra.mxu0 0.0
        %1281 = vmatprep.subr.mxu0 0.0
        %1282 = vmatpush1.msra.mxu0 0.0
        %1283 = vmatprep.subr.mxu0 0.0
        %1284 = vmatpush1.msra.mxu0 0.0
        %1285 = vmatprep.subr.mxu0 0.0
        %1286 = vmatpush1.msra.mxu0 0.0
        %1287 = vmatprep.subr.mxu0 0.0
        %1288 = vmatpush1.msra.mxu0 0.0
        %1289 = vmatprep.subr.mxu0 0.0
        %1290 = vmatpush1.msra.mxu0 0.0
        %1291 = vmatprep.subr.mxu0 0.0
        %1292 = vmatpush1.msra.mxu0 0.0
        %1293 = vmatprep.subr.mxu0 0.0
        %1294 = vmatpush1.msra.mxu0 0.0
        %1295 = vmatprep.subr.mxu0 0.0
        %1296 = vmatpush1.msra.mxu0 %v1269
        %1297 = vmatprep.subr.mxu0 0.0
        %1298 = vmatpush1.msra.mxu0 %v1216
        %1299 = vmatprep.subr.mxu0 0.0
        %1300 = vmatpush1.msra.mxu0 %v1215
        %1301 = vmatprep.subr.mxu0 0.0
        %1302 = vmatpush1.msra.mxu0 %v1214
        %1303 = vmatprep.subr.mxu0 0.0
        %1304 = vmatpush2.msra.mxu0 0.0
        %1305 = vmatprep.subr.mxu0 0.0
        %1306 = vmatpush2.msra.mxu0 0.0
        %1307 = vmatprep.subr.mxu0 0.0
        %1308 = vmatpush2.msra.mxu0 0.0
        %1309 = vmatprep.subr.mxu0 0.0
        %1310 = vmatpush2.msra.mxu0 0.0
        %1311 = vmatprep.subr.mxu0 0.0
        %1312 = vmatpush2.msra.mxu0 0.0
        %1313 = vmatprep.subr.mxu0 0.0
        %1314 = vmatpush2.msra.mxu0 0.0
        %1315 = vmatprep.subr.mxu0 0.0
        %1316 = vmatpush2.msra.mxu0 0.0
        %1317 = vmatprep.subr.mxu0 0.0
        %1318 = vmatpush2.msra.mxu0 0.0
        %1319 = vmatprep.subr.mxu0 0.0
        %1320 = vmatpush2.msra.mxu0 0.0
        %1321 = vmatprep.subr.mxu0 0.0
        %1322 = vmatpush2.msra.mxu0 0.0
        %1323 = vmatprep.subr.mxu0 0.0
        %1324 = vmatpush2.msra.mxu0 0.0
        %1325 = vmatprep.subr.mxu0 0.0
        %1326 = vmatpush2.msra.mxu0 0.0
        %1327 = vmatprep.subr.mxu0 0.0
        %1328 = vmatpush2.msra.mxu0 0.0
        %1329 = vmatprep.subr.mxu0 0.0
        %1330 = vmatpush2.msra.mxu0 0.0
        %1331 = vmatprep.subr.mxu0 0.0
        %1332 = vmatpush2.msra.mxu0 0.0
        %1333 = vmatprep.subr.mxu0 0.0
        %1334 = vmatpush2.msra.mxu0 0.0
        %1335 = vmatprep.mubr.f32.mxu0 0.0
        %1336 = vmatmul.mubr.f32.gmra.mxu0 %v1220
        %v1337 = vpop.f32.mrf.mxu0
        %v1338 = vadd.f32 0.0, %v1337
        %v1339 = vpop.f32.mrf.mxu0
        %1340 = vmatprep.mubr.f32.mxu0 0.0
        %1341 = vmatmul.mubr.f32.gmra.mxu0 %v1223
        %v1342 = vpop.f32.mrf.mxu0
        %v1343 = vadd.f32 0.0, %v1342
        %v1344 = vpop.f32.mrf.mxu0
        %1345 = vmatprep.mubr.f32.mxu0 0.0
        %1346 = vmatmul.mubr.f32.gmra.mxu0 %v1226
        %v1347 = vpop.f32.mrf.mxu0
        %v1348 = vadd.f32 0.0, %v1347
        %v1349 = vpop.f32.mrf.mxu0
        %1350 = vmatprep.mubr.f32.mxu0 0.0
        %1351 = vmatmul.mubr.f32.gmra.mxu0 %v1229
        %v1352 = vpop.f32.mrf.mxu0
        %v1353 = vadd.f32 0.0, %v1352
        %v1354 = vpop.f32.mrf.mxu0
        %1355 = vmatprep.mubr.f32.mxu0 0.0
        %1356 = vmatmul.mubr.f32.gmra.mxu0 %v1232
        %v1357 = vpop.f32.mrf.mxu0
        %v1358 = vadd.f32 0.0, %v1357
        %v1359 = vpop.f32.mrf.mxu0
        %1360 = vmatprep.mubr.f32.mxu0 0.0
        %1361 = vmatmul.mubr.f32.gmra.mxu0 %v1235
        %v1362 = vpop.f32.mrf.mxu0
        %v1363 = vadd.f32 0.0, %v1362
        %v1364 = vpop.f32.mrf.mxu0
        %1365 = vmatprep.mubr.f32.mxu0 0.0
        %1366 = vmatmul.mubr.f32.gmra.mxu0 %v1238
        %v1367 = vpop.f32.mrf.mxu0
        %v1368 = vadd.f32 0.0, %v1367
        %v1369 = vpop.f32.mrf.mxu0
        %1370 = vmatprep.mubr.f32.mxu0 0.0
        %1371 = vmatmul.mubr.f32.gmra.mxu0 %v1241
        %v1372 = vpop.f32.mrf.mxu0
        %v1373 = vadd.f32 0.0, %v1372
        %v1374 = vpop.f32.mrf.mxu0
        %1375 = vmatprep.mubr.f32.mxu0 0.0
        %1376 = vmatmul.mubr.f32.gmra.mxu0 %v1244
        %v1377 = vpop.f32.mrf.mxu0
        %v1378 = vadd.f32 0.0, %v1377
        %v1379 = vpop.f32.mrf.mxu0
        %1380 = vmatprep.mubr.f32.mxu0 0.0
        %1381 = vmatmul.mubr.f32.gmra.mxu0 %v1247
        %v1382 = vpop.f32.mrf.mxu0
        %v1383 = vadd.f32 0.0, %v1382
        %v1384 = vpop.f32.mrf.mxu0
        %1385 = vmatprep.mubr.f32.mxu0 0.0
        %1386 = vmatmul.mubr.f32.gmra.mxu0 %v1250
        %v1387 = vpop.f32.mrf.mxu0
        %v1388 = vadd.f32 0.0, %v1387
        %v1389 = vpop.f32.mrf.mxu0
        %1390 = vmatprep.mubr.f32.mxu0 0.0
        %1391 = vmatmul.mubr.f32.gmra.mxu0 %v1253
        %v1392 = vpop.f32.mrf.mxu0
        %v1393 = vadd.f32 0.0, %v1392
        %v1394 = vpop.f32.mrf.mxu0
        %1395 = vmatprep.mubr.f32.mxu0 0.0
        %1396 = vmatmul.mubr.f32.gmra.mxu0 %v1256
        %v1397 = vpop.f32.mrf.mxu0
        %v1398 = vadd.f32 0.0, %v1397
        %v1399 = vpop.f32.mrf.mxu0
        %1400 = vmatprep.mubr.f32.mxu0 0.0
        %1401 = vmatmul.mubr.f32.gmra.mxu0 %v1259
        %v1402 = vpop.f32.mrf.mxu0
        %v1403 = vadd.f32 0.0, %v1402
        %v1404 = vpop.f32.mrf.mxu0
        %1405 = vmatprep.mubr.f32.mxu0 0.0
        %1406 = vmatmul.mubr.f32.gmra.mxu0 %v1262
        %v1407 = vpop.f32.mrf.mxu0
        %v1408 = vadd.f32 0.0, %v1407
        %v1409 = vpop.f32.mrf.mxu0
        %1410 = vmatprep.mubr.f32.mxu0 0.0
        %1411 = vmatmul.mubr.f32.gmra.mxu0 %v1265
        %v1412 = vpop.f32.mrf.mxu0
        %v1413 = vadd.f32 0.0, %v1412
        %v1414 = vpop.f32.mrf.mxu0
        %1415 = vdwg.mxu0
        %v1416 = vld [vmem:[#allocation2 + $0x8] sm:$0xff]
        %v1417 = vld [vmem:[#allocation2 + $0x18] sm:$0xff]
        %v1418 = vld [vmem:[#allocation2 + $0x28] sm:$0xff]
        %v1419 = vld [vmem:[#allocation2 + $0x38] sm:$0x7f]
        %v1421 = vsel %vm1218, %v1181, 0
        %v1424 = vsel %vm1218, %v1182, 0
        %v1427 = vsel %vm1218, %v1183, 0
        %v1430 = vsel %vm1218, %v1184, 0
        %v1433 = vsel %vm1218, %v1185, 0
        %v1436 = vsel %vm1218, %v1186, 0
        %v1439 = vsel %vm1218, %v1187, 0
        %v1442 = vsel %vm1218, %v1188, 0
        %v1445 = vsel %vm1218, %v1189, 0
        %v1448 = vsel %vm1218, %v1190, 0
        %v1451 = vsel %vm1218, %v1191, 0
        %v1454 = vsel %vm1218, %v1192, 0
        %v1457 = vsel %vm1218, %v1193, 0
        %v1460 = vsel %vm1218, %v1194, 0
        %v1463 = vsel %vm1218, %v1195, 0
        %v1466 = vsel %vm1218, %v1196, 0
        %v1469 = vsel %vm1267, %v1419, 0
        %1471 = vmatprep.subr.mxu0 0.0
        %1472 = vmatpush1.msra.mxu0 0.0
        %1473 = vmatprep.subr.mxu0 0.0
        %1474 = vmatpush1.msra.mxu0 0.0
        %1475 = vmatprep.subr.mxu0 0.0
        %1476 = vmatpush1.msra.mxu0 0.0
        %1477 = vmatprep.subr.mxu0 0.0
        %1478 = vmatpush1.msra.mxu0 0.0
        %1479 = vmatprep.subr.mxu0 0.0
        %1480 = vmatpush1.msra.mxu0 0.0
        %1481 = vmatprep.subr.mxu0 0.0
        %1482 = vmatpush1.msra.mxu0 0.0
        %1483 = vmatprep.subr.mxu0 0.0
        %1484 = vmatpush1.msra.mxu0 0.0
        %1485 = vmatprep.subr.mxu0 0.0
        %1486 = vmatpush1.msra.mxu0 0.0
        %1487 = vmatprep.subr.mxu0 0.0
        %1488 = vmatpush1.msra.mxu0 0.0
        %1489 = vmatprep.subr.mxu0 0.0
        %1490 = vmatpush1.msra.mxu0 0.0
        %1491 = vmatprep.subr.mxu0 0.0
        %1492 = vmatpush1.msra.mxu0 0.0
        %1493 = vmatprep.subr.mxu0 0.0
        %1494 = vmatpush1.msra.mxu0 0.0
        %1495 = vmatprep.subr.mxu0 0.0
        %1496 = vmatpush1.msra.mxu0 %v1469
        %1497 = vmatprep.subr.mxu0 0.0
        %1498 = vmatpush1.msra.mxu0 %v1418
        %1499 = vmatprep.subr.mxu0 0.0
        %1500 = vmatpush1.msra.mxu0 %v1417
        %1501 = vmatprep.subr.mxu0 0.0
        %1502 = vmatpush1.msra.mxu0 %v1416
        %1503 = vmatprep.subr.mxu0 0.0
        %1504 = vmatpush2.msra.mxu0 0.0
        %1505 = vmatprep.subr.mxu0 0.0
        %1506 = vmatpush2.msra.mxu0 0.0
        %1507 = vmatprep.subr.mxu0 0.0
        %1508 = vmatpush2.msra.mxu0 0.0
        %1509 = vmatprep.subr.mxu0 0.0
        %1510 = vmatpush2.msra.mxu0 0.0
        %1511 = vmatprep.subr.mxu0 0.0
        %1512 = vmatpush2.msra.mxu0 0.0
        %1513 = vmatprep.subr.mxu0 0.0
        %1514 = vmatpush2.msra.mxu0 0.0
        %1515 = vmatprep.subr.mxu0 0.0
        %1516 = vmatpush2.msra.mxu0 0.0
        %1517 = vmatprep.subr.mxu0 0.0
        %1518 = vmatpush2.msra.mxu0 0.0
        %1519 = vmatprep.subr.mxu0 0.0
        %1520 = vmatpush2.msra.mxu0 0.0
        %1521 = vmatprep.subr.mxu0 0.0
        %1522 = vmatpush2.msra.mxu0 0.0
        %1523 = vmatprep.subr.mxu0 0.0
        %1524 = vmatpush2.msra.mxu0 0.0
        %1525 = vmatprep.subr.mxu0 0.0
        %1526 = vmatpush2.msra.mxu0 0.0
        %1527 = vmatprep.subr.mxu0 0.0
        %1528 = vmatpush2.msra.mxu0 0.0
        %1529 = vmatprep.subr.mxu0 0.0
        %1530 = vmatpush2.msra.mxu0 0.0
        %1531 = vmatprep.subr.mxu0 0.0
        %1532 = vmatpush2.msra.mxu0 0.0
        %1533 = vmatprep.subr.mxu0 0.0
        %1534 = vmatpush2.msra.mxu0 0.0
        %1535 = vmatprep.mubr.f32.mxu0 0.0
        %1536 = vmatmul.mubr.f32.gmra.mxu0 %v1421
        %v1537 = vpop.f32.mrf.mxu0
        %v1538 = vadd.f32 0.0, %v1537
        %v1539 = vpop.f32.mrf.mxu0
        %1540 = vmatprep.mubr.f32.mxu0 0.0
        %1541 = vmatmul.mubr.f32.gmra.mxu0 %v1424
        %v1542 = vpop.f32.mrf.mxu0
        %v1543 = vadd.f32 0.0, %v1542
        %v1544 = vpop.f32.mrf.mxu0
        %1545 = vmatprep.mubr.f32.mxu0 0.0
        %1546 = vmatmul.mubr.f32.gmra.mxu0 %v1427
        %v1547 = vpop.f32.mrf.mxu0
        %v1548 = vadd.f32 0.0, %v1547
        %v1549 = vpop.f32.mrf.mxu0
        %1550 = vmatprep.mubr.f32.mxu0 0.0
        %1551 = vmatmul.mubr.f32.gmra.mxu0 %v1430
        %v1552 = vpop.f32.mrf.mxu0
        %v1553 = vadd.f32 0.0, %v1552
        %v1554 = vpop.f32.mrf.mxu0
        %1555 = vmatprep.mubr.f32.mxu0 0.0
        %1556 = vmatmul.mubr.f32.gmra.mxu0 %v1433
        %v1557 = vpop.f32.mrf.mxu0
        %v1558 = vadd.f32 0.0, %v1557
        %v1559 = vpop.f32.mrf.mxu0
        %1560 = vmatprep.mubr.f32.mxu0 0.0
        %1561 = vmatmul.mubr.f32.gmra.mxu0 %v1436
        %v1562 = vpop.f32.mrf.mxu0
        %v1563 = vadd.f32 0.0, %v1562
        %v1564 = vpop.f32.mrf.mxu0
        %1565 = vmatprep.mubr.f32.mxu0 0.0
        %1566 = vmatmul.mubr.f32.gmra.mxu0 %v1439
        %v1567 = vpop.f32.mrf.mxu0
        %v1568 = vadd.f32 0.0, %v1567
        %v1569 = vpop.f32.mrf.mxu0
        %1570 = vmatprep.mubr.f32.mxu0 0.0
        %1571 = vmatmul.mubr.f32.gmra.mxu0 %v1442
        %v1572 = vpop.f32.mrf.mxu0
        %v1573 = vadd.f32 0.0, %v1572
        %v1574 = vpop.f32.mrf.mxu0
        %1575 = vmatprep.mubr.f32.mxu0 0.0
        %1576 = vmatmul.mubr.f32.gmra.mxu0 %v1445
        %v1577 = vpop.f32.mrf.mxu0
        %v1578 = vadd.f32 0.0, %v1577
        %v1579 = vpop.f32.mrf.mxu0
        %1580 = vmatprep.mubr.f32.mxu0 0.0
        %1581 = vmatmul.mubr.f32.gmra.mxu0 %v1448
        %v1582 = vpop.f32.mrf.mxu0
        %v1583 = vadd.f32 0.0, %v1582
        %v1584 = vpop.f32.mrf.mxu0
        %1585 = vmatprep.mubr.f32.mxu0 0.0
        %1586 = vmatmul.mubr.f32.gmra.mxu0 %v1451
        %v1587 = vpop.f32.mrf.mxu0
        %v1588 = vadd.f32 0.0, %v1587
        %v1589 = vpop.f32.mrf.mxu0
        %1590 = vmatprep.mubr.f32.mxu0 0.0
        %1591 = vmatmul.mubr.f32.gmra.mxu0 %v1454
        %v1592 = vpop.f32.mrf.mxu0
        %v1593 = vadd.f32 0.0, %v1592
        %v1594 = vpop.f32.mrf.mxu0
        %1595 = vmatprep.mubr.f32.mxu0 0.0
        %1596 = vmatmul.mubr.f32.gmra.mxu0 %v1457
        %v1597 = vpop.f32.mrf.mxu0
        %v1598 = vadd.f32 0.0, %v1597
        %v1599 = vpop.f32.mrf.mxu0
        %1600 = vmatprep.mubr.f32.mxu0 0.0
        %1601 = vmatmul.mubr.f32.gmra.mxu0 %v1460
        %v1602 = vpop.f32.mrf.mxu0
        %v1603 = vadd.f32 0.0, %v1602
        %v1604 = vpop.f32.mrf.mxu0
        %1605 = vmatprep.mubr.f32.mxu0 0.0
        %1606 = vmatmul.mubr.f32.gmra.mxu0 %v1463
        %v1607 = vpop.f32.mrf.mxu0
        %v1608 = vadd.f32 0.0, %v1607
        %v1609 = vpop.f32.mrf.mxu0
        %1610 = vmatprep.mubr.f32.mxu0 0.0
        %1611 = vmatmul.mubr.f32.gmra.mxu0 %v1466
        %v1612 = vpop.f32.mrf.mxu0
        %v1613 = vadd.f32 0.0, %v1612
        %v1614 = vpop.f32.mrf.mxu0
        %1615 = vdwg.mxu0
        %1632 = vrot.lane.b32.xlu0 %v888, 64
        %v1633 = vpop.permute.xlu0 %1632
        %1634 = vrot.lane.b32.xlu0 %v893, 64
        %v1635 = vpop.permute.xlu0 %1634
        %1636 = vrot.lane.b32.xlu0 %v898, 64
        %v1637 = vpop.permute.xlu0 %1636
        %1638 = vrot.lane.b32.xlu0 %v903, 64
        %v1639 = vpop.permute.xlu0 %1638
        %1640 = vrot.lane.b32.xlu0 %v908, 64
        %v1641 = vpop.permute.xlu0 %1640
        %1642 = vrot.lane.b32.xlu0 %v913, 64
        %v1643 = vpop.permute.xlu0 %1642
        %1644 = vrot.lane.b32.xlu0 %v918, 64
        %v1645 = vpop.permute.xlu0 %1644
        %1646 = vrot.lane.b32.xlu0 %v923, 64
        %v1647 = vpop.permute.xlu0 %1646
        %1648 = vrot.lane.b32.xlu0 %v928, 64
        %v1649 = vpop.permute.xlu0 %1648
        %1650 = vrot.lane.b32.xlu0 %v933, 64
        %v1651 = vpop.permute.xlu0 %1650
        %1652 = vrot.lane.b32.xlu0 %v938, 64
        %v1653 = vpop.permute.xlu0 %1652
        %1654 = vrot.lane.b32.xlu0 %v943, 64
        %v1655 = vpop.permute.xlu0 %1654
        %1656 = vrot.lane.b32.xlu0 %v948, 64
        %v1657 = vpop.permute.xlu0 %1656
        %1658 = vrot.lane.b32.xlu0 %v953, 64
        %v1659 = vpop.permute.xlu0 %1658
        %1660 = vrot.lane.b32.xlu0 %v958, 64
        %v1661 = vpop.permute.xlu0 %1660
        %1662 = vrot.lane.b32.xlu0 %v963, 64
        %v1663 = vpop.permute.xlu0 %1662
        %v1680 = vadd.f32 %v1338, %v1633
        %v1681 = vadd.f32 %v1343, %v1635
        %v1682 = vadd.f32 %v1348, %v1637
        %v1683 = vadd.f32 %v1353, %v1639
        %v1684 = vadd.f32 %v1358, %v1641
        %v1685 = vadd.f32 %v1363, %v1643
        %v1686 = vadd.f32 %v1368, %v1645
        %v1687 = vadd.f32 %v1373, %v1647
        %v1688 = vadd.f32 %v1378, %v1649
        %v1689 = vadd.f32 %v1383, %v1651
        %v1690 = vadd.f32 %v1388, %v1653
        %v1691 = vadd.f32 %v1393, %v1655
        %v1692 = vadd.f32 %v1398, %v1657
        %v1693 = vadd.f32 %v1403, %v1659
        %v1694 = vadd.f32 %v1408, %v1661
        %v1695 = vadd.f32 %v1413, %v1663
        %1712 = vrot.lane.b32.xlu0 %v1538, 64
        %v1713 = vpop.permute.xlu0 %1712
        %1714 = vrot.lane.b32.xlu0 %v1543, 64
        %v1715 = vpop.permute.xlu0 %1714
        %1716 = vrot.lane.b32.xlu0 %v1548, 64
        %v1717 = vpop.permute.xlu0 %1716
        %1718 = vrot.lane.b32.xlu0 %v1553, 64
        %v1719 = vpop.permute.xlu0 %1718
        %1720 = vrot.lane.b32.xlu0 %v1558, 64
        %v1721 = vpop.permute.xlu0 %1720
        %1722 = vrot.lane.b32.xlu0 %v1563, 64
        %v1723 = vpop.permute.xlu0 %1722
        %1724 = vrot.lane.b32.xlu0 %v1568, 64
        %v1725 = vpop.permute.xlu0 %1724
        %1726 = vrot.lane.b32.xlu0 %v1573, 64
        %v1727 = vpop.permute.xlu0 %1726
        %1728 = vrot.lane.b32.xlu0 %v1578, 64
        %v1729 = vpop.permute.xlu0 %1728
        %1730 = vrot.lane.b32.xlu0 %v1583, 64
        %v1731 = vpop.permute.xlu0 %1730
        %1732 = vrot.lane.b32.xlu0 %v1588, 64
        %v1733 = vpop.permute.xlu0 %1732
        %1734 = vrot.lane.b32.xlu0 %v1593, 64
        %v1735 = vpop.permute.xlu0 %1734
        %1736 = vrot.lane.b32.xlu0 %v1598, 64
        %v1737 = vpop.permute.xlu0 %1736
        %1738 = vrot.lane.b32.xlu0 %v1603, 64
        %v1739 = vpop.permute.xlu0 %1738
        %1740 = vrot.lane.b32.xlu0 %v1608, 64
        %v1741 = vpop.permute.xlu0 %1740
        %1742 = vrot.lane.b32.xlu0 %v1613, 64
        %v1743 = vpop.permute.xlu0 %1742
        %v1760 = vadd.f32 %v1680, %v1713
        %v1761 = vadd.f32 %v1681, %v1715
        %v1762 = vadd.f32 %v1682, %v1717
        %v1763 = vadd.f32 %v1683, %v1719
        %v1764 = vadd.f32 %v1684, %v1721
        %v1765 = vadd.f32 %v1685, %v1723
        %v1766 = vadd.f32 %v1686, %v1725
        %v1767 = vadd.f32 %v1687, %v1727
        %v1768 = vadd.f32 %v1688, %v1729
        %v1769 = vadd.f32 %v1689, %v1731
        %v1770 = vadd.f32 %v1690, %v1733
        %v1771 = vadd.f32 %v1691, %v1735
        %v1772 = vadd.f32 %v1692, %v1737
        %v1773 = vadd.f32 %v1693, %v1739
        %v1774 = vadd.f32 %v1694, %v1741
        %v1775 = vadd.f32 %v1695, %v1743
        %v1776 = vxor.u32 %v1760, 2147483648
        %v1777 = vxor.u32 %v1761, 2147483648
        %v1778 = vxor.u32 %v1762, 2147483648
        %v1779 = vxor.u32 %v1763, 2147483648
        %v1780 = vxor.u32 %v1764, 2147483648
        %v1781 = vxor.u32 %v1765, 2147483648
        %v1782 = vxor.u32 %v1766, 2147483648
        %v1783 = vxor.u32 %v1767, 2147483648
        %v1784 = vxor.u32 %v1768, 2147483648
        %v1785 = vxor.u32 %v1769, 2147483648
        %v1786 = vxor.u32 %v1770, 2147483648
        %v1787 = vxor.u32 %v1771, 2147483648
        %v1788 = vxor.u32 %v1772, 2147483648
        %v1789 = vxor.u32 %v1773, 2147483648
        %v1790 = vxor.u32 %v1774, 2147483648
        %v1791 = vxor.u32 %v1775, 2147483648
        %v1792 = vmul.f32 %v1776, 1.442695
        %v1793 = vpow.pop %v1792
        %v1794 = vmul.f32 %v1777, 1.442695
        %v1795 = vpow.pop %v1794
        %v1796 = vmul.f32 %v1778, 1.442695
        %v1797 = vpow.pop %v1796
        %v1798 = vmul.f32 %v1779, 1.442695
        %v1799 = vpow.pop %v1798
        %v1800 = vmul.f32 %v1780, 1.442695
        %v1801 = vpow.pop %v1800
        %v1802 = vmul.f32 %v1781, 1.442695
        %v1803 = vpow.pop %v1802
        %v1804 = vmul.f32 %v1782, 1.442695
        %v1805 = vpow.pop %v1804
        %v1806 = vmul.f32 %v1783, 1.442695
        %v1807 = vpow.pop %v1806
        %v1808 = vmul.f32 %v1784, 1.442695
        %v1809 = vpow.pop %v1808
        %v1810 = vmul.f32 %v1785, 1.442695
        %v1811 = vpow.pop %v1810
        %v1812 = vmul.f32 %v1786, 1.442695
        %v1813 = vpow.pop %v1812
        %v1814 = vmul.f32 %v1787, 1.442695
        %v1815 = vpow.pop %v1814
        %v1816 = vmul.f32 %v1788, 1.442695
        %v1817 = vpow.pop %v1816
        %v1818 = vmul.f32 %v1789, 1.442695
        %v1819 = vpow.pop %v1818
        %v1820 = vmul.f32 %v1790, 1.442695
        %v1821 = vpow.pop %v1820
        %v1822 = vmul.f32 %v1791, 1.442695
        %v1823 = vpow.pop %v1822
        %v1824 = vadd.f32 %v1793, 1.0
        %v1825 = vadd.f32 %v1795, 1.0
        %v1826 = vadd.f32 %v1797, 1.0
        %v1827 = vadd.f32 %v1799, 1.0
        %v1828 = vadd.f32 %v1801, 1.0
        %v1829 = vadd.f32 %v1803, 1.0
        %v1830 = vadd.f32 %v1805, 1.0
        %v1831 = vadd.f32 %v1807, 1.0
        %v1832 = vadd.f32 %v1809, 1.0
        %v1833 = vadd.f32 %v1811, 1.0
        %v1834 = vadd.f32 %v1813, 1.0
        %v1835 = vadd.f32 %v1815, 1.0
        %v1836 = vadd.f32 %v1817, 1.0
        %v1837 = vadd.f32 %v1819, 1.0
        %v1838 = vadd.f32 %v1821, 1.0
        %v1839 = vadd.f32 %v1823, 1.0
        %v1840 = vrcp.pop %v1824
        %v1841 = vmul.f32 1.0, %v1840
        %v1842 = vrcp.pop %v1825
        %v1843 = vmul.f32 1.0, %v1842
        %v1844 = vrcp.pop %v1826
        %v1845 = vmul.f32 1.0, %v1844
        %v1846 = vrcp.pop %v1827
        %v1847 = vmul.f32 1.0, %v1846
        %v1848 = vrcp.pop %v1828
        %v1849 = vmul.f32 1.0, %v1848
        %v1850 = vrcp.pop %v1829
        %v1851 = vmul.f32 1.0, %v1850
        %v1852 = vrcp.pop %v1830
        %v1853 = vmul.f32 1.0, %v1852
        %v1854 = vrcp.pop %v1831
        %v1855 = vmul.f32 1.0, %v1854
        %v1856 = vrcp.pop %v1832
        %v1857 = vmul.f32 1.0, %v1856
        %v1858 = vrcp.pop %v1833
        %v1859 = vmul.f32 1.0, %v1858
        %v1860 = vrcp.pop %v1834
        %v1861 = vmul.f32 1.0, %v1860
        %v1862 = vrcp.pop %v1835
        %v1863 = vmul.f32 1.0, %v1862
        %v1864 = vrcp.pop %v1836
        %v1865 = vmul.f32 1.0, %v1864
        %v1866 = vrcp.pop %v1837
        %v1867 = vmul.f32 1.0, %v1866
        %v1868 = vrcp.pop %v1838
        %v1869 = vmul.f32 1.0, %v1868
        %v1870 = vrcp.pop %v1839
        %v1871 = vmul.f32 1.0, %v1870
        %1888 = vrot.lane.b32.xlu0 %v1338, 64
        %v1889 = vpop.permute.xlu0 %1888
        %1890 = vrot.lane.b32.xlu0 %v1343, 64
        %v1891 = vpop.permute.xlu0 %1890
        %1892 = vrot.lane.b32.xlu0 %v1348, 64
        %v1893 = vpop.permute.xlu0 %1892
        %1894 = vrot.lane.b32.xlu0 %v1353, 64
        %v1895 = vpop.permute.xlu0 %1894
        %1896 = vrot.lane.b32.xlu0 %v1358, 64
        %v1897 = vpop.permute.xlu0 %1896
        %1898 = vrot.lane.b32.xlu0 %v1363, 64
        %v1899 = vpop.permute.xlu0 %1898
        %1900 = vrot.lane.b32.xlu0 %v1368, 64
        %v1901 = vpop.permute.xlu0 %1900
        %1902 = vrot.lane.b32.xlu0 %v1373, 64
        %v1903 = vpop.permute.xlu0 %1902
        %1904 = vrot.lane.b32.xlu0 %v1378, 64
        %v1905 = vpop.permute.xlu0 %1904
        %1906 = vrot.lane.b32.xlu0 %v1383, 64
        %v1907 = vpop.permute.xlu0 %1906
        %1908 = vrot.lane.b32.xlu0 %v1388, 64
        %v1909 = vpop.permute.xlu0 %1908
        %1910 = vrot.lane.b32.xlu0 %v1393, 64
        %v1911 = vpop.permute.xlu0 %1910
        %1912 = vrot.lane.b32.xlu0 %v1398, 64
        %v1913 = vpop.permute.xlu0 %1912
        %1914 = vrot.lane.b32.xlu0 %v1403, 64
        %v1915 = vpop.permute.xlu0 %1914
        %1916 = vrot.lane.b32.xlu0 %v1408, 64
        %v1917 = vpop.permute.xlu0 %1916
        %1918 = vrot.lane.b32.xlu0 %v1413, 64
        %v1919 = vpop.permute.xlu0 %1918
        %v1936 = vmul.f32 %v1841, %v1889
        %v1937 = vmul.f32 %v1843, %v1891
        %v1938 = vmul.f32 %v1845, %v1893
        %v1939 = vmul.f32 %v1847, %v1895
        %v1940 = vmul.f32 %v1849, %v1897
        %v1941 = vmul.f32 %v1851, %v1899
        %v1942 = vmul.f32 %v1853, %v1901
        %v1943 = vmul.f32 %v1855, %v1903
        %v1944 = vmul.f32 %v1857, %v1905
        %v1945 = vmul.f32 %v1859, %v1907
        %v1946 = vmul.f32 %v1861, %v1909
        %v1947 = vmul.f32 %v1863, %v1911
        %v1948 = vmul.f32 %v1865, %v1913
        %v1949 = vmul.f32 %v1867, %v1915
        %v1950 = vmul.f32 %v1869, %v1917
        %v1951 = vmul.f32 %v1871, %v1919
        %1968 = vrot.lane.b32.xlu0 %v1936, 64
        %v1969 = vpop.permute.xlu0 %1968
        %1970 = vrot.lane.b32.xlu0 %v1937, 64
        %v1971 = vpop.permute.xlu0 %1970
        %1972 = vrot.lane.b32.xlu0 %v1938, 64
        %v1973 = vpop.permute.xlu0 %1972
        %1974 = vrot.lane.b32.xlu0 %v1939, 64
        %v1975 = vpop.permute.xlu0 %1974
        %1976 = vrot.lane.b32.xlu0 %v1940, 64
        %v1977 = vpop.permute.xlu0 %1976
        %1978 = vrot.lane.b32.xlu0 %v1941, 64
        %v1979 = vpop.permute.xlu0 %1978
        %1980 = vrot.lane.b32.xlu0 %v1942, 64
        %v1981 = vpop.permute.xlu0 %1980
        %1982 = vrot.lane.b32.xlu0 %v1943, 64
        %v1983 = vpop.permute.xlu0 %1982
        %1984 = vrot.lane.b32.xlu0 %v1944, 64
        %v1985 = vpop.permute.xlu0 %1984
        %1986 = vrot.lane.b32.xlu0 %v1945, 64
        %v1987 = vpop.permute.xlu0 %1986
        %1988 = vrot.lane.b32.xlu0 %v1946, 64
        %v1989 = vpop.permute.xlu0 %1988
        %1990 = vrot.lane.b32.xlu0 %v1947, 64
        %v1991 = vpop.permute.xlu0 %1990
        %1992 = vrot.lane.b32.xlu0 %v1948, 64
        %v1993 = vpop.permute.xlu0 %1992
        %1994 = vrot.lane.b32.xlu0 %v1949, 64
        %v1995 = vpop.permute.xlu0 %1994
        %1996 = vrot.lane.b32.xlu0 %v1950, 64
        %v1997 = vpop.permute.xlu0 %1996
        %1998 = vrot.lane.b32.xlu0 %v1951, 64
        %v1999 = vpop.permute.xlu0 %1998
        %v2016 = vsel %vm772, %v1969, %v1841
        %v2017 = vsel %vm772, %v1971, %v1843
        %v2018 = vsel %vm772, %v1973, %v1845
        %v2019 = vsel %vm772, %v1975, %v1847
        %v2020 = vsel %vm772, %v1977, %v1849
        %v2021 = vsel %vm772, %v1979, %v1851
        %v2022 = vsel %vm772, %v1981, %v1853
        %v2023 = vsel %vm772, %v1983, %v1855
        %v2024 = vsel %vm772, %v1985, %v1857
        %v2025 = vsel %vm772, %v1987, %v1859
        %v2026 = vsel %vm772, %v1989, %v1861
        %v2027 = vsel %vm772, %v1991, %v1863
        %v2028 = vsel %vm772, %v1993, %v1865
        %v2029 = vsel %vm772, %v1995, %v1867
        %v2030 = vsel %vm772, %v1997, %v1869
        %v2031 = vsel %vm772, %v1999, %v1871
        %v2032 = vld [vmem:[#allocation3] sm:$0xff]
        %v2033 = vld [vmem:[#allocation3 + $0x8] sm:$0xff]
        %v2034 = vld [vmem:[#allocation3 + $0x10] sm:$0xff]
        %v2035 = vld [vmem:[#allocation3 + $0x18] sm:$0x7f]
        %2036 = vmatprep.subr.mxu0 0.0
        %2037 = vmatpush1.msra.mxu0 %v2031
        %2038 = vmatprep.subr.mxu0 0.0
        %2039 = vmatpush1.msra.mxu0 %v2030
        %2040 = vmatprep.subr.mxu0 0.0
        %2041 = vmatpush1.msra.mxu0 %v2029
        %2042 = vmatprep.subr.mxu0 0.0
        %2043 = vmatpush1.msra.mxu0 %v2028
        %2044 = vmatprep.subr.mxu0 0.0
        %2045 = vmatpush1.msra.mxu0 %v2027
        %2046 = vmatprep.subr.mxu0 0.0
        %2047 = vmatpush1.msra.mxu0 %v2026
        %2048 = vmatprep.subr.mxu0 0.0
        %2049 = vmatpush1.msra.mxu0 %v2025
        %2050 = vmatprep.subr.mxu0 0.0
        %2051 = vmatpush1.msra.mxu0 %v2024
        %2052 = vmatprep.subr.mxu0 0.0
        %2053 = vmatpush1.msra.mxu0 %v2023
        %2054 = vmatprep.subr.mxu0 0.0
        %2055 = vmatpush1.msra.mxu0 %v2022
        %2056 = vmatprep.subr.mxu0 0.0
        %2057 = vmatpush1.msra.mxu0 %v2021
        %2058 = vmatprep.subr.mxu0 0.0
        %2059 = vmatpush1.msra.mxu0 %v2020
        %2060 = vmatprep.subr.mxu0 0.0
        %2061 = vmatpush1.msra.mxu0 %v2019
        %2062 = vmatprep.subr.mxu0 0.0
        %2063 = vmatpush1.msra.mxu0 %v2018
        %2064 = vmatprep.subr.mxu0 0.0
        %2065 = vmatpush1.msra.mxu0 %v2017
        %2066 = vmatprep.subr.mxu0 0.0
        %2067 = vmatpush1.msra.mxu0 %v2016
        %2068 = vmatprep.subr.mxu0 0.0
        %2069 = vmatpush2.msra.mxu0 0.0
        %2070 = vmatprep.subr.mxu0 0.0
        %2071 = vmatpush2.msra.mxu0 0.0
        %2072 = vmatprep.subr.mxu0 0.0
        %2073 = vmatpush2.msra.mxu0 0.0
        %2074 = vmatprep.subr.mxu0 0.0
        %2075 = vmatpush2.msra.mxu0 0.0
        %2076 = vmatprep.subr.mxu0 0.0
        %2077 = vmatpush2.msra.mxu0 0.0
        %2078 = vmatprep.subr.mxu0 0.0
        %2079 = vmatpush2.msra.mxu0 0.0
        %2080 = vmatprep.subr.mxu0 0.0
        %2081 = vmatpush2.msra.mxu0 0.0
        %2082 = vmatprep.subr.mxu0 0.0
        %2083 = vmatpush2.msra.mxu0 0.0
        %2084 = vmatprep.subr.mxu0 0.0
        %2085 = vmatpush2.msra.mxu0 0.0
        %2086 = vmatprep.subr.mxu0 0.0
        %2087 = vmatpush2.msra.mxu0 0.0
        %2088 = vmatprep.subr.mxu0 0.0
        %2089 = vmatpush2.msra.mxu0 0.0
        %2090 = vmatprep.subr.mxu0 0.0
        %2091 = vmatpush2.msra.mxu0 0.0
        %2092 = vmatprep.subr.mxu0 0.0
        %2093 = vmatpush2.msra.mxu0 0.0
        %2094 = vmatprep.subr.mxu0 0.0
        %2095 = vmatpush2.msra.mxu0 0.0
        %2096 = vmatprep.subr.mxu0 0.0
        %2097 = vmatpush2.msra.mxu0 0.0
        %2098 = vmatprep.subr.mxu0 0.0
        %2099 = vmatpush2.msra.mxu0 0.0
        %2100 = vmatprep.mubr.f32.mxu0 0.0
        %2101 = vmatmul.mubr.f32.gmra.mxu0 %v1210
        %v2102 = vpop.f32.mrf.mxu0
        %v2103 = vadd.f32 0.0, %v2102
        %v2104 = vpop.f32.mrf.mxu0
        %2105 = vmatprep.mubr.f32.mxu0 0.0
        %2106 = vmatmul.mubr.f32.gmra.mxu0 %v1211
        %v2107 = vpop.f32.mrf.mxu0
        %v2108 = vadd.f32 0.0, %v2107
        %v2109 = vpop.f32.mrf.mxu0
        %2110 = vmatprep.mubr.f32.mxu0 0.0
        %2111 = vmatmul.mubr.f32.gmra.mxu0 %v1212
        %v2112 = vpop.f32.mrf.mxu0
        %v2113 = vadd.f32 0.0, %v2112
        %v2114 = vpop.f32.mrf.mxu0
        %2115 = vmatprep.mubr.f32.mxu0 0.0
        %2116 = vmatmul.mubr.f32.gmra.mxu0 %v1213
        %v2117 = vpop.f32.mrf.mxu0
        %v2118 = vadd.f32 0.0, %v2117
        %v2119 = vpop.f32.mrf.mxu0
        %2120 = vdwg.mxu0
        %v2121 = vadd.f32 %v2032, %v2103
        %v2122 = vadd.f32 %v2033, %v2108
        %v2123 = vadd.f32 %v2034, %v2113
        %v2124 = vadd.f32 %v2035, %v2118
        %2125 = vst [vmem:[#allocation3] sm:$0xff] %v2121
        %2126 = vst [vmem:[#allocation3 + $0x8] sm:$0xff] %v2122
        %2127 = vst [vmem:[#allocation3 + $0x10] sm:$0xff] %v2123
        %2128 = vst [vmem:[#allocation3 + $0x18] sm:$0x7f] %v2124
        %s2129 = smul.u32 %s30, 128
        %v2130 = vstv %s2129
        %v2131 = vadd.s32 %v967, %v2130
        %vm2132 = vcmp.eq.s32.totalorder %v969, 0
        %vm2133 = vcmp.ge.s32.totalorder %v2131, 0
        %vm2134 = vmand %vm2132, %vm2133
        %vm2135 = vcmp.lt.s32.totalorder %v2131, 70
        %vm2136 = vmand %vm2134, %vm2135
        %v2137 = vsel %vm2136, 1.0, 0.0
        %vm2138 = vcmp.eq.s32.totalorder %v969, 1
        %vm2139 = vcmp.ge.s32.totalorder %v2131, 70
        %vm2140 = vmand %vm2138, %vm2139
        %vm2141 = vcmp.lt.s32.totalorder %v2131, 110
        %vm2142 = vmand %vm2140, %vm2141
        %v2143 = vsel %vm2142, 1.0, %v2137
        %vm2144 = vcmp.eq.s32.totalorder %v969, 2
        %vm2145 = vcmp.ge.s32.totalorder %v2131, 110
        %vm2146 = vmand %vm2144, %vm2145
        %vm2147 = vcmp.lt.s32.totalorder %v2131, 144
        %vm2148 = vmand %vm2146, %vm2147
        %v2149 = vsel %vm2148, 1.0, %v2143
        %v2150 = vld [vmem:[%s572] sm:$0xff]
        %v2151 = vld [vmem:[%s572 + $0x8] sm:$0xff]
        %v2152 = vld [vmem:[%s572 + $0x10] sm:$0xff]
        %v2153 = vld [vmem:[%s572 + $0x18] sm:$0xff]
        %v2154 = vld [vmem:[%s572 + $0x20] sm:$0xff]
        %v2155 = vld [vmem:[%s572 + $0x28] sm:$0xff]
        %v2156 = vld [vmem:[%s572 + $0x30] sm:$0xff]
        %v2157 = vld [vmem:[%s572 + $0x38] sm:$0xff]
        %v2158 = vld [vmem:[%s572 + $0x40] sm:$0xff]
        %v2159 = vld [vmem:[%s572 + $0x48] sm:$0xff]
        %v2160 = vld [vmem:[%s572 + $0x50] sm:$0xff]
        %v2161 = vld [vmem:[%s572 + $0x58] sm:$0xff]
        %v2162 = vld [vmem:[%s572 + $0x60] sm:$0xff]
        %v2163 = vld [vmem:[%s572 + $0x68] sm:$0xff]
        %v2164 = vld [vmem:[%s572 + $0x70] sm:$0xff]
        %v2165 = vld [vmem:[%s572 + $0x78] sm:$0xff]
        %2167 = vset.pattern.permute.xlu0 0
        %2168 = vperm.xlu0 %2167, %v2150
        %v2169 = vpop.permute.xlu0 %2168
        %2172 = vset.pattern.permute.xlu0 0
        %2173 = vperm.xlu0 %2172, %v2151
        %v2174 = vpop.permute.xlu0 %2173
        %2177 = vset.pattern.permute.xlu0 0
        %2178 = vperm.xlu0 %2177, %v2152
        %v2179 = vpop.permute.xlu0 %2178
        %2182 = vset.pattern.permute.xlu0 0
        %2183 = vperm.xlu0 %2182, %v2153
        %v2184 = vpop.permute.xlu0 %2183
        %2187 = vset.pattern.permute.xlu0 0
        %2188 = vperm.xlu0 %2187, %v2154
        %v2189 = vpop.permute.xlu0 %2188
        %2192 = vset.pattern.permute.xlu0 0
        %2193 = vperm.xlu0 %2192, %v2155
        %v2194 = vpop.permute.xlu0 %2193
        %2197 = vset.pattern.permute.xlu0 0
        %2198 = vperm.xlu0 %2197, %v2156
        %v2199 = vpop.permute.xlu0 %2198
        %2202 = vset.pattern.permute.xlu0 0
        %2203 = vperm.xlu0 %2202, %v2157
        %v2204 = vpop.permute.xlu0 %2203
        %2207 = vset.pattern.permute.xlu0 0
        %2208 = vperm.xlu0 %2207, %v2158
        %v2209 = vpop.permute.xlu0 %2208
        %2212 = vset.pattern.permute.xlu0 0
        %2213 = vperm.xlu0 %2212, %v2159
        %v2214 = vpop.permute.xlu0 %2213
        %2217 = vset.pattern.permute.xlu0 0
        %2218 = vperm.xlu0 %2217, %v2160
        %v2219 = vpop.permute.xlu0 %2218
        %2222 = vset.pattern.permute.xlu0 0
        %2223 = vperm.xlu0 %2222, %v2161
        %v2224 = vpop.permute.xlu0 %2223
        %2227 = vset.pattern.permute.xlu0 0
        %2228 = vperm.xlu0 %2227, %v2162
        %v2229 = vpop.permute.xlu0 %2228
        %2232 = vset.pattern.permute.xlu0 0
        %2233 = vperm.xlu0 %2232, %v2163
        %v2234 = vpop.permute.xlu0 %2233
        %2237 = vset.pattern.permute.xlu0 0
        %2238 = vperm.xlu0 %2237, %v2164
        %v2239 = vpop.permute.xlu0 %2238
        %2242 = vset.pattern.permute.xlu0 0
        %2243 = vperm.xlu0 %2242, %v2165
        %v2244 = vpop.permute.xlu0 %2243
        %v2246 = vmul.f32 %v741, %v2169
        %v2247 = vmul.f32 %v742, %v2174
        %v2248 = vmul.f32 %v743, %v2179
        %v2249 = vmul.f32 %v744, %v2184
        %v2250 = vmul.f32 %v745, %v2189
        %v2251 = vmul.f32 %v746, %v2194
        %v2252 = vmul.f32 %v747, %v2199
        %v2253 = vmul.f32 %v748, %v2204
        %v2254 = vmul.f32 %v749, %v2209
        %v2255 = vmul.f32 %v750, %v2214
        %v2256 = vmul.f32 %v751, %v2219
        %v2257 = vmul.f32 %v752, %v2224
        %v2258 = vmul.f32 %v753, %v2229
        %v2259 = vmul.f32 %v754, %v2234
        %v2260 = vmul.f32 %v755, %v2239
        %v2261 = vmul.f32 %v756, %v2244
        %v2262 = vld [vmem:[#allocation6] sm:$0x7]
        %v2263 = vmul.f32 %v2246, %v2246
        %v2264 = vmul.f32 %v2247, %v2247
        %v2265 = vmul.f32 %v2248, %v2248
        %v2266 = vmul.f32 %v2249, %v2249
        %v2267 = vmul.f32 %v2250, %v2250
        %v2268 = vmul.f32 %v2251, %v2251
        %v2269 = vmul.f32 %v2252, %v2252
        %v2270 = vmul.f32 %v2253, %v2253
        %v2271 = vmul.f32 %v2254, %v2254
        %v2272 = vmul.f32 %v2255, %v2255
        %v2273 = vmul.f32 %v2256, %v2256
        %v2274 = vmul.f32 %v2257, %v2257
        %v2275 = vmul.f32 %v2258, %v2258
        %v2276 = vmul.f32 %v2259, %v2259
        %v2277 = vmul.f32 %v2260, %v2260
        %v2278 = vmul.f32 %v2261, %v2261
        %2295 = vrot.lane.b32.xlu0 %v2263, 64
        %v2296 = vpop.permute.xlu0 %2295
        %2297 = vrot.lane.b32.xlu0 %v2264, 64
        %v2298 = vpop.permute.xlu0 %2297
        %2299 = vrot.lane.b32.xlu0 %v2265, 64
        %v2300 = vpop.permute.xlu0 %2299
        %2301 = vrot.lane.b32.xlu0 %v2266, 64
        %v2302 = vpop.permute.xlu0 %2301
        %2303 = vrot.lane.b32.xlu0 %v2267, 64
        %v2304 = vpop.permute.xlu0 %2303
        %2305 = vrot.lane.b32.xlu0 %v2268, 64
        %v2306 = vpop.permute.xlu0 %2305
        %2307 = vrot.lane.b32.xlu0 %v2269, 64
        %v2308 = vpop.permute.xlu0 %2307
        %2309 = vrot.lane.b32.xlu0 %v2270, 64
        %v2310 = vpop.permute.xlu0 %2309
        %2311 = vrot.lane.b32.xlu0 %v2271, 64
        %v2312 = vpop.permute.xlu0 %2311
        %2313 = vrot.lane.b32.xlu0 %v2272, 64
        %v2314 = vpop.permute.xlu0 %2313
        %2315 = vrot.lane.b32.xlu0 %v2273, 64
        %v2316 = vpop.permute.xlu0 %2315
        %2317 = vrot.lane.b32.xlu0 %v2274, 64
        %v2318 = vpop.permute.xlu0 %2317
        %2319 = vrot.lane.b32.xlu0 %v2275, 64
        %v2320 = vpop.permute.xlu0 %2319
        %2321 = vrot.lane.b32.xlu0 %v2276, 64
        %v2322 = vpop.permute.xlu0 %2321
        %2323 = vrot.lane.b32.xlu0 %v2277, 64
        %v2324 = vpop.permute.xlu0 %2323
        %2325 = vrot.lane.b32.xlu0 %v2278, 64
        %v2326 = vpop.permute.xlu0 %2325
        %v2343 = vsel %vm772, %v2246, %v2296
        %v2344 = vsel %vm772, %v2247, %v2298
        %v2345 = vsel %vm772, %v2248, %v2300
        %v2346 = vsel %vm772, %v2249, %v2302
        %v2347 = vsel %vm772, %v2250, %v2304
        %v2348 = vsel %vm772, %v2251, %v2306
        %v2349 = vsel %vm772, %v2252, %v2308
        %v2350 = vsel %vm772, %v2253, %v2310
        %v2351 = vsel %vm772, %v2254, %v2312
        %v2352 = vsel %vm772, %v2255, %v2314
        %v2353 = vsel %vm772, %v2256, %v2316
        %v2354 = vsel %vm772, %v2257, %v2318
        %v2355 = vsel %vm772, %v2258, %v2320
        %v2356 = vsel %vm772, %v2259, %v2322
        %v2357 = vsel %vm772, %v2260, %v2324
        %v2358 = vsel %vm772, %v2261, %v2326
        %2359 = vmatprep.subr.mxu0 0.0
        %2360 = vmatpush1.msra.mxu0 %v2358
        %2361 = vmatprep.subr.mxu0 0.0
        %2362 = vmatpush1.msra.mxu0 %v2357
        %2363 = vmatprep.subr.mxu0 0.0
        %2364 = vmatpush1.msra.mxu0 %v2356
        %2365 = vmatprep.subr.mxu0 0.0
        %2366 = vmatpush1.msra.mxu0 %v2355
        %2367 = vmatprep.subr.mxu0 0.0
        %2368 = vmatpush1.msra.mxu0 %v2354
        %2369 = vmatprep.subr.mxu0 0.0
        %2370 = vmatpush1.msra.mxu0 %v2353
        %2371 = vmatprep.subr.mxu0 0.0
        %2372 = vmatpush1.msra.mxu0 %v2352
        %2373 = vmatprep.subr.mxu0 0.0
        %2374 = vmatpush1.msra.mxu0 %v2351
        %2375 = vmatprep.subr.mxu0 0.0
        %2376 = vmatpush1.msra.mxu0 %v2350
        %2377 = vmatprep.subr.mxu0 0.0
        %2378 = vmatpush1.msra.mxu0 %v2349
        %2379 = vmatprep.subr.mxu0 0.0
        %2380 = vmatpush1.msra.mxu0 %v2348
        %2381 = vmatprep.subr.mxu0 0.0
        %2382 = vmatpush1.msra.mxu0 %v2347
        %2383 = vmatprep.subr.mxu0 0.0
        %2384 = vmatpush1.msra.mxu0 %v2346
        %2385 = vmatprep.subr.mxu0 0.0
        %2386 = vmatpush1.msra.mxu0 %v2345
        %2387 = vmatprep.subr.mxu0 0.0
        %2388 = vmatpush1.msra.mxu0 %v2344
        %2389 = vmatprep.subr.mxu0 0.0
        %2390 = vmatpush1.msra.mxu0 %v2343
        %2391 = vmatprep.subr.mxu0 0.0
        %2392 = vmatpush2.msra.mxu0 0.0
        %2393 = vmatprep.subr.mxu0 0.0
        %2394 = vmatpush2.msra.mxu0 0.0
        %2395 = vmatprep.subr.mxu0 0.0
        %2396 = vmatpush2.msra.mxu0 0.0
        %2397 = vmatprep.subr.mxu0 0.0
        %2398 = vmatpush2.msra.mxu0 0.0
        %2399 = vmatprep.subr.mxu0 0.0
        %2400 = vmatpush2.msra.mxu0 0.0
        %2401 = vmatprep.subr.mxu0 0.0
        %2402 = vmatpush2.msra.mxu0 0.0
        %2403 = vmatprep.subr.mxu0 0.0
        %2404 = vmatpush2.msra.mxu0 0.0
        %2405 = vmatprep.subr.mxu0 0.0
        %2406 = vmatpush2.msra.mxu0 0.0
        %2407 = vmatprep.subr.mxu0 0.0
        %2408 = vmatpush2.msra.mxu0 0.0
        %2409 = vmatprep.subr.mxu0 0.0
        %2410 = vmatpush2.msra.mxu0 0.0
        %2411 = vmatprep.subr.mxu0 0.0
        %2412 = vmatpush2.msra.mxu0 0.0
        %2413 = vmatprep.subr.mxu0 0.0
        %2414 = vmatpush2.msra.mxu0 0.0
        %2415 = vmatprep.subr.mxu0 0.0
        %2416 = vmatpush2.msra.mxu0 0.0
        %2417 = vmatprep.subr.mxu0 0.0
        %2418 = vmatpush2.msra.mxu0 0.0
        %2419 = vmatprep.subr.mxu0 0.0
        %2420 = vmatpush2.msra.mxu0 0.0
        %2421 = vmatprep.subr.mxu0 0.0
        %2422 = vmatpush2.msra.mxu0 0.0
        %2423 = vmatprep.mubr.f32.mxu0 0.0
        %2424 = vmatmul.mubr.f32.gmra.mxu0 %v2149
        %v2425 = vpop.f32.mrf.mxu0
        %v2426 = vadd.f32 0.0, %v2425
        %v2427 = vpop.f32.mrf.mxu0
        %2428 = vdwg.mxu0
        %v2429 = vadd.f32 %v2262, %v2426
        %2430 = vst [vmem:[#allocation6] sm:$0x7] %v2429
        %p2431 = scmp.eq.s32.totalorder %s30, 1
        // Predicated region
        $region85: #{tpu_custom_call.1} parent=79 // pred_check
          %p2432 = pneg %p2431
        $region86: #{tpu_custom_call.1} parent=79 // pred_check_branch
          %2434 = sbr.rel (%p2432) target = $region88
        $region87: #{tpu_custom_call.1} parent=79 // pred_region
          %v2435 = vld [vmem:[%s0] sm:$0xff]
          %v2436 = vld [vmem:[%s0 + $0x8] sm:$0xff]
          %v2437 = vld [vmem:[%s0 + $0x10] sm:$0xff]
          %v2438 = vld [vmem:[%s0 + $0x18] sm:$0x7f]
          %v2439 = vld [vmem:[%s3] sm:$0xff]
          %v2440 = vld [vmem:[%s3 + $0x8] sm:$0xff]
          %v2441 = vld [vmem:[%s3 + $0x10] sm:$0xff]
          %v2442 = vld [vmem:[%s3 + $0x18] sm:$0xff]
          %v2443 = vld [vmem:[%s3 + $0x20] sm:$0xff]
          %v2444 = vld [vmem:[%s3 + $0x28] sm:$0xff]
          %v2445 = vld [vmem:[%s3 + $0x30] sm:$0xff]
          %v2446 = vld [vmem:[%s3 + $0x38] sm:$0xff]
          %v2447 = vld [vmem:[%s4] sm:$0x1]
          %v2449 = vlaneseq
          %v2450 = vshrl.u32 %v2449, 7
          %v2451 = vsub.s32 0, %v2450
          %v2452 = vrot.slane %v2447, %v2451
          %v2455 = vsel %vm772, %v2435, 0
          %v2458 = vsel %vm772, %v2436, 0
          %v2461 = vsel %vm772, %v2437, 0
          %v2464 = vsel %vm772, %v2438, 0
          %2466 = vmatprep.subr.mxu0 0.0
          %2467 = vmatpush1.msra.mxu0 0.0
          %2468 = vmatprep.subr.mxu0 0.0
          %2469 = vmatpush1.msra.mxu0 0.0
          %2470 = vmatprep.subr.mxu0 0.0
          %2471 = vmatpush1.msra.mxu0 0.0
          %2472 = vmatprep.subr.mxu0 0.0
          %2473 = vmatpush1.msra.mxu0 0.0
          %2474 = vmatprep.subr.mxu0 0.0
          %2475 = vmatpush1.msra.mxu0 0.0
          %2476 = vmatprep.subr.mxu0 0.0
          %2477 = vmatpush1.msra.mxu0 0.0
          %2478 = vmatprep.subr.mxu0 0.0
          %2479 = vmatpush1.msra.mxu0 0.0
          %2480 = vmatprep.subr.mxu0 0.0
          %2481 = vmatpush1.msra.mxu0 0.0
          %2482 = vmatprep.subr.mxu0 0.0
          %2483 = vmatpush1.msra.mxu0 %v2446
          %2484 = vmatprep.subr.mxu0 0.0
          %2485 = vmatpush1.msra.mxu0 %v2445
          %2486 = vmatprep.subr.mxu0 0.0
          %2487 = vmatpush1.msra.mxu0 %v2444
          %2488 = vmatprep.subr.mxu0 0.0
          %2489 = vmatpush1.msra.mxu0 %v2443
          %2490 = vmatprep.subr.mxu0 0.0
          %2491 = vmatpush1.msra.mxu0 %v2442
          %2492 = vmatprep.subr.mxu0 0.0
          %2493 = vmatpush1.msra.mxu0 %v2441
          %2494 = vmatprep.subr.mxu0 0.0
          %2495 = vmatpush1.msra.mxu0 %v2440
          %2496 = vmatprep.subr.mxu0 0.0
          %2497 = vmatpush1.msra.mxu0 %v2439
          %2498 = vmatprep.subr.mxu0 0.0
          %2499 = vmatpush2.msra.mxu0 0.0
          %2500 = vmatprep.subr.mxu0 0.0
          %2501 = vmatpush2.msra.mxu0 0.0
          %2502 = vmatprep.subr.mxu0 0.0
          %2503 = vmatpush2.msra.mxu0 0.0
          %2504 = vmatprep.subr.mxu0 0.0
          %2505 = vmatpush2.msra.mxu0 0.0
          %2506 = vmatprep.subr.mxu0 0.0
          %2507 = vmatpush2.msra.mxu0 0.0
          %2508 = vmatprep.subr.mxu0 0.0
          %2509 = vmatpush2.msra.mxu0 0.0
          %2510 = vmatprep.subr.mxu0 0.0
          %2511 = vmatpush2.msra.mxu0 0.0
          %2512 = vmatprep.subr.mxu0 0.0
          %2513 = vmatpush2.msra.mxu0 0.0
          %2514 = vmatprep.subr.mxu0 0.0
          %2515 = vmatpush2.msra.mxu0 0.0
          %2516 = vmatprep.subr.mxu0 0.0
          %2517 = vmatpush2.msra.mxu0 0.0
          %2518 = vmatprep.subr.mxu0 0.0
          %2519 = vmatpush2.msra.mxu0 0.0
          %2520 = vmatprep.subr.mxu0 0.0
          %2521 = vmatpush2.msra.mxu0 0.0
          %2522 = vmatprep.subr.mxu0 0.0
          %2523 = vmatpush2.msra.mxu0 0.0
          %2524 = vmatprep.subr.mxu0 0.0
          %2525 = vmatpush2.msra.mxu0 0.0
          %2526 = vmatprep.subr.mxu0 0.0
          %2527 = vmatpush2.msra.mxu0 0.0
          %2528 = vmatprep.subr.mxu0 0.0
          %2529 = vmatpush2.msra.mxu0 0.0
          %2530 = vmatprep.mubr.f32.mxu0 0.0
          %2531 = vmatmul.mubr.f32.gmra.mxu0 %v2455
          %v2532 = vpop.f32.mrf.mxu0
          %v2533 = vadd.f32 %v2452, %v2532
          %v2534 = vpop.f32.mrf.mxu0
          %2535 = vmatprep.mubr.f32.mxu0 0.0
          %2536 = vmatmul.mubr.f32.gmra.mxu0 %v2458
          %v2537 = vpop.f32.mrf.mxu0
          %v2538 = vadd.f32 %v2452, %v2537
          %v2539 = vpop.f32.mrf.mxu0
          %2540 = vmatprep.mubr.f32.mxu0 0.0
          %2541 = vmatmul.mubr.f32.gmra.mxu0 %v2461
          %v2542 = vpop.f32.mrf.mxu0
          %v2543 = vadd.f32 %v2452, %v2542
          %v2544 = vpop.f32.mrf.mxu0
          %2545 = vmatprep.mubr.f32.mxu0 0.0
          %2546 = vmatmul.mubr.f32.gmra.mxu0 %v2464
          %v2547 = vpop.f32.mrf.mxu0
          %v2548 = vadd.f32 %v2452, %v2547
          %v2549 = vpop.f32.mrf.mxu0
          %2550 = vdwg.mxu0
          %v2551 = vld [vmem:[#allocation3] sm:$0xff]
          %v2552 = vld [vmem:[#allocation3 + $0x8] sm:$0xff]
          %v2553 = vld [vmem:[#allocation3 + $0x10] sm:$0xff]
          %v2554 = vld [vmem:[#allocation3 + $0x18] sm:$0x7f]
          %v2555 = vadd.f32 %v2551, 1e-06
          %v2556 = vadd.f32 %v2552, 1e-06
          %v2557 = vadd.f32 %v2553, 1e-06
          %v2558 = vadd.f32 %v2554, 1e-06
          %2563 = vrot.lane.b32.xlu0 %v2555, 64
          %v2564 = vpop.permute.xlu0 %2563
          %2565 = vrot.lane.b32.xlu0 %v2556, 64
          %v2566 = vpop.permute.xlu0 %2565
          %2567 = vrot.lane.b32.xlu0 %v2557, 64
          %v2568 = vpop.permute.xlu0 %2567
          %2569 = vrot.lane.b32.xlu0 %v2558, 64
          %v2570 = vpop.permute.xlu0 %2569
          %v2575 = vrcp.pop %v2564
          %v2576 = vmul.f32 %v2551, %v2575
          %v2577 = vrcp.pop %v2566
          %v2578 = vmul.f32 %v2552, %v2577
          %v2579 = vrcp.pop %v2568
          %v2580 = vmul.f32 %v2553, %v2579
          %v2581 = vrcp.pop %v2570
          %v2582 = vmul.f32 %v2554, %v2581
          %v2583 = vadd.f32 %v2533, %v2576
          %v2584 = vadd.f32 %v2538, %v2578
          %v2585 = vadd.f32 %v2543, %v2580
          %v2586 = vadd.f32 %v2548, %v2582
          %v2587 = vld [vmem:[%s12] sm:$0xff]
          %v2588 = vld [vmem:[%s12 + $0x8] sm:$0xff]
          %v2589 = vld [vmem:[%s12 + $0x10] sm:$0xff]
          %v2590 = vld [vmem:[%s12 + $0x18] sm:$0x7f]
          %2592 = vset.pattern.permute.xlu0 0
          %2593 = vperm.xlu0 %2592, %v2587
          %v2594 = vpop.permute.xlu0 %2593
          %2597 = vset.pattern.permute.xlu0 0
          %2598 = vperm.xlu0 %2597, %v2588
          %v2599 = vpop.permute.xlu0 %2598
          %2602 = vset.pattern.permute.xlu0 0
          %2603 = vperm.xlu0 %2602, %v2589
          %v2604 = vpop.permute.xlu0 %2603
          %2607 = vset.pattern.permute.xlu0 0
          %2608 = vperm.xlu0 %2607, %v2590
          %v2609 = vpop.permute.xlu0 %2608
          %v2611 = vmul.f32 %v2583, %v2594
          %v2612 = vmul.f32 %v2584, %v2599
          %v2613 = vmul.f32 %v2585, %v2604
          %v2614 = vmul.f32 %v2586, %v2609
          %vm2615 = vcmp.ge.s32.totalorder %v967, 0
          %vm2616 = vmand %vm2132, %vm2615
          %vm2617 = vcmp.lt.s32.totalorder %v967, 12
          %vm2618 = vmand %vm2616, %vm2617
          %vm2619 = vcmp.eq.s32.totalorder %v967, 0
          %vm2620 = vcmp.ge.s32.totalorder %v969, 0
          %vm2621 = vcmp.ge.s32.totalorder %v970, 0
          %vm2622 = vcmp.ge.s32.totalorder %v971, 0
          %vm2623 = vcmp.ge.s32.totalorder %v972, 0
          %vm2624 = vmand %vm2619, %vm2620
          %vm2625 = vmand %vm2619, %vm2621
          %vm2626 = vmand %vm2619, %vm2622
          %vm2627 = vmand %vm2619, %vm2623
          %vm2628 = vcmp.lt.s32.totalorder %v969, 12
          %vm2629 = vcmp.lt.s32.totalorder %v970, 12
          %vm2630 = vcmp.lt.s32.totalorder %v971, 12
          %vm2631 = vcmp.lt.s32.totalorder %v972, 12
          %vm2632 = vmand %vm2624, %vm2628
          %vm2633 = vmand %vm2625, %vm2629
          %vm2634 = vmand %vm2626, %vm2630
          %vm2635 = vmand %vm2627, %vm2631
          %v2636 = vsel %vm2618, 0.083333336, 0.0
          %v2637 = vsel %vm2618, 0.09090909, 0.0
          %v2638 = vsel %vm2632, 1.0, 0.0
          %v2639 = vsel %vm2633, 1.0, 0.0
          %v2640 = vsel %vm2634, 1.0, 0.0
          %v2641 = vsel %vm2635, 1.0, 0.0
          %vm2642 = vcmp.ge.s32.totalorder %v967, 12
          %vm2643 = vmand %vm2138, %vm2642
          %vm2644 = vcmp.lt.s32.totalorder %v967, 22
          %vm2645 = vmand %vm2643, %vm2644
          %vm2646 = vcmp.eq.s32.totalorder %v967, 1
          %vm2647 = vcmp.ge.s32.totalorder %v969, 12
          %vm2648 = vcmp.ge.s32.totalorder %v970, 12
          %vm2649 = vcmp.ge.s32.totalorder %v971, 12
          %vm2650 = vcmp.ge.s32.totalorder %v972, 12
          %vm2651 = vmand %vm2646, %vm2647
          %vm2652 = vmand %vm2646, %vm2648
          %vm2653 = vmand %vm2646, %vm2649
          %vm2654 = vmand %vm2646, %vm2650
          %vm2655 = vcmp.lt.s32.totalorder %v969, 22
          %vm2656 = vcmp.lt.s32.totalorder %v970, 22
          %vm2657 = vcmp.lt.s32.totalorder %v971, 22
          %vm2658 = vcmp.lt.s32.totalorder %v972, 22
          %vm2659 = vmand %vm2651, %vm2655
          %vm2660 = vmand %vm2652, %vm2656
          %vm2661 = vmand %vm2653, %vm2657
          %vm2662 = vmand %vm2654, %vm2658
          %v2663 = vsel %vm2645, 0.1, %v2636
          %v2664 = vsel %vm2645, 0.11111111, %v2637
          %v2665 = vsel %vm2659, 1.0, %v2638
          %v2666 = vsel %vm2660, 1.0, %v2639
          %v2667 = vsel %vm2661, 1.0, %v2640
          %v2668 = vsel %vm2662, 1.0, %v2641
          %vm2669 = vcmp.ge.s32.totalorder %v967, 22
          %vm2670 = vmand %vm2144, %vm2669
          %vm2671 = vcmp.lt.s32.totalorder %v967, 31
          %vm2672 = vmand %vm2670, %vm2671
          %vm2673 = vcmp.eq.s32.totalorder %v967, 2
          %vm2674 = vcmp.ge.s32.totalorder %v969, 22
          %vm2675 = vcmp.ge.s32.totalorder %v970, 22
          %vm2676 = vcmp.ge.s32.totalorder %v971, 22
          %vm2677 = vcmp.ge.s32.totalorder %v972, 22
          %vm2678 = vmand %vm2673, %vm2674
          %vm2679 = vmand %vm2673, %vm2675
          %vm2680 = vmand %vm2673, %vm2676
          %vm2681 = vmand %vm2673, %vm2677
          %vm2682 = vcmp.lt.s32.totalorder %v969, 31
          %vm2683 = vcmp.lt.s32.totalorder %v970, 31
          %vm2684 = vcmp.lt.s32.totalorder %v971, 31
          %vm2685 = vcmp.lt.s32.totalorder %v972, 31
          %vm2686 = vmand %vm2678, %vm2682
          %vm2687 = vmand %vm2679, %vm2683
          %vm2688 = vmand %vm2680, %vm2684
          %vm2689 = vmand %vm2681, %vm2685
          %v2690 = vsel %vm2672, 0.11111111, %v2663
          %v2691 = vsel %vm2672, 0.125, %v2664
          %v2692 = vsel %vm2686, 1.0, %v2665
          %v2693 = vsel %vm2687, 1.0, %v2666
          %v2694 = vsel %vm2688, 1.0, %v2667
          %v2695 = vsel %vm2689, 1.0, %v2668
          %v2697 = vsel %vm1218, %v2690, 0
          %v2700 = vsel %vm1267, %v2614, 0
          %2702 = vmatprep.subr.mxu0 0.0
          %2703 = vmatpush1.msra.mxu0 0.0
          %2704 = vmatprep.subr.mxu0 0.0
          %2705 = vmatpush1.msra.mxu0 0.0
          %2706 = vmatprep.subr.mxu0 0.0
          %2707 = vmatpush1.msra.mxu0 0.0
          %2708 = vmatprep.subr.mxu0 0.0
          %2709 = vmatpush1.msra.mxu0 0.0
          %2710 = vmatprep.subr.mxu0 0.0
          %2711 = vmatpush1.msra.mxu0 0.0
          %2712 = vmatprep.subr.mxu0 0.0
          %2713 = vmatpush1.msra.mxu0 0.0
          %2714 = vmatprep.subr.mxu0 0.0
          %2715 = vmatpush1.msra.mxu0 0.0
          %2716 = vmatprep.subr.mxu0 0.0
          %2717 = vmatpush1.msra.mxu0 0.0
          %2718 = vmatprep.subr.mxu0 0.0
          %2719 = vmatpush1.msra.mxu0 0.0
          %2720 = vmatprep.subr.mxu0 0.0
          %2721 = vmatpush1.msra.mxu0 0.0
          %2722 = vmatprep.subr.mxu0 0.0
          %2723 = vmatpush1.msra.mxu0 0.0
          %2724 = vmatprep.subr.mxu0 0.0
          %2725 = vmatpush1.msra.mxu0 0.0
          %2726 = vmatprep.subr.mxu0 0.0
          %2727 = vmatpush1.msra.mxu0 %v2700
          %2728 = vmatprep.subr.mxu0 0.0
          %2729 = vmatpush1.msra.mxu0 %v2613
          %2730 = vmatprep.subr.mxu0 0.0
          %2731 = vmatpush1.msra.mxu0 %v2612
          %2732 = vmatprep.subr.mxu0 0.0
          %2733 = vmatpush1.msra.mxu0 %v2611
          %2734 = vmatprep.subr.mxu0 0.0
          %2735 = vmatpush2.msra.mxu0 0.0
          %2736 = vmatprep.subr.mxu0 0.0
          %2737 = vmatpush2.msra.mxu0 0.0
          %2738 = vmatprep.subr.mxu0 0.0
          %2739 = vmatpush2.msra.mxu0 0.0
          %2740 = vmatprep.subr.mxu0 0.0
          %2741 = vmatpush2.msra.mxu0 0.0
          %2742 = vmatprep.subr.mxu0 0.0
          %2743 = vmatpush2.msra.mxu0 0.0
          %2744 = vmatprep.subr.mxu0 0.0
          %2745 = vmatpush2.msra.mxu0 0.0
          %2746 = vmatprep.subr.mxu0 0.0
          %2747 = vmatpush2.msra.mxu0 0.0
          %2748 = vmatprep.subr.mxu0 0.0
          %2749 = vmatpush2.msra.mxu0 0.0
          %2750 = vmatprep.subr.mxu0 0.0
          %2751 = vmatpush2.msra.mxu0 0.0
          %2752 = vmatprep.subr.mxu0 0.0
          %2753 = vmatpush2.msra.mxu0 0.0
          %2754 = vmatprep.subr.mxu0 0.0
          %2755 = vmatpush2.msra.mxu0 0.0
          %2756 = vmatprep.subr.mxu0 0.0
          %2757 = vmatpush2.msra.mxu0 0.0
          %2758 = vmatprep.subr.mxu0 0.0
          %2759 = vmatpush2.msra.mxu0 0.0
          %2760 = vmatprep.subr.mxu0 0.0
          %2761 = vmatpush2.msra.mxu0 0.0
          %2762 = vmatprep.subr.mxu0 0.0
          %2763 = vmatpush2.msra.mxu0 0.0
          %2764 = vmatprep.subr.mxu0 0.0
          %2765 = vmatpush2.msra.mxu0 0.0
          %2766 = vmatprep.mubr.f32.mxu0 0.0
          %2767 = vmatmul.mubr.f32.gmra.mxu0 %v2697
          %v2768 = vpop.f32.mrf.mxu0
          %v2769 = vadd.f32 0.0, %v2768
          %v2770 = vpop.f32.mrf.mxu0
          %2771 = vdwg.mxu0
          %vm2772 = vcmask 23552
          %v2774 = vsel %vm2772, %v2692, 0
          %v2777 = vsel %vm2772, %v2693, 0
          %v2780 = vsel %vm2772, %v2694, 0
          %v2783 = vsel %vm2772, %v2695, 0
          %vm2785 = vcmask 1042432
          %v2787 = vsel %vm2785, %v2769, 0
          %2789 = vmatprep.subr.mxu0 0.0
          %2790 = vmatpush1.msra.mxu0 0.0
          %2791 = vmatprep.subr.mxu0 0.0
          %2792 = vmatpush1.msra.mxu0 0.0
          %2793 = vmatprep.subr.mxu0 0.0
          %2794 = vmatpush1.msra.mxu0 0.0
          %2795 = vmatprep.subr.mxu0 0.0
          %2796 = vmatpush1.msra.mxu0 0.0
          %2797 = vmatprep.subr.mxu0 0.0
          %2798 = vmatpush1.msra.mxu0 0.0
          %2799 = vmatprep.subr.mxu0 0.0
          %2800 = vmatpush1.msra.mxu0 0.0
          %2801 = vmatprep.subr.mxu0 0.0
          %2802 = vmatpush1.msra.mxu0 0.0
          %2803 = vmatprep.subr.mxu0 0.0
          %2804 = vmatpush1.msra.mxu0 0.0
          %2805 = vmatprep.subr.mxu0 0.0
          %2806 = vmatpush1.msra.mxu0 0.0
          %2807 = vmatprep.subr.mxu0 0.0
          %2808 = vmatpush1.msra.mxu0 0.0
          %2809 = vmatprep.subr.mxu0 0.0
          %2810 = vmatpush1.msra.mxu0 0.0
          %2811 = vmatprep.subr.mxu0 0.0
          %2812 = vmatpush1.msra.mxu0 0.0
          %2813 = vmatprep.subr.mxu0 0.0
          %2814 = vmatpush1.msra.mxu0 0.0
          %2815 = vmatprep.subr.mxu0 0.0
          %2816 = vmatpush1.msra.mxu0 0.0
          %2817 = vmatprep.subr.mxu0 0.0
          %2818 = vmatpush1.msra.mxu0 0.0
          %2819 = vmatprep.subr.mxu0 0.0
          %2820 = vmatpush1.msra.mxu0 %v2787
          %2821 = vmatprep.subr.mxu0 0.0
          %2822 = vmatpush2.msra.mxu0 0.0
          %2823 = vmatprep.subr.mxu0 0.0
          %2824 = vmatpush2.msra.mxu0 0.0
          %2825 = vmatprep.subr.mxu0 0.0
          %2826 = vmatpush2.msra.mxu0 0.0
          %2827 = vmatprep.subr.mxu0 0.0
          %2828 = vmatpush2.msra.mxu0 0.0
          %2829 = vmatprep.subr.mxu0 0.0
          %2830 = vmatpush2.msra.mxu0 0.0
          %2831 = vmatprep.subr.mxu0 0.0
          %2832 = vmatpush2.msra.mxu0 0.0
          %2833 = vmatprep.subr.mxu0 0.0
          %2834 = vmatpush2.msra.mxu0 0.0
          %2835 = vmatprep.subr.mxu0 0.0
          %2836 = vmatpush2.msra.mxu0 0.0
          %2837 = vmatprep.subr.mxu0 0.0
          %2838 = vmatpush2.msra.mxu0 0.0
          %2839 = vmatprep.subr.mxu0 0.0
          %2840 = vmatpush2.msra.mxu0 0.0
          %2841 = vmatprep.subr.mxu0 0.0
          %2842 = vmatpush2.msra.mxu0 0.0
          %2843 = vmatprep.subr.mxu0 0.0
          %2844 = vmatpush2.msra.mxu0 0.0
          %2845 = vmatprep.subr.mxu0 0.0
          %2846 = vmatpush2.msra.mxu0 0.0
          %2847 = vmatprep.subr.mxu0 0.0
          %2848 = vmatpush2.msra.mxu0 0.0
          %2849 = vmatprep.subr.mxu0 0.0
          %2850 = vmatpush2.msra.mxu0 0.0
          %2851 = vmatprep.subr.mxu0 0.0
          %2852 = vmatpush2.msra.mxu0 0.0
          %2853 = vmatprep.mubr.f32.mxu0 0.0
          %2854 = vmatmul.mubr.f32.gmra.mxu0 %v2774
          %v2855 = vpop.f32.mrf.mxu0
          %v2856 = vadd.f32 0.0, %v2855
          %v2857 = vpop.f32.mrf.mxu0
          %2858 = vmatprep.mubr.f32.mxu0 0.0
          %2859 = vmatmul.mubr.f32.gmra.mxu0 %v2777
          %v2860 = vpop.f32.mrf.mxu0
          %v2861 = vadd.f32 0.0, %v2860
          %v2862 = vpop.f32.mrf.mxu0
          %2863 = vmatprep.mubr.f32.mxu0 0.0
          %2864 = vmatmul.mubr.f32.gmra.mxu0 %v2780
          %v2865 = vpop.f32.mrf.mxu0
          %v2866 = vadd.f32 0.0, %v2865
          %v2867 = vpop.f32.mrf.mxu0
          %2868 = vmatprep.mubr.f32.mxu0 0.0
          %2869 = vmatmul.mubr.f32.gmra.mxu0 %v2783
          %v2870 = vpop.f32.mrf.mxu0
          %v2871 = vadd.f32 0.0, %v2870
          %v2872 = vpop.f32.mrf.mxu0
          %2873 = vdwg.mxu0
          %v2874 = vsub.f32 %v2611, %v2856
          %v2875 = vsub.f32 %v2612, %v2861
          %v2876 = vsub.f32 %v2613, %v2866
          %v2877 = vsub.f32 %v2614, %v2871
          %v2878 = vmul.f32 %v2874, %v2874
          %v2879 = vmul.f32 %v2875, %v2875
          %v2880 = vmul.f32 %v2876, %v2876
          %v2881 = vmul.f32 %v2877, %v2877
          %v2883 = vsel %vm1218, %v2691, 0
          %v2886 = vsel %vm1267, %v2881, 0
          %2888 = vmatprep.subr.mxu0 0.0
          %2889 = vmatpush1.msra.mxu0 0.0
          %2890 = vmatprep.subr.mxu0 0.0
          %2891 = vmatpush1.msra.mxu0 0.0
          %2892 = vmatprep.subr.mxu0 0.0
          %2893 = vmatpush1.msra.mxu0 0.0
          %2894 = vmatprep.subr.mxu0 0.0
          %2895 = vmatpush1.msra.mxu0 0.0
          %2896 = vmatprep.subr.mxu0 0.0
          %2897 = vmatpush1.msra.mxu0 0.0
          %2898 = vmatprep.subr.mxu0 0.0
          %2899 = vmatpush1.msra.mxu0 0.0
          %2900 = vmatprep.subr.mxu0 0.0
          %2901 = vmatpush1.msra.mxu0 0.0
          %2902 = vmatprep.subr.mxu0 0.0
          %2903 = vmatpush1.msra.mxu0 0.0
          %2904 = vmatprep.subr.mxu0 0.0
          %2905 = vmatpush1.msra.mxu0 0.0
          %2906 = vmatprep.subr.mxu0 0.0
          %2907 = vmatpush1.msra.mxu0 0.0
          %2908 = vmatprep.subr.mxu0 0.0
          %2909 = vmatpush1.msra.mxu0 0.0
          %2910 = vmatprep.subr.mxu0 0.0
          %2911 = vmatpush1.msra.mxu0 0.0
          %2912 = vmatprep.subr.mxu0 0.0
          %2913 = vmatpush1.msra.mxu0 %v2886
          %2914 = vmatprep.subr.mxu0 0.0
          %2915 = vmatpush1.msra.mxu0 %v2880
          %2916 = vmatprep.subr.mxu0 0.0
          %2917 = vmatpush1.msra.mxu0 %v2879
          %2918 = vmatprep.subr.mxu0 0.0
          %2919 = vmatpush1.msra.mxu0 %v2878
          %2920 = vmatprep.subr.mxu0 0.0
          %2921 = vmatpush2.msra.mxu0 0.0
          %2922 = vmatprep.subr.mxu0 0.0
          %2923 = vmatpush2.msra.mxu0 0.0
          %2924 = vmatprep.subr.mxu0 0.0
          %2925 = vmatpush2.msra.mxu0 0.0
          %2926 = vmatprep.subr.mxu0 0.0
          %2927 = vmatpush2.msra.mxu0 0.0
          %2928 = vmatprep.subr.mxu0 0.0
          %2929 = vmatpush2.msra.mxu0 0.0
          %2930 = vmatprep.subr.mxu0 0.0
          %2931 = vmatpush2.msra.mxu0 0.0
          %2932 = vmatprep.subr.mxu0 0.0
          %2933 = vmatpush2.msra.mxu0 0.0
          %2934 = vmatprep.subr.mxu0 0.0
          %2935 = vmatpush2.msra.mxu0 0.0
          %2936 = vmatprep.subr.mxu0 0.0
          %2937 = vmatpush2.msra.mxu0 0.0
          %2938 = vmatprep.subr.mxu0 0.0
          %2939 = vmatpush2.msra.mxu0 0.0
          %2940 = vmatprep.subr.mxu0 0.0
          %2941 = vmatpush2.msra.mxu0 0.0
          %2942 = vmatprep.subr.mxu0 0.0
          %2943 = vmatpush2.msra.mxu0 0.0
          %2944 = vmatprep.subr.mxu0 0.0
          %2945 = vmatpush2.msra.mxu0 0.0
          %2946 = vmatprep.subr.mxu0 0.0
          %2947 = vmatpush2.msra.mxu0 0.0
          %2948 = vmatprep.subr.mxu0 0.0
          %2949 = vmatpush2.msra.mxu0 0.0
          %2950 = vmatprep.subr.mxu0 0.0
          %2951 = vmatpush2.msra.mxu0 0.0
          %2952 = vmatprep.mubr.f32.mxu0 0.0
          %2953 = vmatmul.mubr.f32.gmra.mxu0 %v2883
          %v2954 = vpop.f32.mrf.mxu0
          %v2955 = vadd.f32 0.0, %v2954
          %v2956 = vpop.f32.mrf.mxu0
          %2957 = vdwg.mxu0
          %v2958 = vrsqrt.pop %v2955
          %v2959 = vmul.f32 %v2955, %v2958
          %vm2960 = vcmp.eq.f32.partialorder %v2955, inf
          %v2961 = vsel %vm2960, %v2955, %v2959
          %vm2962 = vcmp.eq.f32.partialorder %v2955, 0.0
          %v2963 = vand.u32 %v2955, 2147483648
          %v2964 = vsel %vm2962, %v2963, %v2961
          %v2965 = vadd.f32 %v2964, 1e-05
          %v2966 = vrcp.pop %v2965
          %v2967 = vmul.f32 1.0, %v2966
          %v2969 = vsel %vm2785, %v2967, 0
          %2971 = vmatprep.subr.mxu0 0.0
          %2972 = vmatpush1.msra.mxu0 0.0
          %2973 = vmatprep.subr.mxu0 0.0
          %2974 = vmatpush1.msra.mxu0 0.0
          %2975 = vmatprep.subr.mxu0 0.0
          %2976 = vmatpush1.msra.mxu0 0.0
          %2977 = vmatprep.subr.mxu0 0.0
          %2978 = vmatpush1.msra.mxu0 0.0
          %2979 = vmatprep.subr.mxu0 0.0
          %2980 = vmatpush1.msra.mxu0 0.0
          %2981 = vmatprep.subr.mxu0 0.0
          %2982 = vmatpush1.msra.mxu0 0.0
          %2983 = vmatprep.subr.mxu0 0.0
          %2984 = vmatpush1.msra.mxu0 0.0
          %2985 = vmatprep.subr.mxu0 0.0
          %2986 = vmatpush1.msra.mxu0 0.0
          %2987 = vmatprep.subr.mxu0 0.0
          %2988 = vmatpush1.msra.mxu0 0.0
          %2989 = vmatprep.subr.mxu0 0.0
          %2990 = vmatpush1.msra.mxu0 0.0
          %2991 = vmatprep.subr.mxu0 0.0
          %2992 = vmatpush1.msra.mxu0 0.0
          %2993 = vmatprep.subr.mxu0 0.0
          %2994 = vmatpush1.msra.mxu0 0.0
          %2995 = vmatprep.subr.mxu0 0.0
          %2996 = vmatpush1.msra.mxu0 0.0
          %2997 = vmatprep.subr.mxu0 0.0
          %2998 = vmatpush1.msra.mxu0 0.0
          %2999 = vmatprep.subr.mxu0 0.0
          %3000 = vmatpush1.msra.mxu0 0.0
          %3001 = vmatprep.subr.mxu0 0.0
          %3002 = vmatpush1.msra.mxu0 %v2969
          %3003 = vmatprep.subr.mxu0 0.0
          %3004 = vmatpush2.msra.mxu0 0.0
          %3005 = vmatprep.subr.mxu0 0.0
          %3006 = vmatpush2.msra.mxu0 0.0
          %3007 = vmatprep.subr.mxu0 0.0
          %3008 = vmatpush2.msra.mxu0 0.0
          %3009 = vmatprep.subr.mxu0 0.0
          %3010 = vmatpush2.msra.mxu0 0.0
          %3011 = vmatprep.subr.mxu0 0.0
          %3012 = vmatpush2.msra.mxu0 0.0
          %3013 = vmatprep.subr.mxu0 0.0
          %3014 = vmatpush2.msra.mxu0 0.0
          %3015 = vmatprep.subr.mxu0 0.0
          %3016 = vmatpush2.msra.mxu0 0.0
          %3017 = vmatprep.subr.mxu0 0.0
          %3018 = vmatpush2.msra.mxu0 0.0
          %3019 = vmatprep.subr.mxu0 0.0
          %3020 = vmatpush2.msra.mxu0 0.0
          %3021 = vmatprep.subr.mxu0 0.0
          %3022 = vmatpush2.msra.mxu0 0.0
          %3023 = vmatprep.subr.mxu0 0.0
          %3024 = vmatpush2.msra.mxu0 0.0
          %3025 = vmatprep.subr.mxu0 0.0
          %3026 = vmatpush2.msra.mxu0 0.0
          %3027 = vmatprep.subr.mxu0 0.0
          %3028 = vmatpush2.msra.mxu0 0.0
          %3029 = vmatprep.subr.mxu0 0.0
          %3030 = vmatpush2.msra.mxu0 0.0
          %3031 = vmatprep.subr.mxu0 0.0
          %3032 = vmatpush2.msra.mxu0 0.0
          %3033 = vmatprep.subr.mxu0 0.0
          %3034 = vmatpush2.msra.mxu0 0.0
          %3035 = vmatprep.mubr.f32.mxu0 0.0
          %3036 = vmatmul.mubr.f32.gmra.mxu0 %v2774
          %v3037 = vpop.f32.mrf.mxu0
          %v3038 = vadd.f32 0.0, %v3037
          %v3039 = vpop.f32.mrf.mxu0
          %3040 = vmatprep.mubr.f32.mxu0 0.0
          %3041 = vmatmul.mubr.f32.gmra.mxu0 %v2777
          %v3042 = vpop.f32.mrf.mxu0
          %v3043 = vadd.f32 0.0, %v3042
          %v3044 = vpop.f32.mrf.mxu0
          %3045 = vmatprep.mubr.f32.mxu0 0.0
          %3046 = vmatmul.mubr.f32.gmra.mxu0 %v2780
          %v3047 = vpop.f32.mrf.mxu0
          %v3048 = vadd.f32 0.0, %v3047
          %v3049 = vpop.f32.mrf.mxu0
          %3050 = vmatprep.mubr.f32.mxu0 0.0
          %3051 = vmatmul.mubr.f32.gmra.mxu0 %v2783
          %v3052 = vpop.f32.mrf.mxu0
          %v3053 = vadd.f32 0.0, %v3052
          %v3054 = vpop.f32.mrf.mxu0
          %3055 = vdwg.mxu0
          %v3056 = vmul.f32 %v2874, %v3038
          %v3057 = vmul.f32 %v2875, %v3043
          %v3058 = vmul.f32 %v2876, %v3048
          %v3059 = vmul.f32 %v2877, %v3053
          %v3060 = vld [vmem:[%s13] sm:$0x1]
          %v3062 = vlaneseq
          %v3063 = vshrl.u32 %v3062, 7
          %v3064 = vsub.s32 0, %v3063
          %v3065 = vrot.slane %v3060, %v3064
          %v3067 = vmul.f32 %v3065, %v3056
          %v3068 = vmul.f32 %v3065, %v3057
          %v3069 = vmul.f32 %v3065, %v3058
          %v3070 = vmul.f32 %v3065, %v3059
          %v3071 = vld [vmem:[%s14] sm:$0x1]
          %v3073 = vlaneseq
          %v3074 = vshrl.u32 %v3073, 7
          %v3075 = vsub.s32 0, %v3074
          %v3076 = vrot.slane %v3071, %v3075
          %v3078 = vadd.f32 %v3067, %v3076
          %v3079 = vadd.f32 %v3068, %v3076
          %v3080 = vadd.f32 %v3069, %v3076
          %v3081 = vadd.f32 %v3070, %v3076
          %v3082 = vmax.f32 %v3078, 0.0
          %v3083 = vmax.f32 %v3079, 0.0
          %v3084 = vmax.f32 %v3080, 0.0
          %v3085 = vmax.f32 %v3081, 0.0
          %v3086 = vadd.f32 %v3082, %v2435
          %v3087 = vadd.f32 %v3083, %v2436
          %v3088 = vadd.f32 %v3084, %v2437
          %v3089 = vadd.f32 %v3085, %v2438
          %3090 = vst.msk [vmem:[#allocation4] sm:$0xff] %vm772, %v3086
          %3091 = vst.msk [vmem:[#allocation4 + $0x8] sm:$0xff] %vm772, %v3087
          %3092 = vst.msk [vmem:[#allocation4 + $0x10] sm:$0xff] %vm772, %v3088
          %vm3093 = vcmask 522240
          %3094 = vst.msk [vmem:[#allocation4 + $0x18] sm:$0x7f] %vm3093, %v3089
        $region88: #{tpu_custom_call.1} parent=79 // pred_fallthru
          _
        // Predicated region
        $region89: #{tpu_custom_call.1} parent=79 // pred_check
          %p3095 = pneg %p383
        $region90: #{tpu_custom_call.1} parent=79 // pred_check_branch
          %3097 = sbr.rel (%p3095) target = $region92
        $region91: #{tpu_custom_call.1} parent=79 // pred_region
          %s3099 = ssub.s32 512, 512
          %3100 = vsyncadd [#allocation5], %s3099
          %s3101 = sshll.u32 [#allocation4], 4
          %s3102 = int_to_ptr.vmem [resolvable:$true] %s3101
          %3107 = dma.vmem_to_hbm [thread:$0]  %s3102, 512, %s15, [#allocation5], 128, 128, 8
        $region92: #{tpu_custom_call.1} parent=79 // pred_fallthru
          _
        // Predicated region
        $region93: #{tpu_custom_call.1} parent=79 // pred_check
          %p3108 = pneg %p404
        $region94: #{tpu_custom_call.1} parent=79 // pred_check_branch
          %3110 = sbr.rel (%p3108) target = $region96
        $region95: #{tpu_custom_call.1} parent=79 // pred_region
          %s3112 = ssub.s32 64, 64
          %3113 = vsyncadd [#allocation7], %s3112
          %s3115 = sshll.u32 [#allocation6], 4
          %s3116 = int_to_ptr.vmem [resolvable:$true] %s3115
          %3118 = dma.vmem_to_hbm [thread:$0]  %s3116, 64, %s16, [#allocation7]
        $region96: #{tpu_custom_call.1} parent=79 // pred_fallthru
          _
        // Predicated region
        $region97: #{tpu_custom_call.1} parent=79 // pred_check
          %p3119 = pneg %p383
        $region98: #{tpu_custom_call.1} parent=79 // pred_check_branch
          %3121 = sbr.rel (%p3119) target = $region100
        $region99: #{tpu_custom_call.1} parent=79 // pred_region
          %3122 = dma.done [#allocation5], 512
        $region100: #{tpu_custom_call.1} parent=79 // pred_fallthru
          _
        // Predicated region
        $region101: #{tpu_custom_call.1} parent=79 // pred_check
          %p3123 = pneg %p404
        $region102: #{tpu_custom_call.1} parent=79 // pred_check_branch
          %3125 = sbr.rel (%p3123) target = $region104
        $region103: #{tpu_custom_call.1} parent=79 // pred_region
          %3126 = dma.done [#allocation7], 64
        $region104: #{tpu_custom_call.1} parent=79 // pred_fallthru
          _
      $region80: #{tpu_custom_call.1} parent=5 // pred_fallthru
        _
      %p3127 = scmp.le.s32.totalorder 2, %s25
      // Predicated region
      $region105: #{tpu_custom_call.1} parent=5 // pred_check
        %p3128 = pneg %p3127
      $region106: #{tpu_custom_call.1} parent=5 // pred_check_branch
        %3130 = sbr.rel (%p3128) target = $region108
      $region107: #{tpu_custom_call.1} parent=5 // pred_region
        %s3131 = ssub.s32 %s25, 2
      $region108: #{tpu_custom_call.1} parent=5 // pred_fallthru
        _
    $region6: #{tpu_custom_call.1} parent=1 // loop_footer
      %s29 = sadd.s32 1, %s25
    $region7: #{tpu_custom_call.1} parent=1 // loop_footer_branch
      %24 = sbr.rel target = $region3
    $region8: #{tpu_custom_call.1} parent=1 // loop_exit
      _
    %3132 = vsyncpa [#allocation5], 1
    %s3133 = scalar_lea.sflag [#allocation5], 1
    %3134 = vsyncpa %s3133, 1
    %3135 = vsyncpa [#allocation7], 1

</llo_original>
